<compile_context>
chip_gen: v7x
topology: tpu7x:2x2x1
jax: 0.10.0
libtpu: 0.0.40
codegen_flags: <defaults>
</compile_context>

<pallas_src>
import functools
from math import pi

import jax
import jax.numpy as jnp
from jax.experimental import pallas as pl
from jax.experimental.pallas import tpu as pltpu  # noqa: F401  (TPU backend)


# ----------------------------- in-kernel helpers ------------------------------

def _layernorm(x, gamma, beta, eps=1e-5):
    mean = jnp.mean(x, axis=-1, keepdims=True)
    var = jnp.mean((x - mean) ** 2, axis=-1, keepdims=True)
    return (x - mean) * jax.lax.rsqrt(var + eps) * gamma + beta


# ----------------------------- fused forward kernel ---------------------------

def fused_forward_kernel(
        x_ref,
        wqkv_ref, wo_ref, w1_ref, w2_ref, enc_vec_ref,
        dw1_ref, dw2_ref, dw3_ref, w4_ref, dec_vec_ref,
        o_ref,
        *, num_layers, heads, batch, time, nfreq, embed):
    f32, bf16 = jnp.float32, jnp.bfloat16
    N, T, E = batch, time, embed
    D = E // heads
    FE = w1_ref.shape[-1]          # forward_expansion * E
    Hh = dw2_ref.shape[-1]         # decoder hidden width per branch (256)

    # ---- EncoderDIYTransformer input prep (in-kernel): permute(0,2,1,3)+flatten(-2,-1)
    #      + linspace(0,1,T) positional encoding.  Dropout = identity at inference.
    x4 = x_ref[...].astype(f32)                                          # (N, Nfreq, T, Ncues)
    seq = jnp.concatenate([x4[:, f] for f in range(nfreq)], axis=-1)     # (N, T, E)
    pos = jax.lax.broadcasted_iota(jnp.int32, (N, T, E), 1).astype(f32)
    seq = seq + pos * (1.0 / max(T - 1, 1))
    x = seq.reshape(N * T, E)                     # (N*T, E): batch folded into sublane axis

    # ---------------- transformer encoder blocks (statically unrolled) ----------------
    for l in range(num_layers):
        vec = enc_vec_ref[l]                                             # (7, FE) f32
        bo, g1, be1 = vec[0:1, :E], vec[1:2, :E], vec[2:3, :E]
        b1 = vec[3:4, :FE]
        b2, g2, be2 = vec[4:5, :E], vec[5:6, :E], vec[6:7, :E]

        # Fused block-diagonal Q|K|V projection: ONE (E,3E) bf16 matmul (scale folded into Q).
        qkv = jnp.dot(x.astype(bf16), wqkv_ref[l], preferred_element_type=f32)   # (N*T, 3E)
        qkv3 = qkv.reshape(N, T, 3 * E)

        # Head-major relayout -> (heads*N, T, D) so attention is ONE batched einsum pair.
        q_hm = jnp.concatenate([qkv3[:, :, h * D:(h + 1) * D]
                                for h in range(heads)], axis=0)
        k_hm = jnp.concatenate([qkv3[:, :, E + h * D:E + (h + 1) * D]
                                for h in range(heads)], axis=0)
        v_hm = jnp.concatenate([qkv3[:, :, 2 * E + h * D:2 * E + (h + 1) * D]
                                for h in range(heads)], axis=0)

        s = jnp.einsum('bqd,bkd->bqk', q_hm.astype(bf16), k_hm.astype(bf16),
                       preferred_element_type=f32)                       # (heads*N, T, T)
        s = s - jnp.max(s, axis=-1, keepdims=True)
        p = jnp.exp(s)
        p = p * pl.reciprocal(jnp.sum(p, axis=-1, keepdims=True), approx=True)
        ctx_hm = jnp.einsum('bqk,bkd->bqd', p.astype(bf16), v_hm.astype(bf16),
                            preferred_element_type=f32)                  # (heads*N, T, D)
        ctx = jnp.concatenate([ctx_hm[h * N:(h + 1) * N]
                               for h in range(heads)], axis=-1)          # (N, T, E) head-major
        ctx2 = ctx.reshape(N * T, E)

        attn = jnp.dot(ctx2.astype(bf16), wo_ref[l], preferred_element_type=f32) + bo  # fc_out
        h1 = _layernorm(attn + x, g1, be1)                               # norm1(attention + query)

        ff = jnp.maximum(jnp.dot(h1.astype(bf16), w1_ref[l],
                                 preferred_element_type=f32) + b1, 0.0)  # Linear+ReLU
        ff = jnp.dot(ff.astype(bf16), w2_ref[l], preferred_element_type=f32) + b2
        x = _layernorm(ff + h1, g2, be2)                                 # norm2(forward + x)

    # ---------------- DecoderEAReg: flatten + fused FC_4 branches + interleave + clamps ----
    x3 = x.reshape(N, T, E)
    # torch.flatten(enc_out, 1, -1): lane concat (layout-identical, safe lowering path).
    flat = jnp.concatenate([x3[:, t, :] for t in range(T)], axis=-1)     # (N, T*E)

    dvec = dec_vec_ref[...]                                              # (4, 2*Hh) f32
    # Both branches' first Linear fused into one matmul; bias + eval-BN folded to scale/shift.
    h1d = jnp.maximum(
        jnp.dot(flat.astype(bf16), dw1_ref[...], preferred_element_type=f32)
        * dvec[0:1, :] + dvec[1:2, :], 0.0)                              # (N, 2*Hh)

    hids = []
    for br in range(2):                                                  # 0 = elev, 1 = azim
        hb = h1d[:, br * Hh:(br + 1) * Hh]
        hb = jnp.maximum(jnp.dot(hb.astype(bf16), dw2_ref[br], preferred_element_type=f32)
                         + dvec[2:3, br * Hh:(br + 1) * Hh], 0.0)
        hb = jnp.maximum(jnp.dot(hb.astype(bf16), dw3_ref[br], preferred_element_type=f32)
                         + dvec[3:4, br * Hh:(br + 1) * Hh], 0.0)
        hids.append(hb)
    hcat = jnp.concatenate(hids, axis=-1)                                # (N, 2*Hh)

    # Final no-bias Linears fused into one pre-interleaved weight: even cols=elev, odd=azim.
    y = jnp.dot(hcat.astype(bf16), w4_ref[...], preferred_element_type=f32)   # (N, 2*Nsound)
    col = jax.lax.broadcasted_iota(jnp.int32, y.shape, 1)
    is_azim = (col % 2) == 1
    lo = jnp.where(is_azim, 0.0, -pi / 4.0)        # Hardtanh bounds as in-kernel constants
    hi = jnp.where(is_azim, 2.0 * pi, pi / 2.0)
    o_ref[...] = jnp.minimum(jnp.maximum(y, lo), hi).astype(o_ref.dtype)


# ----------------------------- wrapper ----------------------------------------

def transformer_model_forward(x, kparams, *, heads, numEnc, Nsound):
    # x: (N, Nfreq, Ntime, Ncues) — everything (input prep included) runs in one kernel.
    N, Nfreq, Ntime, Ncues = x.shape
    E = Nfreq * Ncues
    assert E % heads == 0, "Embedding size needs to be divisible by heads"

    kernel = functools.partial(fused_forward_kernel, num_layers=numEnc, heads=heads,
                               batch=N, time=Ntime, nfreq=Nfreq, embed=E)
    return pl.pallas_call(
        kernel,
        out_shape=jax.ShapeDtypeStruct((N, 2 * Nsound), jnp.float32),
        # No grid: weights (~0.6 MiB bf16) + activations trivially fit VMEM on v5e/v6e/v7x.
    )(x.astype(jnp.float32),
      kparams["wqkv"], kparams["wo"], kparams["w1"], kparams["w2"], kparams["enc_vec"],
      kparams["dw1"], kparams["dw2"], kparams["dw3"], kparams["w4"], kparams["dec_vec"])


# ----------------------------- parameter init (torch layout) -------------------

def init_torch_params(key, Ntime, Nfreq, Ncues, Nsound, numEnc, heads, forward_expansion):
    E = Nfreq * Ncues
    D = E // heads
    F = Ntime * E                     # enc_out_size
    H = 256
    keys = iter(jax.random.split(key, 256))

    def lin(out_dim, in_dim):
        return jax.random.normal(next(keys), (out_dim, in_dim), jnp.float32) / (in_dim ** 0.5)

    def bias(dim):
        return 0.01 * jax.random.normal(next(keys), (dim,), jnp.float32)

    blocks = []
    for _ in range(numEnc):
        blocks.append(dict(
            wq=lin(D, D), wk=lin(D, D), wv=lin(D, D),
            wo=lin(E, E), bo=bias(E),
            g1=jnp.ones((E,), jnp.float32), be1=jnp.zeros((E,), jnp.float32),
            w1=lin(forward_expansion * E, E), b1=bias(forward_expansion * E),
            w2=lin(E, forward_expansion * E), b2=bias(E),
            g2=jnp.ones((E,), jnp.float32), be2=jnp.zeros((E,), jnp.float32)))

    def fc4_branch():
        return dict(w1=lin(H, F), b1=bias(H),
                    bn_g=jnp.ones((H,), jnp.float32), bn_b=jnp.zeros((H,), jnp.float32),
                    bn_rm=jnp.zeros((H,), jnp.float32), bn_rv=jnp.ones((H,), jnp.float32),
                    w2=lin(H, H), b2=bias(H),
                    w3=lin(H, H), b3=bias(H),
                    w4=lin(Nsound, H))

    return dict(blocks=blocks, elev=fc4_branch(), azim=fc4_branch())


# -------------------- pack params into kernel (compute) layout ------------------

def prepare_params(tp, heads, Nsound):
    """Fuse QKV (block-diag, scale folded), pre-transpose to (in,out), fold eval-BN,
    fuse decoder branches, pack small vectors, cast matmul weights to bf16."""
    blocks = tp["blocks"]
    E = blocks[0]["wo"].shape[0]
    FE = blocks[0]["w1"].shape[0]
    R = max(E, FE)
    eye_h = jnp.eye(heads, dtype=jnp.float32)
    scale = 1.0 / (E ** 0.5)
    bf16 = jnp.bfloat16

    def pad(v):
        return jnp.pad(v, (0, R - v.shape[0]))

    wqkv, wo, w1, w2, enc_vec = [], [], [], [], []
    for b in blocks:
        wqkv.append(jnp.concatenate([jnp.kron(eye_h, b["wq"].T) * scale,   # 1/sqrt(E) folded
                                     jnp.kron(eye_h, b["wk"].T),
                                     jnp.kron(eye_h, b["wv"].T)], axis=1))  # (E, 3E)
        wo.append(b["wo"].T)
        w1.append(b["w1"].T)
        w2.append(b["w2"].T)
        enc_vec.append(jnp.stack([pad(b["bo"]), pad(b["g1"]), pad(b["be1"]),
                                  pad(b["b1"]), pad(b["b2"]), pad(b["g2"]),
                                  pad(b["be2"])], axis=0))                  # (7, R)

    eps = 1e-5
    elev, azim = tp["elev"], tp["azim"]
    H = elev["w2"].shape[0]

    def bn_fold(br):
        s = br["bn_g"] * jax.lax.rsqrt(br["bn_rv"] + eps)
        sh = br["b1"] * s + br["bn_b"] - br["bn_rm"] * s     # Linear bias folded into BN shift
        return s, sh

    s_e, sh_e = bn_fold(elev)
    s_a, sh_a = bn_fold(azim)
    dec_vec = jnp.stack([jnp.concatenate([s_e, s_a]),
                         jnp.concatenate([sh_e, sh_a]),
                         jnp.concatenate([elev["b2"], azim["b2"]]),
                         jnp.concatenate([elev["b3"], azim["b3"]])], axis=0)  # (4, 2H)

    w4f = jnp.zeros((2 * H, 2 * Nsound), jnp.float32)
    w4f = w4f.at[:H, 0::2].set(elev["w4"].T)     # even output cols <- elev
    w4f = w4f.at[H:, 1::2].set(azim["w4"].T)     # odd  output cols <- azim

    return dict(
        wqkv=jnp.stack(wqkv).astype(bf16),
        wo=jnp.stack(wo).astype(bf16),
        w1=jnp.stack(w1).astype(bf16),
        w2=jnp.stack(w2).astype(bf16),
        enc_vec=jnp.stack(enc_vec),                                          # f32 (L,7,R)
        dw1=jnp.concatenate([elev["w1"].T, azim["w1"].T], axis=1).astype(bf16),  # (T*E, 2H)
        dw2=jnp.stack([elev["w2"].T, azim["w2"].T]).astype(bf16),            # (2, H, H)
        dw3=jnp.stack([elev["w3"].T, azim["w3"].T]).astype(bf16),            # (2, H, H)
        w4=w4f.astype(bf16),                                                 # (2H, 2*Nsound)
        dec_vec=dec_vec,                                                     # f32 (4, 2H)
    )


# ----------------------------------- main ---------------------------------------

if __name__ == "__main__":
    # Small, module-consistent shapes
    N, Ntime, Nfreq, Ncues = 2, 8, 8, 4
    Nsound = 2
    numEnc = 2
    heads = 4                      # embed_size E = 32, head_dim = 8
    forward_expansion = 4

    key = jax.random.PRNGKey(0)
    k_in, k_par = jax.random.split(key)
    x = jax.random.normal(k_in, (N, Nfreq, Ntime, Ncues), jnp.float32)

    torch_params = init_torch_params(k_par, Ntime, Nfreq, Ncues, Nsound,
                                     numEnc, heads, forward_expansion)
    kparams = prepare_params(torch_params, heads, Nsound)

    out = transformer_model_forward(x, kparams, heads=heads, numEnc=numEnc, Nsound=Nsound)
    out = jax.block_until_ready(out)
    assert out.shape == (N, 2 * Nsound)
    print("KERNEL_OK")
</pallas_src>

<mosaic_0001>
module attributes {stable_mosaic.version = 11 : i64} {
  func.func @fused_forward_kernel(%arg0: memref<2x8x8x4xf32, #tpu.memory_space<vmem>>, %arg1: memref<2x32x96xbf16, #tpu.memory_space<vmem>>, %arg2: memref<2x32x32xbf16, #tpu.memory_space<vmem>>, %arg3: memref<2x32x128xbf16, #tpu.memory_space<vmem>>, %arg4: memref<2x128x32xbf16, #tpu.memory_space<vmem>>, %arg5: memref<2x7x128xf32, #tpu.memory_space<vmem>>, %arg6: memref<256x512xbf16, #tpu.memory_space<vmem>>, %arg7: memref<2x256x256xbf16, #tpu.memory_space<vmem>>, %arg8: memref<2x256x256xbf16, #tpu.memory_space<vmem>>, %arg9: memref<512x4xbf16, #tpu.memory_space<vmem>>, %arg10: memref<4x512xf32, #tpu.memory_space<vmem>>, %arg11: memref<2x4xf32, #tpu.memory_space<vmem>>) attributes {dimension_semantics = [], scalar_prefetch = 0 : i64, scratch_operands = 0 : i64, tpu.core_type = #tpu.core_type<tc>} {
    %c0 = arith.constant 0 : index
    %c0_0 = arith.constant 0 : index
    %c0_1 = arith.constant 0 : index
    %c0_2 = arith.constant 0 : index
    %0 = vector.load %arg0[%c0, %c0_0, %c0_1, %c0_2] : memref<2x8x8x4xf32, #tpu.memory_space<vmem>>, vector<2x8x8x4xf32>
    %1 = vector.extract_strided_slice %0 {offsets = [0, 0, 0, 0], sizes = [2, 1, 8, 4], strides = [1, 1, 1, 1]} : vector<2x8x8x4xf32> to vector<2x1x8x4xf32>
    %2 = vector.shape_cast %1 : vector<2x1x8x4xf32> to vector<2x8x4xf32>
    %3 = vector.extract_strided_slice %0 {offsets = [0, 1, 0, 0], sizes = [2, 1, 8, 4], strides = [1, 1, 1, 1]} : vector<2x8x8x4xf32> to vector<2x1x8x4xf32>
    %4 = vector.shape_cast %3 : vector<2x1x8x4xf32> to vector<2x8x4xf32>
    %5 = vector.extract_strided_slice %0 {offsets = [0, 2, 0, 0], sizes = [2, 1, 8, 4], strides = [1, 1, 1, 1]} : vector<2x8x8x4xf32> to vector<2x1x8x4xf32>
    %6 = vector.shape_cast %5 : vector<2x1x8x4xf32> to vector<2x8x4xf32>
    %7 = vector.extract_strided_slice %0 {offsets = [0, 3, 0, 0], sizes = [2, 1, 8, 4], strides = [1, 1, 1, 1]} : vector<2x8x8x4xf32> to vector<2x1x8x4xf32>
    %8 = vector.shape_cast %7 : vector<2x1x8x4xf32> to vector<2x8x4xf32>
    %9 = vector.extract_strided_slice %0 {offsets = [0, 4, 0, 0], sizes = [2, 1, 8, 4], strides = [1, 1, 1, 1]} : vector<2x8x8x4xf32> to vector<2x1x8x4xf32>
    %10 = vector.shape_cast %9 : vector<2x1x8x4xf32> to vector<2x8x4xf32>
    %11 = vector.extract_strided_slice %0 {offsets = [0, 5, 0, 0], sizes = [2, 1, 8, 4], strides = [1, 1, 1, 1]} : vector<2x8x8x4xf32> to vector<2x1x8x4xf32>
    %12 = vector.shape_cast %11 : vector<2x1x8x4xf32> to vector<2x8x4xf32>
    %13 = vector.extract_strided_slice %0 {offsets = [0, 6, 0, 0], sizes = [2, 1, 8, 4], strides = [1, 1, 1, 1]} : vector<2x8x8x4xf32> to vector<2x1x8x4xf32>
    %14 = vector.shape_cast %13 : vector<2x1x8x4xf32> to vector<2x8x4xf32>
    %15 = vector.extract_strided_slice %0 {offsets = [0, 7, 0, 0], sizes = [2, 1, 8, 4], strides = [1, 1, 1, 1]} : vector<2x8x8x4xf32> to vector<2x1x8x4xf32>
    %16 = vector.shape_cast %15 : vector<2x1x8x4xf32> to vector<2x8x4xf32>
    %17 = tpu.concatenate %2, %4, %6, %8, %10, %12, %14, %16 in 2 : vector<2x8x4xf32>, vector<2x8x4xf32>, vector<2x8x4xf32>, vector<2x8x4xf32>, vector<2x8x4xf32>, vector<2x8x4xf32>, vector<2x8x4xf32>, vector<2x8x4xf32> -> vector<2x8x32xf32>
    %18 = tpu.iota {dimensions = array<i32: 1>} : vector<2x8x32xi32>
    %19 = arith.sitofp %18 : vector<2x8x32xi32> to vector<2x8x32xf32>
    %cst = arith.constant 0.142857149 : f32
    %20 = vector.broadcast %cst : f32 to vector<2x8x32xf32>
    %21 = arith.mulf %19, %20 : vector<2x8x32xf32>
    %22 = arith.addf %17, %21 : vector<2x8x32xf32>
    %23 = vector.shape_cast %22 : vector<2x8x32xf32> to vector<16x32xf32>
    %c0_3 = arith.constant 0 : index
    %c0_4 = arith.constant 0 : index
    %c0_5 = arith.constant 0 : index
    %24 = vector.load %arg5[%c0_3, %c0_4, %c0_5] : memref<2x7x128xf32, #tpu.memory_space<vmem>>, vector<1x7x128xf32>
    %25 = vector.shape_cast %24 : vector<1x7x128xf32> to vector<7x128xf32>
    %26 = vector.extract_strided_slice %25 {offsets = [0, 0], sizes = [1, 32], strides = [1, 1]} : vector<7x128xf32> to vector<1x32xf32>
    %27 = vector.extract_strided_slice %25 {offsets = [1, 0], sizes = [1, 32], strides = [1, 1]} : vector<7x128xf32> to vector<1x32xf32>
    %28 = vector.extract_strided_slice %25 {offsets = [2, 0], sizes = [1, 32], strides = [1, 1]} : vector<7x128xf32> to vector<1x32xf32>
    %29 = vector.extract_strided_slice %25 {offsets = [3, 0], sizes = [1, 128], strides = [1, 1]} : vector<7x128xf32> to vector<1x128xf32>
    %30 = vector.extract_strided_slice %25 {offsets = [4, 0], sizes = [1, 32], strides = [1, 1]} : vector<7x128xf32> to vector<1x32xf32>
    %31 = vector.extract_strided_slice %25 {offsets = [5, 0], sizes = [1, 32], strides = [1, 1]} : vector<7x128xf32> to vector<1x32xf32>
    %32 = vector.extract_strided_slice %25 {offsets = [6, 0], sizes = [1, 32], strides = [1, 1]} : vector<7x128xf32> to vector<1x32xf32>
    %33 = arith.truncf %23 : vector<16x32xf32> to vector<16x32xbf16>
    %c0_6 = arith.constant 0 : index
    %c0_7 = arith.constant 0 : index
    %c0_8 = arith.constant 0 : index
    %34 = vector.load %arg1[%c0_6, %c0_7, %c0_8] : memref<2x32x96xbf16, #tpu.memory_space<vmem>>, vector<1x32x96xbf16>
    %35 = vector.shape_cast %34 : vector<1x32x96xbf16> to vector<32x96xbf16>
    %cst_9 = arith.constant dense<0.000000e+00> : vector<16x96xf32>
    %36 = tpu.matmul %33, %35, %cst_9 {dimension_numbers = #tpu.dot_dimension_numbers<[1], [0], [0], [1], [0, 0, 1, 1], [], []>} : vector<16x32xbf16>, vector<32x96xbf16>, vector<16x96xf32> -> vector<16x96xf32>
    %37 = vector.shape_cast %36 : vector<16x96xf32> to vector<2x8x96xf32>
    %38 = vector.extract_strided_slice %37 {offsets = [0, 0, 0], sizes = [2, 8, 8], strides = [1, 1, 1]} : vector<2x8x96xf32> to vector<2x8x8xf32>
    %39 = vector.extract_strided_slice %37 {offsets = [0, 0, 8], sizes = [2, 8, 8], strides = [1, 1, 1]} : vector<2x8x96xf32> to vector<2x8x8xf32>
    %40 = vector.extract_strided_slice %37 {offsets = [0, 0, 16], sizes = [2, 8, 8], strides = [1, 1, 1]} : vector<2x8x96xf32> to vector<2x8x8xf32>
    %41 = vector.extract_strided_slice %37 {offsets = [0, 0, 24], sizes = [2, 8, 8], strides = [1, 1, 1]} : vector<2x8x96xf32> to vector<2x8x8xf32>
    %42 = tpu.concatenate %38, %39, %40, %41 in 0 : vector<2x8x8xf32>, vector<2x8x8xf32>, vector<2x8x8xf32>, vector<2x8x8xf32> -> vector<8x8x8xf32>
    %43 = vector.extract_strided_slice %37 {offsets = [0, 0, 32], sizes = [2, 8, 8], strides = [1, 1, 1]} : vector<2x8x96xf32> to vector<2x8x8xf32>
    %44 = vector.extract_strided_slice %37 {offsets = [0, 0, 40], sizes = [2, 8, 8], strides = [1, 1, 1]} : vector<2x8x96xf32> to vector<2x8x8xf32>
    %45 = vector.extract_strided_slice %37 {offsets = [0, 0, 48], sizes = [2, 8, 8], strides = [1, 1, 1]} : vector<2x8x96xf32> to vector<2x8x8xf32>
    %46 = vector.extract_strided_slice %37 {offsets = [0, 0, 56], sizes = [2, 8, 8], strides = [1, 1, 1]} : vector<2x8x96xf32> to vector<2x8x8xf32>
    %47 = tpu.concatenate %43, %44, %45, %46 in 0 : vector<2x8x8xf32>, vector<2x8x8xf32>, vector<2x8x8xf32>, vector<2x8x8xf32> -> vector<8x8x8xf32>
    %48 = vector.extract_strided_slice %37 {offsets = [0, 0, 64], sizes = [2, 8, 8], strides = [1, 1, 1]} : vector<2x8x96xf32> to vector<2x8x8xf32>
    %49 = vector.extract_strided_slice %37 {offsets = [0, 0, 72], sizes = [2, 8, 8], strides = [1, 1, 1]} : vector<2x8x96xf32> to vector<2x8x8xf32>
    %50 = vector.extract_strided_slice %37 {offsets = [0, 0, 80], sizes = [2, 8, 8], strides = [1, 1, 1]} : vector<2x8x96xf32> to vector<2x8x8xf32>
    %51 = vector.extract_strided_slice %37 {offsets = [0, 0, 88], sizes = [2, 8, 8], strides = [1, 1, 1]} : vector<2x8x96xf32> to vector<2x8x8xf32>
    %52 = tpu.concatenate %48, %49, %50, %51 in 0 : vector<2x8x8xf32>, vector<2x8x8xf32>, vector<2x8x8xf32>, vector<2x8x8xf32> -> vector<8x8x8xf32>
    %53 = arith.truncf %42 : vector<8x8x8xf32> to vector<8x8x8xbf16>
    %54 = arith.truncf %47 : vector<8x8x8xf32> to vector<8x8x8xbf16>
    "tpu.trace_start"() <{level = 10 : i32, message = "bqd,bkd->bqk"}> : () -> ()
    %cst_10 = arith.constant dense<0.000000e+00> : vector<8x8x8xf32>
    %55 = tpu.matmul %53, %54, %cst_10 {dimension_numbers = #tpu.dot_dimension_numbers<[2], [2], [1], [1], [0, 0, 0, 1, 1, 1], [0], [0]>} : vector<8x8x8xbf16>, vector<8x8x8xbf16>, vector<8x8x8xf32> -> vector<8x8x8xf32>
    "tpu.trace_stop"() : () -> ()
    %cst_11 = arith.constant dense<0xFF800000> : vector<8x8xf32>
    %56 = vector.multi_reduction <maximumf>, %55, %cst_11 [2] : vector<8x8x8xf32> to vector<8x8xf32>
    %57 = vector.shape_cast %56 : vector<8x8xf32> to vector<8x8x1xf32>
    %58 = vector.broadcast %57 : vector<8x8x1xf32> to vector<8x8x8xf32>
    %59 = arith.subf %55, %58 : vector<8x8x8xf32>
    %60 = math.exp %59 : vector<8x8x8xf32>
    %cst_12 = arith.constant dense<0.000000e+00> : vector<8x8xf32>
    %61 = vector.multi_reduction <add>, %60, %cst_12 [2] : vector<8x8x8xf32> to vector<8x8xf32>
    %62 = vector.shape_cast %61 : vector<8x8xf32> to vector<8x8x1xf32>
    %63 = tpu.reciprocal %62 {approx = true} : vector<8x8x1xf32> -> vector<8x8x1xf32>
    %64 = vector.broadcast %63 : vector<8x8x1xf32> to vector<8x8x8xf32>
    %65 = arith.mulf %60, %64 : vector<8x8x8xf32>
    %66 = arith.truncf %65 : vector<8x8x8xf32> to vector<8x8x8xbf16>
    %67 = arith.truncf %52 : vector<8x8x8xf32> to vector<8x8x8xbf16>
    "tpu.trace_start"() <{level = 10 : i32, message = "bqk,bkd->bqd"}> : () -> ()
    %cst_13 = arith.constant dense<0.000000e+00> : vector<8x8x8xf32>
    %68 = tpu.matmul %66, %67, %cst_13 {dimension_numbers = #tpu.dot_dimension_numbers<[2], [1], [1], [2], [0, 0, 0, 1, 1, 2], [0], [0]>} : vector<8x8x8xbf16>, vector<8x8x8xbf16>, vector<8x8x8xf32> -> vector<8x8x8xf32>
    "tpu.trace_stop"() : () -> ()
    %69 = vector.extract_strided_slice %68 {offsets = [0, 0, 0], sizes = [2, 8, 8], strides = [1, 1, 1]} : vector<8x8x8xf32> to vector<2x8x8xf32>
    %70 = vector.extract_strided_slice %68 {offsets = [2, 0, 0], sizes = [2, 8, 8], strides = [1, 1, 1]} : vector<8x8x8xf32> to vector<2x8x8xf32>
    %71 = vector.extract_strided_slice %68 {offsets = [4, 0, 0], sizes = [2, 8, 8], strides = [1, 1, 1]} : vector<8x8x8xf32> to vector<2x8x8xf32>
    %72 = vector.extract_strided_slice %68 {offsets = [6, 0, 0], sizes = [2, 8, 8], strides = [1, 1, 1]} : vector<8x8x8xf32> to vector<2x8x8xf32>
    %73 = tpu.concatenate %69, %70, %71, %72 in 2 : vector<2x8x8xf32>, vector<2x8x8xf32>, vector<2x8x8xf32>, vector<2x8x8xf32> -> vector<2x8x32xf32>
    %74 = vector.shape_cast %73 : vector<2x8x32xf32> to vector<16x32xf32>
    %75 = arith.truncf %74 : vector<16x32xf32> to vector<16x32xbf16>
    %c0_14 = arith.constant 0 : index
    %c0_15 = arith.constant 0 : index
    %c0_16 = arith.constant 0 : index
    %76 = vector.load %arg2[%c0_14, %c0_15, %c0_16] : memref<2x32x32xbf16, #tpu.memory_space<vmem>>, vector<1x32x32xbf16>
    %77 = vector.shape_cast %76 : vector<1x32x32xbf16> to vector<32x32xbf16>
    %cst_17 = arith.constant dense<0.000000e+00> : vector<16x32xf32>
    %78 = tpu.matmul %75, %77, %cst_17 {dimension_numbers = #tpu.dot_dimension_numbers<[1], [0], [0], [1], [0, 0, 1, 1], [], []>} : vector<16x32xbf16>, vector<32x32xbf16>, vector<16x32xf32> -> vector<16x32xf32>
    %79 = vector.broadcast %26 : vector<1x32xf32> to vector<16x32xf32>
    %80 = arith.addf %78, %79 : vector<16x32xf32>
    %81 = arith.addf %80, %23 : vector<16x32xf32>
    %cst_18 = arith.constant dense<0.000000e+00> : vector<16xf32>
    %82 = vector.multi_reduction <add>, %81, %cst_18 [1] : vector<16x32xf32> to vector<16xf32>
    %83 = vector.shape_cast %82 : vector<16xf32> to vector<16x1xf32>
    %cst_19 = arith.constant 3.200000e+01 : f32
    %84 = vector.broadcast %cst_19 : f32 to vector<16x1xf32>
    %85 = arith.divf %83, %84 : vector<16x1xf32>
    %86 = vector.broadcast %85 : vector<16x1xf32> to vector<16x32xf32>
    %87 = arith.subf %81, %86 : vector<16x32xf32>
    %88 = arith.mulf %87, %87 : vector<16x32xf32>
    %cst_20 = arith.constant dense<0.000000e+00> : vector<16xf32>
    %89 = vector.multi_reduction <add>, %88, %cst_20 [1] : vector<16x32xf32> to vector<16xf32>
    %90 = vector.shape_cast %89 : vector<16xf32> to vector<16x1xf32>
    %cst_21 = arith.constant 3.200000e+01 : f32
    %91 = vector.broadcast %cst_21 : f32 to vector<16x1xf32>
    %92 = arith.divf %90, %91 : vector<16x1xf32>
    %93 = vector.broadcast %85 : vector<16x1xf32> to vector<16x32xf32>
    %94 = arith.subf %81, %93 : vector<16x32xf32>
    %cst_22 = arith.constant 9.99999974E-6 : f32
    %95 = vector.broadcast %cst_22 : f32 to vector<16x1xf32>
    %96 = arith.addf %92, %95 : vector<16x1xf32>
    %97 = math.rsqrt %96 : vector<16x1xf32>
    %98 = vector.broadcast %97 : vector<16x1xf32> to vector<16x32xf32>
    %99 = arith.mulf %94, %98 : vector<16x32xf32>
    %100 = vector.broadcast %27 : vector<1x32xf32> to vector<16x32xf32>
    %101 = arith.mulf %99, %100 : vector<16x32xf32>
    %102 = vector.broadcast %28 : vector<1x32xf32> to vector<16x32xf32>
    %103 = arith.addf %101, %102 : vector<16x32xf32>
    %104 = arith.truncf %103 : vector<16x32xf32> to vector<16x32xbf16>
    %c0_23 = arith.constant 0 : index
    %c0_24 = arith.constant 0 : index
    %c0_25 = arith.constant 0 : index
    %105 = vector.load %arg3[%c0_23, %c0_24, %c0_25] : memref<2x32x128xbf16, #tpu.memory_space<vmem>>, vector<1x32x128xbf16>
    %106 = vector.shape_cast %105 : vector<1x32x128xbf16> to vector<32x128xbf16>
    %cst_26 = arith.constant dense<0.000000e+00> : vector<16x128xf32>
    %107 = tpu.matmul %104, %106, %cst_26 {dimension_numbers = #tpu.dot_dimension_numbers<[1], [0], [0], [1], [0, 0, 1, 1], [], []>} : vector<16x32xbf16>, vector<32x128xbf16>, vector<16x128xf32> -> vector<16x128xf32>
    %108 = vector.broadcast %29 : vector<1x128xf32> to vector<16x128xf32>
    %109 = arith.addf %107, %108 : vector<16x128xf32>
    %cst_27 = arith.constant 0.000000e+00 : f32
    %110 = vector.broadcast %cst_27 : f32 to vector<16x128xf32>
    %111 = arith.maximumf %109, %110 : vector<16x128xf32>
    %112 = arith.truncf %111 : vector<16x128xf32> to vector<16x128xbf16>
    %c0_28 = arith.constant 0 : index
    %c0_29 = arith.constant 0 : index
    %c0_30 = arith.constant 0 : index
    %113 = vector.load %arg4[%c0_28, %c0_29, %c0_30] : memref<2x128x32xbf16, #tpu.memory_space<vmem>>, vector<1x128x32xbf16>
    %114 = vector.shape_cast %113 : vector<1x128x32xbf16> to vector<128x32xbf16>
    %cst_31 = arith.constant dense<0.000000e+00> : vector<16x32xf32>
    %115 = tpu.matmul %112, %114, %cst_31 {dimension_numbers = #tpu.dot_dimension_numbers<[1], [0], [0], [1], [0, 0, 1, 1], [], []>} : vector<16x128xbf16>, vector<128x32xbf16>, vector<16x32xf32> -> vector<16x32xf32>
    %116 = vector.broadcast %30 : vector<1x32xf32> to vector<16x32xf32>
    %117 = arith.addf %115, %116 : vector<16x32xf32>
    %118 = arith.addf %117, %103 : vector<16x32xf32>
    %cst_32 = arith.constant dense<0.000000e+00> : vector<16xf32>
    %119 = vector.multi_reduction <add>, %118, %cst_32 [1] : vector<16x32xf32> to vector<16xf32>
    %120 = vector.shape_cast %119 : vector<16xf32> to vector<16x1xf32>
    %cst_33 = arith.constant 3.200000e+01 : f32
    %121 = vector.broadcast %cst_33 : f32 to vector<16x1xf32>
    %122 = arith.divf %120, %121 : vector<16x1xf32>
    %123 = vector.broadcast %122 : vector<16x1xf32> to vector<16x32xf32>
    %124 = arith.subf %118, %123 : vector<16x32xf32>
    %125 = arith.mulf %124, %124 : vector<16x32xf32>
    %cst_34 = arith.constant dense<0.000000e+00> : vector<16xf32>
    %126 = vector.multi_reduction <add>, %125, %cst_34 [1] : vector<16x32xf32> to vector<16xf32>
    %127 = vector.shape_cast %126 : vector<16xf32> to vector<16x1xf32>
    %cst_35 = arith.constant 3.200000e+01 : f32
    %128 = vector.broadcast %cst_35 : f32 to vector<16x1xf32>
    %129 = arith.divf %127, %128 : vector<16x1xf32>
    %130 = vector.broadcast %122 : vector<16x1xf32> to vector<16x32xf32>
    %131 = arith.subf %118, %130 : vector<16x32xf32>
    %cst_36 = arith.constant 9.99999974E-6 : f32
    %132 = vector.broadcast %cst_36 : f32 to vector<16x1xf32>
    %133 = arith.addf %129, %132 : vector<16x1xf32>
    %134 = math.rsqrt %133 : vector<16x1xf32>
    %135 = vector.broadcast %134 : vector<16x1xf32> to vector<16x32xf32>
    %136 = arith.mulf %131, %135 : vector<16x32xf32>
    %137 = vector.broadcast %31 : vector<1x32xf32> to vector<16x32xf32>
    %138 = arith.mulf %136, %137 : vector<16x32xf32>
    %139 = vector.broadcast %32 : vector<1x32xf32> to vector<16x32xf32>
    %140 = arith.addf %138, %139 : vector<16x32xf32>
    %c1 = arith.constant 1 : index
    %c0_37 = arith.constant 0 : index
    %c0_38 = arith.constant 0 : index
    %141 = vector.load %arg5[%c1, %c0_37, %c0_38] : memref<2x7x128xf32, #tpu.memory_space<vmem>>, vector<1x7x128xf32>
    %142 = vector.shape_cast %141 : vector<1x7x128xf32> to vector<7x128xf32>
    %143 = vector.extract_strided_slice %142 {offsets = [0, 0], sizes = [1, 32], strides = [1, 1]} : vector<7x128xf32> to vector<1x32xf32>
    %144 = vector.extract_strided_slice %142 {offsets = [1, 0], sizes = [1, 32], strides = [1, 1]} : vector<7x128xf32> to vector<1x32xf32>
    %145 = vector.extract_strided_slice %142 {offsets = [2, 0], sizes = [1, 32], strides = [1, 1]} : vector<7x128xf32> to vector<1x32xf32>
    %146 = vector.extract_strided_slice %142 {offsets = [3, 0], sizes = [1, 128], strides = [1, 1]} : vector<7x128xf32> to vector<1x128xf32>
    %147 = vector.extract_strided_slice %142 {offsets = [4, 0], sizes = [1, 32], strides = [1, 1]} : vector<7x128xf32> to vector<1x32xf32>
    %148 = vector.extract_strided_slice %142 {offsets = [5, 0], sizes = [1, 32], strides = [1, 1]} : vector<7x128xf32> to vector<1x32xf32>
    %149 = vector.extract_strided_slice %142 {offsets = [6, 0], sizes = [1, 32], strides = [1, 1]} : vector<7x128xf32> to vector<1x32xf32>
    %150 = arith.truncf %140 : vector<16x32xf32> to vector<16x32xbf16>
    %c1_39 = arith.constant 1 : index
    %c0_40 = arith.constant 0 : index
    %c0_41 = arith.constant 0 : index
    %151 = vector.load %arg1[%c1_39, %c0_40, %c0_41] : memref<2x32x96xbf16, #tpu.memory_space<vmem>>, vector<1x32x96xbf16>
    %152 = vector.shape_cast %151 : vector<1x32x96xbf16> to vector<32x96xbf16>
    %cst_42 = arith.constant dense<0.000000e+00> : vector<16x96xf32>
    %153 = tpu.matmul %150, %152, %cst_42 {dimension_numbers = #tpu.dot_dimension_numbers<[1], [0], [0], [1], [0, 0, 1, 1], [], []>} : vector<16x32xbf16>, vector<32x96xbf16>, vector<16x96xf32> -> vector<16x96xf32>
    %154 = vector.shape_cast %153 : vector<16x96xf32> to vector<2x8x96xf32>
    %155 = vector.extract_strided_slice %154 {offsets = [0, 0, 0], sizes = [2, 8, 8], strides = [1, 1, 1]} : vector<2x8x96xf32> to vector<2x8x8xf32>
    %156 = vector.extract_strided_slice %154 {offsets = [0, 0, 8], sizes = [2, 8, 8], strides = [1, 1, 1]} : vector<2x8x96xf32> to vector<2x8x8xf32>
    %157 = vector.extract_strided_slice %154 {offsets = [0, 0, 16], sizes = [2, 8, 8], strides = [1, 1, 1]} : vector<2x8x96xf32> to vector<2x8x8xf32>
    %158 = vector.extract_strided_slice %154 {offsets = [0, 0, 24], sizes = [2, 8, 8], strides = [1, 1, 1]} : vector<2x8x96xf32> to vector<2x8x8xf32>
    %159 = tpu.concatenate %155, %156, %157, %158 in 0 : vector<2x8x8xf32>, vector<2x8x8xf32>, vector<2x8x8xf32>, vector<2x8x8xf32> -> vector<8x8x8xf32>
    %160 = vector.extract_strided_slice %154 {offsets = [0, 0, 32], sizes = [2, 8, 8], strides = [1, 1, 1]} : vector<2x8x96xf32> to vector<2x8x8xf32>
    %161 = vector.extract_strided_slice %154 {offsets = [0, 0, 40], sizes = [2, 8, 8], strides = [1, 1, 1]} : vector<2x8x96xf32> to vector<2x8x8xf32>
    %162 = vector.extract_strided_slice %154 {offsets = [0, 0, 48], sizes = [2, 8, 8], strides = [1, 1, 1]} : vector<2x8x96xf32> to vector<2x8x8xf32>
    %163 = vector.extract_strided_slice %154 {offsets = [0, 0, 56], sizes = [2, 8, 8], strides = [1, 1, 1]} : vector<2x8x96xf32> to vector<2x8x8xf32>
    %164 = tpu.concatenate %160, %161, %162, %163 in 0 : vector<2x8x8xf32>, vector<2x8x8xf32>, vector<2x8x8xf32>, vector<2x8x8xf32> -> vector<8x8x8xf32>
    %165 = vector.extract_strided_slice %154 {offsets = [0, 0, 64], sizes = [2, 8, 8], strides = [1, 1, 1]} : vector<2x8x96xf32> to vector<2x8x8xf32>
    %166 = vector.extract_strided_slice %154 {offsets = [0, 0, 72], sizes = [2, 8, 8], strides = [1, 1, 1]} : vector<2x8x96xf32> to vector<2x8x8xf32>
    %167 = vector.extract_strided_slice %154 {offsets = [0, 0, 80], sizes = [2, 8, 8], strides = [1, 1, 1]} : vector<2x8x96xf32> to vector<2x8x8xf32>
    %168 = vector.extract_strided_slice %154 {offsets = [0, 0, 88], sizes = [2, 8, 8], strides = [1, 1, 1]} : vector<2x8x96xf32> to vector<2x8x8xf32>
    %169 = tpu.concatenate %165, %166, %167, %168 in 0 : vector<2x8x8xf32>, vector<2x8x8xf32>, vector<2x8x8xf32>, vector<2x8x8xf32> -> vector<8x8x8xf32>
    %170 = arith.truncf %159 : vector<8x8x8xf32> to vector<8x8x8xbf16>
    %171 = arith.truncf %164 : vector<8x8x8xf32> to vector<8x8x8xbf16>
    "tpu.trace_start"() <{level = 10 : i32, message = "bqd,bkd->bqk"}> : () -> ()
    %cst_43 = arith.constant dense<0.000000e+00> : vector<8x8x8xf32>
    %172 = tpu.matmul %170, %171, %cst_43 {dimension_numbers = #tpu.dot_dimension_numbers<[2], [2], [1], [1], [0, 0, 0, 1, 1, 1], [0], [0]>} : vector<8x8x8xbf16>, vector<8x8x8xbf16>, vector<8x8x8xf32> -> vector<8x8x8xf32>
    "tpu.trace_stop"() : () -> ()
    %cst_44 = arith.constant dense<0xFF800000> : vector<8x8xf32>
    %173 = vector.multi_reduction <maximumf>, %172, %cst_44 [2] : vector<8x8x8xf32> to vector<8x8xf32>
    %174 = vector.shape_cast %173 : vector<8x8xf32> to vector<8x8x1xf32>
    %175 = vector.broadcast %174 : vector<8x8x1xf32> to vector<8x8x8xf32>
    %176 = arith.subf %172, %175 : vector<8x8x8xf32>
    %177 = math.exp %176 : vector<8x8x8xf32>
    %cst_45 = arith.constant dense<0.000000e+00> : vector<8x8xf32>
    %178 = vector.multi_reduction <add>, %177, %cst_45 [2] : vector<8x8x8xf32> to vector<8x8xf32>
    %179 = vector.shape_cast %178 : vector<8x8xf32> to vector<8x8x1xf32>
    %180 = tpu.reciprocal %179 {approx = true} : vector<8x8x1xf32> -> vector<8x8x1xf32>
    %181 = vector.broadcast %180 : vector<8x8x1xf32> to vector<8x8x8xf32>
    %182 = arith.mulf %177, %181 : vector<8x8x8xf32>
    %183 = arith.truncf %182 : vector<8x8x8xf32> to vector<8x8x8xbf16>
    %184 = arith.truncf %169 : vector<8x8x8xf32> to vector<8x8x8xbf16>
    "tpu.trace_start"() <{level = 10 : i32, message = "bqk,bkd->bqd"}> : () -> ()
    %cst_46 = arith.constant dense<0.000000e+00> : vector<8x8x8xf32>
    %185 = tpu.matmul %183, %184, %cst_46 {dimension_numbers = #tpu.dot_dimension_numbers<[2], [1], [1], [2], [0, 0, 0, 1, 1, 2], [0], [0]>} : vector<8x8x8xbf16>, vector<8x8x8xbf16>, vector<8x8x8xf32> -> vector<8x8x8xf32>
    "tpu.trace_stop"() : () -> ()
    %186 = vector.extract_strided_slice %185 {offsets = [0, 0, 0], sizes = [2, 8, 8], strides = [1, 1, 1]} : vector<8x8x8xf32> to vector<2x8x8xf32>
    %187 = vector.extract_strided_slice %185 {offsets = [2, 0, 0], sizes = [2, 8, 8], strides = [1, 1, 1]} : vector<8x8x8xf32> to vector<2x8x8xf32>
    %188 = vector.extract_strided_slice %185 {offsets = [4, 0, 0], sizes = [2, 8, 8], strides = [1, 1, 1]} : vector<8x8x8xf32> to vector<2x8x8xf32>
    %189 = vector.extract_strided_slice %185 {offsets = [6, 0, 0], sizes = [2, 8, 8], strides = [1, 1, 1]} : vector<8x8x8xf32> to vector<2x8x8xf32>
    %190 = tpu.concatenate %186, %187, %188, %189 in 2 : vector<2x8x8xf32>, vector<2x8x8xf32>, vector<2x8x8xf32>, vector<2x8x8xf32> -> vector<2x8x32xf32>
    %191 = vector.shape_cast %190 : vector<2x8x32xf32> to vector<16x32xf32>
    %192 = arith.truncf %191 : vector<16x32xf32> to vector<16x32xbf16>
    %c1_47 = arith.constant 1 : index
    %c0_48 = arith.constant 0 : index
    %c0_49 = arith.constant 0 : index
    %193 = vector.load %arg2[%c1_47, %c0_48, %c0_49] : memref<2x32x32xbf16, #tpu.memory_space<vmem>>, vector<1x32x32xbf16>
    %194 = vector.shape_cast %193 : vector<1x32x32xbf16> to vector<32x32xbf16>
    %cst_50 = arith.constant dense<0.000000e+00> : vector<16x32xf32>
    %195 = tpu.matmul %192, %194, %cst_50 {dimension_numbers = #tpu.dot_dimension_numbers<[1], [0], [0], [1], [0, 0, 1, 1], [], []>} : vector<16x32xbf16>, vector<32x32xbf16>, vector<16x32xf32> -> vector<16x32xf32>
    %196 = vector.broadcast %143 : vector<1x32xf32> to vector<16x32xf32>
    %197 = arith.addf %195, %196 : vector<16x32xf32>
    %198 = arith.addf %197, %140 : vector<16x32xf32>
    %cst_51 = arith.constant dense<0.000000e+00> : vector<16xf32>
    %199 = vector.multi_reduction <add>, %198, %cst_51 [1] : vector<16x32xf32> to vector<16xf32>
    %200 = vector.shape_cast %199 : vector<16xf32> to vector<16x1xf32>
    %cst_52 = arith.constant 3.200000e+01 : f32
    %201 = vector.broadcast %cst_52 : f32 to vector<16x1xf32>
    %202 = arith.divf %200, %201 : vector<16x1xf32>
    %203 = vector.broadcast %202 : vector<16x1xf32> to vector<16x32xf32>
    %204 = arith.subf %198, %203 : vector<16x32xf32>
    %205 = arith.mulf %204, %204 : vector<16x32xf32>
    %cst_53 = arith.constant dense<0.000000e+00> : vector<16xf32>
    %206 = vector.multi_reduction <add>, %205, %cst_53 [1] : vector<16x32xf32> to vector<16xf32>
    %207 = vector.shape_cast %206 : vector<16xf32> to vector<16x1xf32>
    %cst_54 = arith.constant 3.200000e+01 : f32
    %208 = vector.broadcast %cst_54 : f32 to vector<16x1xf32>
    %209 = arith.divf %207, %208 : vector<16x1xf32>
    %210 = vector.broadcast %202 : vector<16x1xf32> to vector<16x32xf32>
    %211 = arith.subf %198, %210 : vector<16x32xf32>
    %cst_55 = arith.constant 9.99999974E-6 : f32
    %212 = vector.broadcast %cst_55 : f32 to vector<16x1xf32>
    %213 = arith.addf %209, %212 : vector<16x1xf32>
    %214 = math.rsqrt %213 : vector<16x1xf32>
    %215 = vector.broadcast %214 : vector<16x1xf32> to vector<16x32xf32>
    %216 = arith.mulf %211, %215 : vector<16x32xf32>
    %217 = vector.broadcast %144 : vector<1x32xf32> to vector<16x32xf32>
    %218 = arith.mulf %216, %217 : vector<16x32xf32>
    %219 = vector.broadcast %145 : vector<1x32xf32> to vector<16x32xf32>
    %220 = arith.addf %218, %219 : vector<16x32xf32>
    %221 = arith.truncf %220 : vector<16x32xf32> to vector<16x32xbf16>
    %c1_56 = arith.constant 1 : index
    %c0_57 = arith.constant 0 : index
    %c0_58 = arith.constant 0 : index
    %222 = vector.load %arg3[%c1_56, %c0_57, %c0_58] : memref<2x32x128xbf16, #tpu.memory_space<vmem>>, vector<1x32x128xbf16>
    %223 = vector.shape_cast %222 : vector<1x32x128xbf16> to vector<32x128xbf16>
    %cst_59 = arith.constant dense<0.000000e+00> : vector<16x128xf32>
    %224 = tpu.matmul %221, %223, %cst_59 {dimension_numbers = #tpu.dot_dimension_numbers<[1], [0], [0], [1], [0, 0, 1, 1], [], []>} : vector<16x32xbf16>, vector<32x128xbf16>, vector<16x128xf32> -> vector<16x128xf32>
    %225 = vector.broadcast %146 : vector<1x128xf32> to vector<16x128xf32>
    %226 = arith.addf %224, %225 : vector<16x128xf32>
    %cst_60 = arith.constant 0.000000e+00 : f32
    %227 = vector.broadcast %cst_60 : f32 to vector<16x128xf32>
    %228 = arith.maximumf %226, %227 : vector<16x128xf32>
    %229 = arith.truncf %228 : vector<16x128xf32> to vector<16x128xbf16>
    %c1_61 = arith.constant 1 : index
    %c0_62 = arith.constant 0 : index
    %c0_63 = arith.constant 0 : index
    %230 = vector.load %arg4[%c1_61, %c0_62, %c0_63] : memref<2x128x32xbf16, #tpu.memory_space<vmem>>, vector<1x128x32xbf16>
    %231 = vector.shape_cast %230 : vector<1x128x32xbf16> to vector<128x32xbf16>
    %cst_64 = arith.constant dense<0.000000e+00> : vector<16x32xf32>
    %232 = tpu.matmul %229, %231, %cst_64 {dimension_numbers = #tpu.dot_dimension_numbers<[1], [0], [0], [1], [0, 0, 1, 1], [], []>} : vector<16x128xbf16>, vector<128x32xbf16>, vector<16x32xf32> -> vector<16x32xf32>
    %233 = vector.broadcast %147 : vector<1x32xf32> to vector<16x32xf32>
    %234 = arith.addf %232, %233 : vector<16x32xf32>
    %235 = arith.addf %234, %220 : vector<16x32xf32>
    %cst_65 = arith.constant dense<0.000000e+00> : vector<16xf32>
    %236 = vector.multi_reduction <add>, %235, %cst_65 [1] : vector<16x32xf32> to vector<16xf32>
    %237 = vector.shape_cast %236 : vector<16xf32> to vector<16x1xf32>
    %cst_66 = arith.constant 3.200000e+01 : f32
    %238 = vector.broadcast %cst_66 : f32 to vector<16x1xf32>
    %239 = arith.divf %237, %238 : vector<16x1xf32>
    %240 = vector.broadcast %239 : vector<16x1xf32> to vector<16x32xf32>
    %241 = arith.subf %235, %240 : vector<16x32xf32>
    %242 = arith.mulf %241, %241 : vector<16x32xf32>
    %cst_67 = arith.constant dense<0.000000e+00> : vector<16xf32>
    %243 = vector.multi_reduction <add>, %242, %cst_67 [1] : vector<16x32xf32> to vector<16xf32>
    %244 = vector.shape_cast %243 : vector<16xf32> to vector<16x1xf32>
    %cst_68 = arith.constant 3.200000e+01 : f32
    %245 = vector.broadcast %cst_68 : f32 to vector<16x1xf32>
    %246 = arith.divf %244, %245 : vector<16x1xf32>
    %247 = vector.broadcast %239 : vector<16x1xf32> to vector<16x32xf32>
    %248 = arith.subf %235, %247 : vector<16x32xf32>
    %cst_69 = arith.constant 9.99999974E-6 : f32
    %249 = vector.broadcast %cst_69 : f32 to vector<16x1xf32>
    %250 = arith.addf %246, %249 : vector<16x1xf32>
    %251 = math.rsqrt %250 : vector<16x1xf32>
    %252 = vector.broadcast %251 : vector<16x1xf32> to vector<16x32xf32>
    %253 = arith.mulf %248, %252 : vector<16x32xf32>
    %254 = vector.broadcast %148 : vector<1x32xf32> to vector<16x32xf32>
    %255 = arith.mulf %253, %254 : vector<16x32xf32>
    %256 = vector.broadcast %149 : vector<1x32xf32> to vector<16x32xf32>
    %257 = arith.addf %255, %256 : vector<16x32xf32>
    %258 = vector.shape_cast %257 : vector<16x32xf32> to vector<2x8x32xf32>
    %259 = vector.extract_strided_slice %258 {offsets = [0, 0, 0], sizes = [2, 1, 32], strides = [1, 1, 1]} : vector<2x8x32xf32> to vector<2x1x32xf32>
    %260 = vector.shape_cast %259 : vector<2x1x32xf32> to vector<2x32xf32>
    %261 = vector.extract_strided_slice %258 {offsets = [0, 1, 0], sizes = [2, 1, 32], strides = [1, 1, 1]} : vector<2x8x32xf32> to vector<2x1x32xf32>
    %262 = vector.shape_cast %261 : vector<2x1x32xf32> to vector<2x32xf32>
    %263 = vector.extract_strided_slice %258 {offsets = [0, 2, 0], sizes = [2, 1, 32], strides = [1, 1, 1]} : vector<2x8x32xf32> to vector<2x1x32xf32>
    %264 = vector.shape_cast %263 : vector<2x1x32xf32> to vector<2x32xf32>
    %265 = vector.extract_strided_slice %258 {offsets = [0, 3, 0], sizes = [2, 1, 32], strides = [1, 1, 1]} : vector<2x8x32xf32> to vector<2x1x32xf32>
    %266 = vector.shape_cast %265 : vector<2x1x32xf32> to vector<2x32xf32>
    %267 = vector.extract_strided_slice %258 {offsets = [0, 4, 0], sizes = [2, 1, 32], strides = [1, 1, 1]} : vector<2x8x32xf32> to vector<2x1x32xf32>
    %268 = vector.shape_cast %267 : vector<2x1x32xf32> to vector<2x32xf32>
    %269 = vector.extract_strided_slice %258 {offsets = [0, 5, 0], sizes = [2, 1, 32], strides = [1, 1, 1]} : vector<2x8x32xf32> to vector<2x1x32xf32>
    %270 = vector.shape_cast %269 : vector<2x1x32xf32> to vector<2x32xf32>
    %271 = vector.extract_strided_slice %258 {offsets = [0, 6, 0], sizes = [2, 1, 32], strides = [1, 1, 1]} : vector<2x8x32xf32> to vector<2x1x32xf32>
    %272 = vector.shape_cast %271 : vector<2x1x32xf32> to vector<2x32xf32>
    %273 = vector.extract_strided_slice %258 {offsets = [0, 7, 0], sizes = [2, 1, 32], strides = [1, 1, 1]} : vector<2x8x32xf32> to vector<2x1x32xf32>
    %274 = vector.shape_cast %273 : vector<2x1x32xf32> to vector<2x32xf32>
    %275 = tpu.concatenate %260, %262, %264, %266, %268, %270, %272, %274 in 1 : vector<2x32xf32>, vector<2x32xf32>, vector<2x32xf32>, vector<2x32xf32>, vector<2x32xf32>, vector<2x32xf32>, vector<2x32xf32>, vector<2x32xf32> -> vector<2x256xf32>
    %c0_70 = arith.constant 0 : index
    %c0_71 = arith.constant 0 : index
    %276 = vector.load %arg10[%c0_70, %c0_71] : memref<4x512xf32, #tpu.memory_space<vmem>>, vector<4x512xf32>
    %277 = arith.truncf %275 : vector<2x256xf32> to vector<2x256xbf16>
    %c0_72 = arith.constant 0 : index
    %c0_73 = arith.constant 0 : index
    %278 = vector.load %arg6[%c0_72, %c0_73] : memref<256x512xbf16, #tpu.memory_space<vmem>>, vector<256x512xbf16>
    %cst_74 = arith.constant dense<0.000000e+00> : vector<2x512xf32>
    %279 = tpu.matmul %277, %278, %cst_74 {dimension_numbers = #tpu.dot_dimension_numbers<[1], [0], [0], [1], [0, 0, 1, 1], [], []>} : vector<2x256xbf16>, vector<256x512xbf16>, vector<2x512xf32> -> vector<2x512xf32>
    %280 = vector.extract_strided_slice %276 {offsets = [0, 0], sizes = [1, 512], strides = [1, 1]} : vector<4x512xf32> to vector<1x512xf32>
    %281 = vector.broadcast %280 : vector<1x512xf32> to vector<2x512xf32>
    %282 = arith.mulf %279, %281 : vector<2x512xf32>
    %283 = vector.extract_strided_slice %276 {offsets = [1, 0], sizes = [1, 512], strides = [1, 1]} : vector<4x512xf32> to vector<1x512xf32>
    %284 = vector.broadcast %283 : vector<1x512xf32> to vector<2x512xf32>
    %285 = arith.addf %282, %284 : vector<2x512xf32>
    %cst_75 = arith.constant 0.000000e+00 : f32
    %286 = vector.broadcast %cst_75 : f32 to vector<2x512xf32>
    %287 = arith.maximumf %285, %286 : vector<2x512xf32>
    %288 = vector.extract_strided_slice %287 {offsets = [0, 0], sizes = [2, 256], strides = [1, 1]} : vector<2x512xf32> to vector<2x256xf32>
    %289 = arith.truncf %288 : vector<2x256xf32> to vector<2x256xbf16>
    %c0_76 = arith.constant 0 : index
    %c0_77 = arith.constant 0 : index
    %c0_78 = arith.constant 0 : index
    %290 = vector.load %arg7[%c0_76, %c0_77, %c0_78] : memref<2x256x256xbf16, #tpu.memory_space<vmem>>, vector<1x256x256xbf16>
    %291 = vector.shape_cast %290 : vector<1x256x256xbf16> to vector<256x256xbf16>
    %cst_79 = arith.constant dense<0.000000e+00> : vector<2x256xf32>
    %292 = tpu.matmul %289, %291, %cst_79 {dimension_numbers = #tpu.dot_dimension_numbers<[1], [0], [0], [1], [0, 0, 1, 1], [], []>} : vector<2x256xbf16>, vector<256x256xbf16>, vector<2x256xf32> -> vector<2x256xf32>
    %293 = vector.extract_strided_slice %276 {offsets = [2, 0], sizes = [1, 256], strides = [1, 1]} : vector<4x512xf32> to vector<1x256xf32>
    %294 = vector.broadcast %293 : vector<1x256xf32> to vector<2x256xf32>
    %295 = arith.addf %292, %294 : vector<2x256xf32>
    %cst_80 = arith.constant 0.000000e+00 : f32
    %296 = vector.broadcast %cst_80 : f32 to vector<2x256xf32>
    %297 = arith.maximumf %295, %296 : vector<2x256xf32>
    %298 = arith.truncf %297 : vector<2x256xf32> to vector<2x256xbf16>
    %c0_81 = arith.constant 0 : index
    %c0_82 = arith.constant 0 : index
    %c0_83 = arith.constant 0 : index
    %299 = vector.load %arg8[%c0_81, %c0_82, %c0_83] : memref<2x256x256xbf16, #tpu.memory_space<vmem>>, vector<1x256x256xbf16>
    %300 = vector.shape_cast %299 : vector<1x256x256xbf16> to vector<256x256xbf16>
    %cst_84 = arith.constant dense<0.000000e+00> : vector<2x256xf32>
    %301 = tpu.matmul %298, %300, %cst_84 {dimension_numbers = #tpu.dot_dimension_numbers<[1], [0], [0], [1], [0, 0, 1, 1], [], []>} : vector<2x256xbf16>, vector<256x256xbf16>, vector<2x256xf32> -> vector<2x256xf32>
    %302 = vector.extract_strided_slice %276 {offsets = [3, 0], sizes = [1, 256], strides = [1, 1]} : vector<4x512xf32> to vector<1x256xf32>
    %303 = vector.broadcast %302 : vector<1x256xf32> to vector<2x256xf32>
    %304 = arith.addf %301, %303 : vector<2x256xf32>
    %cst_85 = arith.constant 0.000000e+00 : f32
    %305 = vector.broadcast %cst_85 : f32 to vector<2x256xf32>
    %306 = arith.maximumf %304, %305 : vector<2x256xf32>
    %307 = vector.extract_strided_slice %287 {offsets = [0, 256], sizes = [2, 256], strides = [1, 1]} : vector<2x512xf32> to vector<2x256xf32>
    %308 = arith.truncf %307 : vector<2x256xf32> to vector<2x256xbf16>
    %c1_86 = arith.constant 1 : index
    %c0_87 = arith.constant 0 : index
    %c0_88 = arith.constant 0 : index
    %309 = vector.load %arg7[%c1_86, %c0_87, %c0_88] : memref<2x256x256xbf16, #tpu.memory_space<vmem>>, vector<1x256x256xbf16>
    %310 = vector.shape_cast %309 : vector<1x256x256xbf16> to vector<256x256xbf16>
    %cst_89 = arith.constant dense<0.000000e+00> : vector<2x256xf32>
    %311 = tpu.matmul %308, %310, %cst_89 {dimension_numbers = #tpu.dot_dimension_numbers<[1], [0], [0], [1], [0, 0, 1, 1], [], []>} : vector<2x256xbf16>, vector<256x256xbf16>, vector<2x256xf32> -> vector<2x256xf32>
    %312 = vector.extract_strided_slice %276 {offsets = [2, 256], sizes = [1, 256], strides = [1, 1]} : vector<4x512xf32> to vector<1x256xf32>
    %313 = vector.broadcast %312 : vector<1x256xf32> to vector<2x256xf32>
    %314 = arith.addf %311, %313 : vector<2x256xf32>
    %cst_90 = arith.constant 0.000000e+00 : f32
    %315 = vector.broadcast %cst_90 : f32 to vector<2x256xf32>
    %316 = arith.maximumf %314, %315 : vector<2x256xf32>
    %317 = arith.truncf %316 : vector<2x256xf32> to vector<2x256xbf16>
    %c1_91 = arith.constant 1 : index
    %c0_92 = arith.constant 0 : index
    %c0_93 = arith.constant 0 : index
    %318 = vector.load %arg8[%c1_91, %c0_92, %c0_93] : memref<2x256x256xbf16, #tpu.memory_space<vmem>>, vector<1x256x256xbf16>
    %319 = vector.shape_cast %318 : vector<1x256x256xbf16> to vector<256x256xbf16>
    %cst_94 = arith.constant dense<0.000000e+00> : vector<2x256xf32>
    %320 = tpu.matmul %317, %319, %cst_94 {dimension_numbers = #tpu.dot_dimension_numbers<[1], [0], [0], [1], [0, 0, 1, 1], [], []>} : vector<2x256xbf16>, vector<256x256xbf16>, vector<2x256xf32> -> vector<2x256xf32>
    %321 = vector.extract_strided_slice %276 {offsets = [3, 256], sizes = [1, 256], strides = [1, 1]} : vector<4x512xf32> to vector<1x256xf32>
    %322 = vector.broadcast %321 : vector<1x256xf32> to vector<2x256xf32>
    %323 = arith.addf %320, %322 : vector<2x256xf32>
    %cst_95 = arith.constant 0.000000e+00 : f32
    %324 = vector.broadcast %cst_95 : f32 to vector<2x256xf32>
    %325 = arith.maximumf %323, %324 : vector<2x256xf32>
    %326 = tpu.concatenate %306, %325 in 1 : vector<2x256xf32>, vector<2x256xf32> -> vector<2x512xf32>
    %327 = arith.truncf %326 : vector<2x512xf32> to vector<2x512xbf16>
    %c0_96 = arith.constant 0 : index
    %c0_97 = arith.constant 0 : index
    %328 = vector.load %arg9[%c0_96, %c0_97] : memref<512x4xbf16, #tpu.memory_space<vmem>>, vector<512x4xbf16>
    %cst_98 = arith.constant dense<0.000000e+00> : vector<2x4xf32>
    %329 = tpu.matmul %327, %328, %cst_98 {dimension_numbers = #tpu.dot_dimension_numbers<[1], [0], [0], [1], [0, 0, 1, 1], [], []>} : vector<2x512xbf16>, vector<512x4xbf16>, vector<2x4xf32> -> vector<2x4xf32>
    %330 = tpu.iota {dimensions = array<i32: 1>} : vector<2x4xi32>
    %c2_i32 = arith.constant 2 : i32
    %c0_i32 = arith.constant 0 : i32
    %331 = arith.cmpi eq, %c2_i32, %c0_i32 : i32
    %c1_i32 = arith.constant 1 : i32
    %332 = arith.select %331, %c1_i32, %c2_i32 : i32
    %333 = vector.broadcast %332 : i32 to vector<2x4xi32>
    %334 = arith.remsi %330, %333 : vector<2x4xi32>
    %c0_i32_99 = arith.constant 0 : i32
    %335 = vector.broadcast %c0_i32_99 : i32 to vector<2x4xi32>
    %336 = arith.cmpi ne, %334, %335 : vector<2x4xi32>
    %c0_i32_100 = arith.constant 0 : i32
    %337 = vector.broadcast %c0_i32_100 : i32 to vector<2x4xi32>
    %338 = arith.cmpi slt, %334, %337 : vector<2x4xi32>
    %c0_i32_101 = arith.constant 0 : i32
    %339 = arith.cmpi slt, %332, %c0_i32_101 : i32
    %340 = vector.broadcast %339 : i1 to vector<2x4xi1>
    %341 = vector.broadcast %340 : vector<2x4xi1> to vector<2x4xi1>
    %342 = arith.xori %338, %341 : vector<2x4xi1>
    %343 = arith.andi %342, %336 : vector<2x4xi1>
    %344 = vector.broadcast %332 : i32 to vector<2x4xi32>
    %345 = arith.addi %334, %344 : vector<2x4xi32>
    %346 = arith.select %343, %345, %334 : vector<2x4xi1>, vector<2x4xi32>
    %c1_i32_102 = arith.constant 1 : i32
    %347 = vector.broadcast %c1_i32_102 : i32 to vector<2x4xi32>
    %348 = arith.cmpi eq, %346, %347 : vector<2x4xi32>
    %cst_103 = arith.constant 0.000000e+00 : f32
    %cst_104 = arith.constant -0.785398185 : f32
    %349 = vector.broadcast %cst_103 : f32 to vector<2x4xf32>
    %350 = vector.broadcast %cst_104 : f32 to vector<2x4xf32>
    %351 = arith.select %348, %349, %350 : vector<2x4xi1>, vector<2x4xf32>
    %cst_105 = arith.constant 6.28318548 : f32
    %cst_106 = arith.constant 1.57079637 : f32
    %352 = vector.broadcast %cst_105 : f32 to vector<2x4xf32>
    %353 = vector.broadcast %cst_106 : f32 to vector<2x4xf32>
    %354 = arith.select %348, %352, %353 : vector<2x4xi1>, vector<2x4xf32>
    %355 = arith.maximumf %329, %351 : vector<2x4xf32>
    %356 = arith.minimumf %355, %354 : vector<2x4xf32>
    %c0_107 = arith.constant 0 : index
    %c0_108 = arith.constant 0 : index
    %357 = vector.load %arg11[%c0_107, %c0_108] : memref<2x4xf32, #tpu.memory_space<vmem>>, vector<2x4xf32>
    tpu.vector_store %arg11[%c0_107, %c0_108], %356 {strides = array<i32>} : memref<2x4xf32, #tpu.memory_space<vmem>>, vector<2x4xf32>,
    return
  }
}

</mosaic_0001>

<llo_original>
// kernel: tpu_custom_call.1
$region0: #{tpu_custom_call.1}
  #allocation0 [shape = 'u32[]', space=smem, size = 0x4, offset = 0x4, fixed_abs, tag = 'smem constant byte address 0x4 - core index']
  #allocation1 [shape = 'u32[144,128]{1,0:T(1,128)}', space=vmem, size = 0x12000, scoped, tag = 'internal scratch']
  %s0 = inlined_call_operand.vmem [shape: f32[2,8,8,4], index: 0, kind: input, shape index: {}]
  %s1 = inlined_call_operand.vmem [shape: bf16[2,32,96], index: 1, kind: input, shape index: {}]
  %s2 = inlined_call_operand.vmem [shape: bf16[2,32,32], index: 2, kind: input, shape index: {}]
  %s3 = inlined_call_operand.vmem [shape: bf16[2,32,128], index: 3, kind: input, shape index: {}]
  %s4 = inlined_call_operand.vmem [shape: bf16[2,128,32], index: 4, kind: input, shape index: {}]
  %s5 = inlined_call_operand.vmem [shape: f32[2,7,128], index: 5, kind: input, shape index: {}]
  %s6 = inlined_call_operand.vmem [shape: bf16[256,512], index: 6, kind: input, shape index: {}]
  %s7 = inlined_call_operand.hbm [shape: bf16[2,256,256], index: 7, kind: input, shape index: {}]
  %s8 = inlined_call_operand.hbm [shape: bf16[2,256,256], index: 8, kind: input, shape index: {}]
  %s9 = inlined_call_operand.vmem [shape: bf16[512,4], index: 9, kind: input, shape index: {}]
  %s10 = inlined_call_operand.vmem [shape: f32[4,512], index: 10, kind: input, shape index: {}]
  %s11 = inlined_call_operand.hbm [shape: f32[2,4], index: 11, kind: output, shape index: {}]
  %s12 = sld [smem:[#allocation0]]
  $region62: #{tpu_custom_call.1} parent=0
    _
  %s14 = ssub.s32 1, %s12
  %s15 = scalar_select 0, %s14, %s12
  $region1: #{tpu_custom_call.1} parent=0
    #allocation2 [shape = 'u8[262144]{0}', space=vmem, size = 0x40000, scoped, tag = 'input window, operand 7, single buffered']
    #allocation3 [shape = 's32[1]{0}', space=sflag, size = 0x4, scoped, tag = 'scoped memory for tpu_custom_call.1']
    #allocation4 [shape = 's32[1]{0}', space=sflag, size = 0x4, scoped, tag = 'scoped memory for tpu_custom_call.1']
    #allocation5 [shape = 'u8[262144]{0}', space=vmem, size = 0x40000, scoped, tag = 'input window, operand 8, single buffered']
    #allocation6 [shape = 's32[1]{0}', space=sflag, size = 0x4, scoped, tag = 'scoped memory for tpu_custom_call.1']
    #allocation7 [shape = 'u8[1024]{0}', space=vmem, size = 0x400, scoped, tag = 'output window, operand 0, single buffered']
    %16 = vsyncpa [#allocation3], 0
    %17 = vsyncpa [#allocation6], 0
    %18 = vsyncpa [#allocation4], 0
    // Predicated region
    $region2: #{tpu_custom_call.1} parent=1 // pred_check
      _
    $region3: #{tpu_custom_call.1} parent=1 // pred_check_branch
      %20 = sbr.rel (0) target = $region5
    $region4: #{tpu_custom_call.1} parent=1 // pred_region
      _
    $region5: #{tpu_custom_call.1} parent=1 // pred_fallthru
      _
    // Predicated region
    $region6: #{tpu_custom_call.1} parent=1 // pred_check
      _
    $region7: #{tpu_custom_call.1} parent=1 // pred_check_branch
      %22 = sbr.rel (0) target = $region9
    $region8: #{tpu_custom_call.1} parent=1 // pred_region
      _
    $region9: #{tpu_custom_call.1} parent=1 // pred_fallthru
      _
    // Predicated region
    $region10: #{tpu_custom_call.1} parent=1 // pred_check
      _
    $region11: #{tpu_custom_call.1} parent=1 // pred_check_branch
      %24 = sbr.rel (0) target = $region13
    $region12: #{tpu_custom_call.1} parent=1 // pred_region
      _
    $region13: #{tpu_custom_call.1} parent=1 // pred_fallthru
      _
    // Predicated region
    $region14: #{tpu_custom_call.1} parent=1 // pred_check
      _
    $region15: #{tpu_custom_call.1} parent=1 // pred_check_branch
      %26 = sbr.rel (0) target = $region17
    $region16: #{tpu_custom_call.1} parent=1 // pred_region
      _
    $region17: #{tpu_custom_call.1} parent=1 // pred_fallthru
      _
    // Predicated region
    $region18: #{tpu_custom_call.1} parent=1 // pred_check
      _
    $region19: #{tpu_custom_call.1} parent=1 // pred_check_branch
      %28 = sbr.rel (0) target = $region21
    $region20: #{tpu_custom_call.1} parent=1 // pred_region
      _
    $region21: #{tpu_custom_call.1} parent=1 // pred_fallthru
      _
    // Predicated region
    $region22: #{tpu_custom_call.1} parent=1 // pred_check
      _
    $region23: #{tpu_custom_call.1} parent=1 // pred_check_branch
      %30 = sbr.rel (0) target = $region25
    $region24: #{tpu_custom_call.1} parent=1 // pred_region
      _
    $region25: #{tpu_custom_call.1} parent=1 // pred_fallthru
      _
    // Predicated region
    $region26: #{tpu_custom_call.1} parent=1 // pred_check
      _
    $region27: #{tpu_custom_call.1} parent=1 // pred_check_branch
      %32 = sbr.rel (0) target = $region29
    $region28: #{tpu_custom_call.1} parent=1 // pred_region
      _
    $region29: #{tpu_custom_call.1} parent=1 // pred_fallthru
      _
    // Predicated region
    $region30: #{tpu_custom_call.1} parent=1 // pred_check
      _
    $region31: #{tpu_custom_call.1} parent=1 // pred_check_branch
      %34 = sbr.rel (0) target = $region33
    $region32: #{tpu_custom_call.1} parent=1 // pred_region
      %s36 = ssub.s32 8192, 8192
      %37 = vsyncadd [#allocation3], %s36
      %s38 = sshll.u32 [#allocation2], 4
      %s39 = int_to_ptr.vmem [resolvable:$true] %s38
      %44 = dma.hbm_to_vmem [thread:$0]  %s7, 8192, %s39, [#allocation3], 128, 128, 8
    $region33: #{tpu_custom_call.1} parent=1 // pred_fallthru
      _
    // Predicated region
    $region34: #{tpu_custom_call.1} parent=1 // pred_check
      _
    $region35: #{tpu_custom_call.1} parent=1 // pred_check_branch
      %46 = sbr.rel (0) target = $region37
    $region36: #{tpu_custom_call.1} parent=1 // pred_region
      %s48 = ssub.s32 8192, 8192
      %49 = vsyncadd [#allocation6], %s48
      %s50 = sshll.u32 [#allocation5], 4
      %s51 = int_to_ptr.vmem [resolvable:$true] %s50
      %56 = dma.hbm_to_vmem [thread:$0]  %s8, 8192, %s51, [#allocation6], 128, 128, 8
    $region37: #{tpu_custom_call.1} parent=1 // pred_fallthru
      _
    // Predicated region
    $region38: #{tpu_custom_call.1} parent=1 // pred_check
      _
    $region39: #{tpu_custom_call.1} parent=1 // pred_check_branch
      %58 = sbr.rel (0) target = $region41
    $region40: #{tpu_custom_call.1} parent=1 // pred_region
      _
    $region41: #{tpu_custom_call.1} parent=1 // pred_fallthru
      _
    // Predicated region
    $region42: #{tpu_custom_call.1} parent=1 // pred_check
      _
    $region43: #{tpu_custom_call.1} parent=1 // pred_check_branch
      %60 = sbr.rel (0) target = $region45
    $region44: #{tpu_custom_call.1} parent=1 // pred_region
      _
    $region45: #{tpu_custom_call.1} parent=1 // pred_fallthru
      _
    // Predicated region
    $region46: #{tpu_custom_call.1} parent=1 // pred_check
      _
    $region47: #{tpu_custom_call.1} parent=1 // pred_check_branch
      %62 = sbr.rel (0) target = $region49
    $region48: #{tpu_custom_call.1} parent=1 // pred_region
      %63 = dma.done [#allocation3], 8192
    $region49: #{tpu_custom_call.1} parent=1 // pred_fallthru
      _
    // Predicated region
    $region50: #{tpu_custom_call.1} parent=1 // pred_check
      _
    $region51: #{tpu_custom_call.1} parent=1 // pred_check_branch
      %65 = sbr.rel (0) target = $region53
    $region52: #{tpu_custom_call.1} parent=1 // pred_region
      %66 = dma.done [#allocation6], 8192
    $region53: #{tpu_custom_call.1} parent=1 // pred_fallthru
      _
    %v68 = vld [vmem:[%s0] sm:$0xff]
    %v69 = vld [vmem:[%s0 + $0x8] sm:$0xff]
    %v70 = vld [vmem:[%s0 + $0x10] sm:$0xff]
    %v71 = vld [vmem:[%s0 + $0x18] sm:$0xff]
    %v72 = vld [vmem:[%s0 + $0x20] sm:$0xff]
    %v73 = vld [vmem:[%s0 + $0x28] sm:$0xff]
    %v74 = vld [vmem:[%s0 + $0x30] sm:$0xff]
    %v75 = vld [vmem:[%s0 + $0x38] sm:$0xff]
    %v76 = vld [vmem:[%s0 + $0x40] sm:$0xff]
    %v77 = vld [vmem:[%s0 + $0x48] sm:$0xff]
    %v78 = vld [vmem:[%s0 + $0x50] sm:$0xff]
    %v79 = vld [vmem:[%s0 + $0x58] sm:$0xff]
    %v80 = vld [vmem:[%s0 + $0x60] sm:$0xff]
    %v81 = vld [vmem:[%s0 + $0x68] sm:$0xff]
    %v82 = vld [vmem:[%s0 + $0x70] sm:$0xff]
    %v83 = vld [vmem:[%s0 + $0x78] sm:$0xff]
    %86 = vrot.lane.b32.xlu0 %v69, 4
    %v87 = vpop.permute.xlu0 %86
    %88 = vrot.lane.b32.xlu0 %v77, 4
    %v89 = vpop.permute.xlu0 %88
    %94 = vrot.lane.b32.xlu0 %v70, 8
    %v95 = vpop.permute.xlu0 %94
    %96 = vrot.lane.b32.xlu0 %v78, 8
    %v97 = vpop.permute.xlu0 %96
    %102 = vrot.lane.b32.xlu0 %v71, 12
    %v103 = vpop.permute.xlu0 %102
    %104 = vrot.lane.b32.xlu0 %v79, 12
    %v105 = vpop.permute.xlu0 %104
    %110 = vrot.lane.b32.xlu0 %v72, 16
    %v111 = vpop.permute.xlu0 %110
    %112 = vrot.lane.b32.xlu0 %v80, 16
    %v113 = vpop.permute.xlu0 %112
    %118 = vrot.lane.b32.xlu0 %v73, 20
    %v119 = vpop.permute.xlu0 %118
    %120 = vrot.lane.b32.xlu0 %v81, 20
    %v121 = vpop.permute.xlu0 %120
    %126 = vrot.lane.b32.xlu0 %v74, 24
    %v127 = vpop.permute.xlu0 %126
    %128 = vrot.lane.b32.xlu0 %v82, 24
    %v129 = vpop.permute.xlu0 %128
    %134 = vrot.lane.b32.xlu0 %v75, 28
    %v135 = vpop.permute.xlu0 %134
    %136 = vrot.lane.b32.xlu0 %v83, 28
    %v137 = vpop.permute.xlu0 %136
    %vm140 = vcmask 31744
    %v141 = vsel %vm140, %v68, %v87
    %v142 = vsel %vm140, %v76, %v89
    %vm143 = vcmask 64512
    %v144 = vsel %vm143, %v141, %v95
    %v145 = vsel %vm143, %v142, %v97
    %vm146 = vcmask 97280
    %v147 = vsel %vm146, %v144, %v103
    %v148 = vsel %vm146, %v145, %v105
    %vm149 = vcmask 130048
    %v150 = vsel %vm149, %v147, %v111
    %v151 = vsel %vm149, %v148, %v113
    %vm152 = vcmask 162816
    %v153 = vsel %vm152, %v150, %v119
    %v154 = vsel %vm152, %v151, %v121
    %vm155 = vcmask 195584
    %v156 = vsel %vm155, %v153, %v127
    %v157 = vsel %vm155, %v154, %v129
    %vm158 = vcmask 228352
    %v159 = vsel %vm158, %v156, %v135
    %v160 = vsel %vm158, %v157, %v137
    %v161 = vlaneseq
    %v162 = vshrl.u32 %v161, 7
    %v163 = vcvt.s32.f32 %v162
    %v164 = vmul.f32 %v163, 0.14285715
    %v165 = vadd.f32 %v159, %v164
    %v166 = vadd.f32 %v160, %v164
    %v167 = vld [vmem:[%s5] sm:$0x7f]
    %v168 = vpack.c.bf16 %v166, %v165
    %v169 = vld [vmem:[%s1] sm:$0xf]
    %v170 = vld [vmem:[%s1 + $0x4] sm:$0xf]
    %v171 = vld [vmem:[%s1 + $0x8] sm:$0xf]
    %v172 = vld [vmem:[%s1 + $0xc] sm:$0xf]
    %v177 = vunpack.c.l.b16 %v169
    %v178 = vunpack.c.l.b16 %v170
    %v179 = vunpack.c.l.b16 %v171
    %v180 = vunpack.c.l.b16 %v172
    %v181 = vpack.c.b16 %v178, %v177
    %v182 = vpack.c.b16 %v180, %v179
    %vm185 = vcmask 261120
    %v187 = vsel %vm185, %v168, 0
    %189 = vmatprep.subr.bf16.mxu0 0
    %190 = vmatpush1.bf16.msra.mxu0 %v181
    %191 = vmatprep.subr.bf16.mxu0 0
    %192 = vmatpush1.bf16.msra.mxu0 %v182
    %193 = vmatprep.subr.bf16.mxu0 0
    %194 = vmatpush1.bf16.msra.mxu0 0
    %195 = vmatprep.subr.bf16.mxu0 0
    %196 = vmatpush1.bf16.msra.mxu0 0
    %197 = vmatprep.subr.bf16.mxu0 0
    %198 = vmatpush1.bf16.msra.mxu0 0
    %199 = vmatprep.subr.bf16.mxu0 0
    %200 = vmatpush1.bf16.msra.mxu0 0
    %201 = vmatprep.subr.bf16.mxu0 0
    %202 = vmatpush1.bf16.msra.mxu0 0
    %203 = vmatprep.subr.bf16.mxu0 0
    %204 = vmatpush1.bf16.msra.mxu0 0
    %205 = vmatprep.subr.bf16.mxu0 0
    %206 = vmatpush1.bf16.msra.mxu0 0
    %207 = vmatprep.subr.bf16.mxu0 0
    %208 = vmatpush1.bf16.msra.mxu0 0
    %209 = vmatprep.subr.bf16.mxu0 0
    %210 = vmatpush1.bf16.msra.mxu0 0
    %211 = vmatprep.subr.bf16.mxu0 0
    %212 = vmatpush1.bf16.msra.mxu0 0
    %213 = vmatprep.subr.bf16.mxu0 0
    %214 = vmatpush1.bf16.msra.mxu0 0
    %215 = vmatprep.subr.bf16.mxu0 0
    %216 = vmatpush1.bf16.msra.mxu0 0
    %217 = vmatprep.subr.bf16.mxu0 0
    %218 = vmatpush1.bf16.msra.mxu0 0
    %219 = vmatprep.subr.bf16.mxu0 0
    %220 = vmatpush1.bf16.msra.mxu0 0
    %221 = vmatprep.mubr.bf16.mxu0 0
    %222 = vmatmul.mubr.bf16.gmra.mrb[0].mxu0 %v187
    %v223 = vpop.f32.mrb[0].mxu0
    %v224 = vadd.f32 0.0, %v223
    %v225 = vpop.f32.mrb[0].mxu0
    %v226 = vpop.f32.mrb[0].mxu0
    %v227 = vadd.f32 0.0, %v226
    %v228 = vpop.f32.mrb[0].mxu0
    %229 = vdwg.mxu0
    %232 = vrot.lane.b32.xlu0 %v224, 120
    %v233 = vpop.permute.xlu0 %232
    %234 = vrot.lane.b32.xlu0 %v227, 120
    %v235 = vpop.permute.xlu0 %234
    %238 = vrot.lane.b32.xlu0 %v224, 112
    %v239 = vpop.permute.xlu0 %238
    %240 = vrot.lane.b32.xlu0 %v227, 112
    %v241 = vpop.permute.xlu0 %240
    %244 = vrot.lane.b32.xlu0 %v224, 104
    %v245 = vpop.permute.xlu0 %244
    %246 = vrot.lane.b32.xlu0 %v227, 104
    %v247 = vpop.permute.xlu0 %246
    %v250 = vpack.c.bf16 %v224, %v224
    %v251 = vpack.c.bf16 %v227, %v227
    %v252 = vpack.c.bf16 %v233, %v233
    %v253 = vpack.c.bf16 %v235, %v235
    %v254 = vpack.c.bf16 %v239, %v239
    %v255 = vpack.c.bf16 %v241, %v241
    %v256 = vpack.c.bf16 %v245, %v245
    %v257 = vpack.c.bf16 %v247, %v247
    %259 = vrot.lane.b32.xlu0 %v250, 96
    %v260 = vpop.permute.xlu0 %259
    %v262 = vsel %vm143, %v250, 0
    %v265 = vsel %vm143, %v260, 0
    %267 = vmatprep.subr.bf16.mxu0 0
    %268 = vmatpush1.bf16.xpose.msra.mxu0 %v265
    %269 = vmatprep.subr.bf16.mxu0 0
    %270 = vmatpush1.bf16.xpose.msra.mxu0 0
    %271 = vmatprep.subr.bf16.mxu0 0
    %272 = vmatpush1.bf16.xpose.msra.mxu0 0
    %273 = vmatprep.subr.bf16.mxu0 0
    %274 = vmatpush1.bf16.xpose.msra.mxu0 0
    %275 = vmatprep.subr.bf16.mxu0 0
    %276 = vmatpush1.bf16.xpose.msra.mxu0 0
    %277 = vmatprep.subr.bf16.mxu0 0
    %278 = vmatpush1.bf16.xpose.msra.mxu0 0
    %279 = vmatprep.subr.bf16.mxu0 0
    %280 = vmatpush1.bf16.xpose.msra.mxu0 0
    %281 = vmatprep.subr.bf16.mxu0 0
    %282 = vmatpush1.bf16.xpose.msra.mxu0 0
    %283 = vmatprep.subr.bf16.mxu0 0
    %284 = vmatpush1.bf16.xpose.msra.mxu0 0
    %285 = vmatprep.subr.bf16.mxu0 0
    %286 = vmatpush1.bf16.xpose.msra.mxu0 0
    %287 = vmatprep.subr.bf16.mxu0 0
    %288 = vmatpush1.bf16.xpose.msra.mxu0 0
    %289 = vmatprep.subr.bf16.mxu0 0
    %290 = vmatpush1.bf16.xpose.msra.mxu0 0
    %291 = vmatprep.subr.bf16.mxu0 0
    %292 = vmatpush1.bf16.xpose.msra.mxu0 0
    %293 = vmatprep.subr.bf16.mxu0 0
    %294 = vmatpush1.bf16.xpose.msra.mxu0 0
    %295 = vmatprep.subr.bf16.mxu0 0
    %296 = vmatpush1.bf16.xpose.msra.mxu0 0
    %297 = vmatprep.subr.bf16.mxu0 0
    %298 = vmatpush1.bf16.xpose.msra.mxu0 0
    %299 = vmatprep.mubr.bf16.mxu0 0
    %300 = vmatmul.mubr.bf16.gmra.mrb[0].mxu0 %v262
    %v301 = vpop.f32.mrb[0].mxu0
    %v302 = vadd.f32 0.0, %v301
    %v303 = vpop.f32.mrb[0].mxu0
    %v304 = vpop.f32.mrb[0].mxu0
    %v305 = vpop.f32.mrb[0].mxu0
    %306 = vdwg.mxu0
    %308 = vrot.lane.b32.xlu0 %v251, 96
    %v309 = vpop.permute.xlu0 %308
    %v311 = vsel %vm143, %v251, 0
    %v314 = vsel %vm143, %v309, 0
    %316 = vmatprep.subr.bf16.mxu0 0
    %317 = vmatpush1.bf16.xpose.msra.mxu0 %v314
    %318 = vmatprep.subr.bf16.mxu0 0
    %319 = vmatpush1.bf16.xpose.msra.mxu0 0
    %320 = vmatprep.subr.bf16.mxu0 0
    %321 = vmatpush1.bf16.xpose.msra.mxu0 0
    %322 = vmatprep.subr.bf16.mxu0 0
    %323 = vmatpush1.bf16.xpose.msra.mxu0 0
    %324 = vmatprep.subr.bf16.mxu0 0
    %325 = vmatpush1.bf16.xpose.msra.mxu0 0
    %326 = vmatprep.subr.bf16.mxu0 0
    %327 = vmatpush1.bf16.xpose.msra.mxu0 0
    %328 = vmatprep.subr.bf16.mxu0 0
    %329 = vmatpush1.bf16.xpose.msra.mxu0 0
    %330 = vmatprep.subr.bf16.mxu0 0
    %331 = vmatpush1.bf16.xpose.msra.mxu0 0
    %332 = vmatprep.subr.bf16.mxu0 0
    %333 = vmatpush1.bf16.xpose.msra.mxu0 0
    %334 = vmatprep.subr.bf16.mxu0 0
    %335 = vmatpush1.bf16.xpose.msra.mxu0 0
    %336 = vmatprep.subr.bf16.mxu0 0
    %337 = vmatpush1.bf16.xpose.msra.mxu0 0
    %338 = vmatprep.subr.bf16.mxu0 0
    %339 = vmatpush1.bf16.xpose.msra.mxu0 0
    %340 = vmatprep.subr.bf16.mxu0 0
    %341 = vmatpush1.bf16.xpose.msra.mxu0 0
    %342 = vmatprep.subr.bf16.mxu0 0
    %343 = vmatpush1.bf16.xpose.msra.mxu0 0
    %344 = vmatprep.subr.bf16.mxu0 0
    %345 = vmatpush1.bf16.xpose.msra.mxu0 0
    %346 = vmatprep.subr.bf16.mxu0 0
    %347 = vmatpush1.bf16.xpose.msra.mxu0 0
    %348 = vmatprep.mubr.bf16.mxu0 0
    %349 = vmatmul.mubr.bf16.gmra.mrb[0].mxu0 %v311
    %v350 = vpop.f32.mrb[0].mxu0
    %v351 = vadd.f32 0.0, %v350
    %v352 = vpop.f32.mrb[0].mxu0
    %v353 = vpop.f32.mrb[0].mxu0
    %v354 = vpop.f32.mrb[0].mxu0
    %355 = vdwg.mxu0
    %357 = vrot.lane.b32.xlu0 %v252, 96
    %v358 = vpop.permute.xlu0 %357
    %v360 = vsel %vm143, %v252, 0
    %v363 = vsel %vm143, %v358, 0
    %365 = vmatprep.subr.bf16.mxu0 0
    %366 = vmatpush1.bf16.xpose.msra.mxu0 %v363
    %367 = vmatprep.subr.bf16.mxu0 0
    %368 = vmatpush1.bf16.xpose.msra.mxu0 0
    %369 = vmatprep.subr.bf16.mxu0 0
    %370 = vmatpush1.bf16.xpose.msra.mxu0 0
    %371 = vmatprep.subr.bf16.mxu0 0
    %372 = vmatpush1.bf16.xpose.msra.mxu0 0
    %373 = vmatprep.subr.bf16.mxu0 0
    %374 = vmatpush1.bf16.xpose.msra.mxu0 0
    %375 = vmatprep.subr.bf16.mxu0 0
    %376 = vmatpush1.bf16.xpose.msra.mxu0 0
    %377 = vmatprep.subr.bf16.mxu0 0
    %378 = vmatpush1.bf16.xpose.msra.mxu0 0
    %379 = vmatprep.subr.bf16.mxu0 0
    %380 = vmatpush1.bf16.xpose.msra.mxu0 0
    %381 = vmatprep.subr.bf16.mxu0 0
    %382 = vmatpush1.bf16.xpose.msra.mxu0 0
    %383 = vmatprep.subr.bf16.mxu0 0
    %384 = vmatpush1.bf16.xpose.msra.mxu0 0
    %385 = vmatprep.subr.bf16.mxu0 0
    %386 = vmatpush1.bf16.xpose.msra.mxu0 0
    %387 = vmatprep.subr.bf16.mxu0 0
    %388 = vmatpush1.bf16.xpose.msra.mxu0 0
    %389 = vmatprep.subr.bf16.mxu0 0
    %390 = vmatpush1.bf16.xpose.msra.mxu0 0
    %391 = vmatprep.subr.bf16.mxu0 0
    %392 = vmatpush1.bf16.xpose.msra.mxu0 0
    %393 = vmatprep.subr.bf16.mxu0 0
    %394 = vmatpush1.bf16.xpose.msra.mxu0 0
    %395 = vmatprep.subr.bf16.mxu0 0
    %396 = vmatpush1.bf16.xpose.msra.mxu0 0
    %397 = vmatprep.mubr.bf16.mxu0 0
    %398 = vmatmul.mubr.bf16.gmra.mrb[0].mxu0 %v360
    %v399 = vpop.f32.mrb[0].mxu0
    %v400 = vadd.f32 0.0, %v399
    %v401 = vpop.f32.mrb[0].mxu0
    %v402 = vpop.f32.mrb[0].mxu0
    %v403 = vpop.f32.mrb[0].mxu0
    %404 = vdwg.mxu0
    %406 = vrot.lane.b32.xlu0 %v253, 96
    %v407 = vpop.permute.xlu0 %406
    %v409 = vsel %vm143, %v253, 0
    %v412 = vsel %vm143, %v407, 0
    %414 = vmatprep.subr.bf16.mxu0 0
    %415 = vmatpush1.bf16.xpose.msra.mxu0 %v412
    %416 = vmatprep.subr.bf16.mxu0 0
    %417 = vmatpush1.bf16.xpose.msra.mxu0 0
    %418 = vmatprep.subr.bf16.mxu0 0
    %419 = vmatpush1.bf16.xpose.msra.mxu0 0
    %420 = vmatprep.subr.bf16.mxu0 0
    %421 = vmatpush1.bf16.xpose.msra.mxu0 0
    %422 = vmatprep.subr.bf16.mxu0 0
    %423 = vmatpush1.bf16.xpose.msra.mxu0 0
    %424 = vmatprep.subr.bf16.mxu0 0
    %425 = vmatpush1.bf16.xpose.msra.mxu0 0
    %426 = vmatprep.subr.bf16.mxu0 0
    %427 = vmatpush1.bf16.xpose.msra.mxu0 0
    %428 = vmatprep.subr.bf16.mxu0 0
    %429 = vmatpush1.bf16.xpose.msra.mxu0 0
    %430 = vmatprep.subr.bf16.mxu0 0
    %431 = vmatpush1.bf16.xpose.msra.mxu0 0
    %432 = vmatprep.subr.bf16.mxu0 0
    %433 = vmatpush1.bf16.xpose.msra.mxu0 0
    %434 = vmatprep.subr.bf16.mxu0 0
    %435 = vmatpush1.bf16.xpose.msra.mxu0 0
    %436 = vmatprep.subr.bf16.mxu0 0
    %437 = vmatpush1.bf16.xpose.msra.mxu0 0
    %438 = vmatprep.subr.bf16.mxu0 0
    %439 = vmatpush1.bf16.xpose.msra.mxu0 0
    %440 = vmatprep.subr.bf16.mxu0 0
    %441 = vmatpush1.bf16.xpose.msra.mxu0 0
    %442 = vmatprep.subr.bf16.mxu0 0
    %443 = vmatpush1.bf16.xpose.msra.mxu0 0
    %444 = vmatprep.subr.bf16.mxu0 0
    %445 = vmatpush1.bf16.xpose.msra.mxu0 0
    %446 = vmatprep.mubr.bf16.mxu0 0
    %447 = vmatmul.mubr.bf16.gmra.mrb[0].mxu0 %v409
    %v448 = vpop.f32.mrb[0].mxu0
    %v449 = vadd.f32 0.0, %v448
    %v450 = vpop.f32.mrb[0].mxu0
    %v451 = vpop.f32.mrb[0].mxu0
    %v452 = vpop.f32.mrb[0].mxu0
    %453 = vdwg.mxu0
    %455 = vrot.lane.b32.xlu0 %v254, 96
    %v456 = vpop.permute.xlu0 %455
    %v458 = vsel %vm143, %v254, 0
    %v461 = vsel %vm143, %v456, 0
    %463 = vmatprep.subr.bf16.mxu0 0
    %464 = vmatpush1.bf16.xpose.msra.mxu0 %v461
    %465 = vmatprep.subr.bf16.mxu0 0
    %466 = vmatpush1.bf16.xpose.msra.mxu0 0
    %467 = vmatprep.subr.bf16.mxu0 0
    %468 = vmatpush1.bf16.xpose.msra.mxu0 0
    %469 = vmatprep.subr.bf16.mxu0 0
    %470 = vmatpush1.bf16.xpose.msra.mxu0 0
    %471 = vmatprep.subr.bf16.mxu0 0
    %472 = vmatpush1.bf16.xpose.msra.mxu0 0
    %473 = vmatprep.subr.bf16.mxu0 0
    %474 = vmatpush1.bf16.xpose.msra.mxu0 0
    %475 = vmatprep.subr.bf16.mxu0 0
    %476 = vmatpush1.bf16.xpose.msra.mxu0 0
    %477 = vmatprep.subr.bf16.mxu0 0
    %478 = vmatpush1.bf16.xpose.msra.mxu0 0
    %479 = vmatprep.subr.bf16.mxu0 0
    %480 = vmatpush1.bf16.xpose.msra.mxu0 0
    %481 = vmatprep.subr.bf16.mxu0 0
    %482 = vmatpush1.bf16.xpose.msra.mxu0 0
    %483 = vmatprep.subr.bf16.mxu0 0
    %484 = vmatpush1.bf16.xpose.msra.mxu0 0
    %485 = vmatprep.subr.bf16.mxu0 0
    %486 = vmatpush1.bf16.xpose.msra.mxu0 0
    %487 = vmatprep.subr.bf16.mxu0 0
    %488 = vmatpush1.bf16.xpose.msra.mxu0 0
    %489 = vmatprep.subr.bf16.mxu0 0
    %490 = vmatpush1.bf16.xpose.msra.mxu0 0
    %491 = vmatprep.subr.bf16.mxu0 0
    %492 = vmatpush1.bf16.xpose.msra.mxu0 0
    %493 = vmatprep.subr.bf16.mxu0 0
    %494 = vmatpush1.bf16.xpose.msra.mxu0 0
    %495 = vmatprep.mubr.bf16.mxu0 0
    %496 = vmatmul.mubr.bf16.gmra.mrb[0].mxu0 %v458
    %v497 = vpop.f32.mrb[0].mxu0
    %v498 = vadd.f32 0.0, %v497
    %v499 = vpop.f32.mrb[0].mxu0
    %v500 = vpop.f32.mrb[0].mxu0
    %v501 = vpop.f32.mrb[0].mxu0
    %502 = vdwg.mxu0
    %504 = vrot.lane.b32.xlu0 %v255, 96
    %v505 = vpop.permute.xlu0 %504
    %v507 = vsel %vm143, %v255, 0
    %v510 = vsel %vm143, %v505, 0
    %512 = vmatprep.subr.bf16.mxu0 0
    %513 = vmatpush1.bf16.xpose.msra.mxu0 %v510
    %514 = vmatprep.subr.bf16.mxu0 0
    %515 = vmatpush1.bf16.xpose.msra.mxu0 0
    %516 = vmatprep.subr.bf16.mxu0 0
    %517 = vmatpush1.bf16.xpose.msra.mxu0 0
    %518 = vmatprep.subr.bf16.mxu0 0
    %519 = vmatpush1.bf16.xpose.msra.mxu0 0
    %520 = vmatprep.subr.bf16.mxu0 0
    %521 = vmatpush1.bf16.xpose.msra.mxu0 0
    %522 = vmatprep.subr.bf16.mxu0 0
    %523 = vmatpush1.bf16.xpose.msra.mxu0 0
    %524 = vmatprep.subr.bf16.mxu0 0
    %525 = vmatpush1.bf16.xpose.msra.mxu0 0
    %526 = vmatprep.subr.bf16.mxu0 0
    %527 = vmatpush1.bf16.xpose.msra.mxu0 0
    %528 = vmatprep.subr.bf16.mxu0 0
    %529 = vmatpush1.bf16.xpose.msra.mxu0 0
    %530 = vmatprep.subr.bf16.mxu0 0
    %531 = vmatpush1.bf16.xpose.msra.mxu0 0
    %532 = vmatprep.subr.bf16.mxu0 0
    %533 = vmatpush1.bf16.xpose.msra.mxu0 0
    %534 = vmatprep.subr.bf16.mxu0 0
    %535 = vmatpush1.bf16.xpose.msra.mxu0 0
    %536 = vmatprep.subr.bf16.mxu0 0
    %537 = vmatpush1.bf16.xpose.msra.mxu0 0
    %538 = vmatprep.subr.bf16.mxu0 0
    %539 = vmatpush1.bf16.xpose.msra.mxu0 0
    %540 = vmatprep.subr.bf16.mxu0 0
    %541 = vmatpush1.bf16.xpose.msra.mxu0 0
    %542 = vmatprep.subr.bf16.mxu0 0
    %543 = vmatpush1.bf16.xpose.msra.mxu0 0
    %544 = vmatprep.mubr.bf16.mxu0 0
    %545 = vmatmul.mubr.bf16.gmra.mrb[0].mxu0 %v507
    %v546 = vpop.f32.mrb[0].mxu0
    %v547 = vadd.f32 0.0, %v546
    %v548 = vpop.f32.mrb[0].mxu0
    %v549 = vpop.f32.mrb[0].mxu0
    %v550 = vpop.f32.mrb[0].mxu0
    %551 = vdwg.mxu0
    %553 = vrot.lane.b32.xlu0 %v256, 96
    %v554 = vpop.permute.xlu0 %553
    %v556 = vsel %vm143, %v256, 0
    %v559 = vsel %vm143, %v554, 0
    %561 = vmatprep.subr.bf16.mxu0 0
    %562 = vmatpush1.bf16.xpose.msra.mxu0 %v559
    %563 = vmatprep.subr.bf16.mxu0 0
    %564 = vmatpush1.bf16.xpose.msra.mxu0 0
    %565 = vmatprep.subr.bf16.mxu0 0
    %566 = vmatpush1.bf16.xpose.msra.mxu0 0
    %567 = vmatprep.subr.bf16.mxu0 0
    %568 = vmatpush1.bf16.xpose.msra.mxu0 0
    %569 = vmatprep.subr.bf16.mxu0 0
    %570 = vmatpush1.bf16.xpose.msra.mxu0 0
    %571 = vmatprep.subr.bf16.mxu0 0
    %572 = vmatpush1.bf16.xpose.msra.mxu0 0
    %573 = vmatprep.subr.bf16.mxu0 0
    %574 = vmatpush1.bf16.xpose.msra.mxu0 0
    %575 = vmatprep.subr.bf16.mxu0 0
    %576 = vmatpush1.bf16.xpose.msra.mxu0 0
    %577 = vmatprep.subr.bf16.mxu0 0
    %578 = vmatpush1.bf16.xpose.msra.mxu0 0
    %579 = vmatprep.subr.bf16.mxu0 0
    %580 = vmatpush1.bf16.xpose.msra.mxu0 0
    %581 = vmatprep.subr.bf16.mxu0 0
    %582 = vmatpush1.bf16.xpose.msra.mxu0 0
    %583 = vmatprep.subr.bf16.mxu0 0
    %584 = vmatpush1.bf16.xpose.msra.mxu0 0
    %585 = vmatprep.subr.bf16.mxu0 0
    %586 = vmatpush1.bf16.xpose.msra.mxu0 0
    %587 = vmatprep.subr.bf16.mxu0 0
    %588 = vmatpush1.bf16.xpose.msra.mxu0 0
    %589 = vmatprep.subr.bf16.mxu0 0
    %590 = vmatpush1.bf16.xpose.msra.mxu0 0
    %591 = vmatprep.subr.bf16.mxu0 0
    %592 = vmatpush1.bf16.xpose.msra.mxu0 0
    %593 = vmatprep.mubr.bf16.mxu0 0
    %594 = vmatmul.mubr.bf16.gmra.mrb[0].mxu0 %v556
    %v595 = vpop.f32.mrb[0].mxu0
    %v596 = vadd.f32 0.0, %v595
    %v597 = vpop.f32.mrb[0].mxu0
    %v598 = vpop.f32.mrb[0].mxu0
    %v599 = vpop.f32.mrb[0].mxu0
    %600 = vdwg.mxu0
    %602 = vrot.lane.b32.xlu0 %v257, 96
    %v603 = vpop.permute.xlu0 %602
    %v605 = vsel %vm143, %v257, 0
    %v608 = vsel %vm143, %v603, 0
    %610 = vmatprep.subr.bf16.mxu0 0
    %611 = vmatpush1.bf16.xpose.msra.mxu0 %v608
    %612 = vmatprep.subr.bf16.mxu0 0
    %613 = vmatpush1.bf16.xpose.msra.mxu0 0
    %614 = vmatprep.subr.bf16.mxu0 0
    %615 = vmatpush1.bf16.xpose.msra.mxu0 0
    %616 = vmatprep.subr.bf16.mxu0 0
    %617 = vmatpush1.bf16.xpose.msra.mxu0 0
    %618 = vmatprep.subr.bf16.mxu0 0
    %619 = vmatpush1.bf16.xpose.msra.mxu0 0
    %620 = vmatprep.subr.bf16.mxu0 0
    %621 = vmatpush1.bf16.xpose.msra.mxu0 0
    %622 = vmatprep.subr.bf16.mxu0 0
    %623 = vmatpush1.bf16.xpose.msra.mxu0 0
    %624 = vmatprep.subr.bf16.mxu0 0
    %625 = vmatpush1.bf16.xpose.msra.mxu0 0
    %626 = vmatprep.subr.bf16.mxu0 0
    %627 = vmatpush1.bf16.xpose.msra.mxu0 0
    %628 = vmatprep.subr.bf16.mxu0 0
    %629 = vmatpush1.bf16.xpose.msra.mxu0 0
    %630 = vmatprep.subr.bf16.mxu0 0
    %631 = vmatpush1.bf16.xpose.msra.mxu0 0
    %632 = vmatprep.subr.bf16.mxu0 0
    %633 = vmatpush1.bf16.xpose.msra.mxu0 0
    %634 = vmatprep.subr.bf16.mxu0 0
    %635 = vmatpush1.bf16.xpose.msra.mxu0 0
    %636 = vmatprep.subr.bf16.mxu0 0
    %637 = vmatpush1.bf16.xpose.msra.mxu0 0
    %638 = vmatprep.subr.bf16.mxu0 0
    %639 = vmatpush1.bf16.xpose.msra.mxu0 0
    %640 = vmatprep.subr.bf16.mxu0 0
    %641 = vmatpush1.bf16.xpose.msra.mxu0 0
    %642 = vmatprep.mubr.bf16.mxu0 0
    %643 = vmatmul.mubr.bf16.gmra.mrb[0].mxu0 %v605
    %v644 = vpop.f32.mrb[0].mxu0
    %v645 = vadd.f32 0.0, %v644
    %v646 = vpop.f32.mrb[0].mxu0
    %v647 = vpop.f32.mrb[0].mxu0
    %v648 = vpop.f32.mrb[0].mxu0
    %649 = vdwg.mxu0
    %v650 = vsel %vm143, %v302, -inf
    %651 = vmax.xlane.f32.xlu0 %v650
    %v652 = vpop.xlane.xlu0 %651
    %v653 = vsel %vm143, %v351, -inf
    %654 = vmax.xlane.f32.xlu0 %v653
    %v655 = vpop.xlane.xlu0 %654
    %v656 = vsel %vm143, %v400, -inf
    %657 = vmax.xlane.f32.xlu0 %v656
    %v658 = vpop.xlane.xlu0 %657
    %v659 = vsel %vm143, %v449, -inf
    %660 = vmax.xlane.f32.xlu0 %v659
    %v661 = vpop.xlane.xlu0 %660
    %v662 = vsel %vm143, %v498, -inf
    %663 = vmax.xlane.f32.xlu0 %v662
    %v664 = vpop.xlane.xlu0 %663
    %v665 = vsel %vm143, %v547, -inf
    %666 = vmax.xlane.f32.xlu0 %v665
    %v667 = vpop.xlane.xlu0 %666
    %v668 = vsel %vm143, %v596, -inf
    %669 = vmax.xlane.f32.xlu0 %v668
    %v670 = vpop.xlane.xlu0 %669
    %v671 = vsel %vm143, %v645, -inf
    %672 = vmax.xlane.f32.xlu0 %v671
    %v673 = vpop.xlane.xlu0 %672
    %v674 = vsub.f32 %v302, %v652
    %v675 = vsub.f32 %v351, %v655
    %v676 = vsub.f32 %v400, %v658
    %v677 = vsub.f32 %v449, %v661
    %v678 = vsub.f32 %v498, %v664
    %v679 = vsub.f32 %v547, %v667
    %v680 = vsub.f32 %v596, %v670
    %v681 = vsub.f32 %v645, %v673
    %v682 = vmul.f32 %v674, 1.442695
    %v683 = vpow.pop %v682
    %v684 = vmul.f32 %v675, 1.442695
    %v685 = vpow.pop %v684
    %v686 = vmul.f32 %v676, 1.442695
    %v687 = vpow.pop %v686
    %v688 = vmul.f32 %v677, 1.442695
    %v689 = vpow.pop %v688
    %v690 = vmul.f32 %v678, 1.442695
    %v691 = vpow.pop %v690
    %v692 = vmul.f32 %v679, 1.442695
    %v693 = vpow.pop %v692
    %v694 = vmul.f32 %v680, 1.442695
    %v695 = vpow.pop %v694
    %v696 = vmul.f32 %v681, 1.442695
    %v697 = vpow.pop %v696
    %v698 = vsel %vm143, %v683, 0.0
    %699 = vadd.xlane.f32.xlu0 %v698
    %v700 = vpop.xlane.xlu0 %699
    %v701 = vsel %vm143, %v685, 0.0
    %702 = vadd.xlane.f32.xlu0 %v701
    %v703 = vpop.xlane.xlu0 %702
    %v704 = vsel %vm143, %v687, 0.0
    %705 = vadd.xlane.f32.xlu0 %v704
    %v706 = vpop.xlane.xlu0 %705
    %v707 = vsel %vm143, %v689, 0.0
    %708 = vadd.xlane.f32.xlu0 %v707
    %v709 = vpop.xlane.xlu0 %708
    %v710 = vsel %vm143, %v691, 0.0
    %711 = vadd.xlane.f32.xlu0 %v710
    %v712 = vpop.xlane.xlu0 %711
    %v713 = vsel %vm143, %v693, 0.0
    %714 = vadd.xlane.f32.xlu0 %v713
    %v715 = vpop.xlane.xlu0 %714
    %v716 = vsel %vm143, %v695, 0.0
    %717 = vadd.xlane.f32.xlu0 %v716
    %v718 = vpop.xlane.xlu0 %717
    %v719 = vsel %vm143, %v697, 0.0
    %720 = vadd.xlane.f32.xlu0 %v719
    %v721 = vpop.xlane.xlu0 %720
    %v722 = vrcp.pop %v700
    %v723 = vrcp.pop %v703
    %v724 = vrcp.pop %v706
    %v725 = vrcp.pop %v709
    %v726 = vrcp.pop %v712
    %v727 = vrcp.pop %v715
    %v728 = vrcp.pop %v718
    %v729 = vrcp.pop %v721
    %v730 = vmul.f32 %v683, %v722
    %v731 = vmul.f32 %v685, %v723
    %v732 = vmul.f32 %v687, %v724
    %v733 = vmul.f32 %v689, %v725
    %v734 = vmul.f32 %v691, %v726
    %v735 = vmul.f32 %v693, %v727
    %v736 = vmul.f32 %v695, %v728
    %v737 = vmul.f32 %v697, %v729
    %v738 = vpack.c.bf16 %v730, %v730
    %v739 = vpack.c.bf16 %v731, %v731
    %v740 = vpack.c.bf16 %v732, %v732
    %v741 = vpack.c.bf16 %v733, %v733
    %v742 = vpack.c.bf16 %v734, %v734
    %v743 = vpack.c.bf16 %v735, %v735
    %v744 = vpack.c.bf16 %v736, %v736
    %v745 = vpack.c.bf16 %v737, %v737
    %746 = vrot.lane.b32.xlu0 %v250, 64
    %v747 = vpop.permute.xlu0 %746
    %v749 = vsel %vm143, %v738, 0
    %vm751 = vcmask 1043456
    %v753 = vsel %vm751, %v747, 0
    %755 = vmatprep.subr.bf16.mxu0 0
    %756 = vmatpush1.bf16.msra.mxu0 %v753
    %757 = vmatprep.subr.bf16.mxu0 0
    %758 = vmatpush1.bf16.msra.mxu0 0
    %759 = vmatprep.subr.bf16.mxu0 0
    %760 = vmatpush1.bf16.msra.mxu0 0
    %761 = vmatprep.subr.bf16.mxu0 0
    %762 = vmatpush1.bf16.msra.mxu0 0
    %763 = vmatprep.subr.bf16.mxu0 0
    %764 = vmatpush1.bf16.msra.mxu0 0
    %765 = vmatprep.subr.bf16.mxu0 0
    %766 = vmatpush1.bf16.msra.mxu0 0
    %767 = vmatprep.subr.bf16.mxu0 0
    %768 = vmatpush1.bf16.msra.mxu0 0
    %769 = vmatprep.subr.bf16.mxu0 0
    %770 = vmatpush1.bf16.msra.mxu0 0
    %771 = vmatprep.subr.bf16.mxu0 0
    %772 = vmatpush1.bf16.msra.mxu0 0
    %773 = vmatprep.subr.bf16.mxu0 0
    %774 = vmatpush1.bf16.msra.mxu0 0
    %775 = vmatprep.subr.bf16.mxu0 0
    %776 = vmatpush1.bf16.msra.mxu0 0
    %777 = vmatprep.subr.bf16.mxu0 0
    %778 = vmatpush1.bf16.msra.mxu0 0
    %779 = vmatprep.subr.bf16.mxu0 0
    %780 = vmatpush1.bf16.msra.mxu0 0
    %781 = vmatprep.subr.bf16.mxu0 0
    %782 = vmatpush1.bf16.msra.mxu0 0
    %783 = vmatprep.subr.bf16.mxu0 0
    %784 = vmatpush1.bf16.msra.mxu0 0
    %785 = vmatprep.subr.bf16.mxu0 0
    %786 = vmatpush1.bf16.msra.mxu0 0
    %787 = vmatprep.mubr.bf16.mxu0 0
    %788 = vmatmul.mubr.bf16.gmra.mrb[0].mxu0 %v749
    %v789 = vpop.f32.mrb[0].mxu0
    %v790 = vadd.f32 0.0, %v789
    %v791 = vpop.f32.mrb[0].mxu0
    %v792 = vpop.f32.mrb[0].mxu0
    %v793 = vpop.f32.mrb[0].mxu0
    %794 = vdwg.mxu0
    %795 = vrot.lane.b32.xlu0 %v251, 64
    %v796 = vpop.permute.xlu0 %795
    %v798 = vsel %vm143, %v739, 0
    %v801 = vsel %vm751, %v796, 0
    %803 = vmatprep.subr.bf16.mxu0 0
    %804 = vmatpush1.bf16.msra.mxu0 %v801
    %805 = vmatprep.subr.bf16.mxu0 0
    %806 = vmatpush1.bf16.msra.mxu0 0
    %807 = vmatprep.subr.bf16.mxu0 0
    %808 = vmatpush1.bf16.msra.mxu0 0
    %809 = vmatprep.subr.bf16.mxu0 0
    %810 = vmatpush1.bf16.msra.mxu0 0
    %811 = vmatprep.subr.bf16.mxu0 0
    %812 = vmatpush1.bf16.msra.mxu0 0
    %813 = vmatprep.subr.bf16.mxu0 0
    %814 = vmatpush1.bf16.msra.mxu0 0
    %815 = vmatprep.subr.bf16.mxu0 0
    %816 = vmatpush1.bf16.msra.mxu0 0
    %817 = vmatprep.subr.bf16.mxu0 0
    %818 = vmatpush1.bf16.msra.mxu0 0
    %819 = vmatprep.subr.bf16.mxu0 0
    %820 = vmatpush1.bf16.msra.mxu0 0
    %821 = vmatprep.subr.bf16.mxu0 0
    %822 = vmatpush1.bf16.msra.mxu0 0
    %823 = vmatprep.subr.bf16.mxu0 0
    %824 = vmatpush1.bf16.msra.mxu0 0
    %825 = vmatprep.subr.bf16.mxu0 0
    %826 = vmatpush1.bf16.msra.mxu0 0
    %827 = vmatprep.subr.bf16.mxu0 0
    %828 = vmatpush1.bf16.msra.mxu0 0
    %829 = vmatprep.subr.bf16.mxu0 0
    %830 = vmatpush1.bf16.msra.mxu0 0
    %831 = vmatprep.subr.bf16.mxu0 0
    %832 = vmatpush1.bf16.msra.mxu0 0
    %833 = vmatprep.subr.bf16.mxu0 0
    %834 = vmatpush1.bf16.msra.mxu0 0
    %835 = vmatprep.mubr.bf16.mxu0 0
    %836 = vmatmul.mubr.bf16.gmra.mrb[0].mxu0 %v798
    %v837 = vpop.f32.mrb[0].mxu0
    %v838 = vadd.f32 0.0, %v837
    %v839 = vpop.f32.mrb[0].mxu0
    %v840 = vpop.f32.mrb[0].mxu0
    %v841 = vpop.f32.mrb[0].mxu0
    %842 = vdwg.mxu0
    %843 = vrot.lane.b32.xlu0 %v252, 64
    %v844 = vpop.permute.xlu0 %843
    %v846 = vsel %vm143, %v740, 0
    %v849 = vsel %vm751, %v844, 0
    %851 = vmatprep.subr.bf16.mxu0 0
    %852 = vmatpush1.bf16.msra.mxu0 %v849
    %853 = vmatprep.subr.bf16.mxu0 0
    %854 = vmatpush1.bf16.msra.mxu0 0
    %855 = vmatprep.subr.bf16.mxu0 0
    %856 = vmatpush1.bf16.msra.mxu0 0
    %857 = vmatprep.subr.bf16.mxu0 0
    %858 = vmatpush1.bf16.msra.mxu0 0
    %859 = vmatprep.subr.bf16.mxu0 0
    %860 = vmatpush1.bf16.msra.mxu0 0
    %861 = vmatprep.subr.bf16.mxu0 0
    %862 = vmatpush1.bf16.msra.mxu0 0
    %863 = vmatprep.subr.bf16.mxu0 0
    %864 = vmatpush1.bf16.msra.mxu0 0
    %865 = vmatprep.subr.bf16.mxu0 0
    %866 = vmatpush1.bf16.msra.mxu0 0
    %867 = vmatprep.subr.bf16.mxu0 0
    %868 = vmatpush1.bf16.msra.mxu0 0
    %869 = vmatprep.subr.bf16.mxu0 0
    %870 = vmatpush1.bf16.msra.mxu0 0
    %871 = vmatprep.subr.bf16.mxu0 0
    %872 = vmatpush1.bf16.msra.mxu0 0
    %873 = vmatprep.subr.bf16.mxu0 0
    %874 = vmatpush1.bf16.msra.mxu0 0
    %875 = vmatprep.subr.bf16.mxu0 0
    %876 = vmatpush1.bf16.msra.mxu0 0
    %877 = vmatprep.subr.bf16.mxu0 0
    %878 = vmatpush1.bf16.msra.mxu0 0
    %879 = vmatprep.subr.bf16.mxu0 0
    %880 = vmatpush1.bf16.msra.mxu0 0
    %881 = vmatprep.subr.bf16.mxu0 0
    %882 = vmatpush1.bf16.msra.mxu0 0
    %883 = vmatprep.mubr.bf16.mxu0 0
    %884 = vmatmul.mubr.bf16.gmra.mrb[0].mxu0 %v846
    %v885 = vpop.f32.mrb[0].mxu0
    %v886 = vadd.f32 0.0, %v885
    %v887 = vpop.f32.mrb[0].mxu0
    %v888 = vpop.f32.mrb[0].mxu0
    %v889 = vpop.f32.mrb[0].mxu0
    %890 = vdwg.mxu0
    %891 = vrot.lane.b32.xlu0 %v253, 64
    %v892 = vpop.permute.xlu0 %891
    %v894 = vsel %vm143, %v741, 0
    %v897 = vsel %vm751, %v892, 0
    %899 = vmatprep.subr.bf16.mxu0 0
    %900 = vmatpush1.bf16.msra.mxu0 %v897
    %901 = vmatprep.subr.bf16.mxu0 0
    %902 = vmatpush1.bf16.msra.mxu0 0
    %903 = vmatprep.subr.bf16.mxu0 0
    %904 = vmatpush1.bf16.msra.mxu0 0
    %905 = vmatprep.subr.bf16.mxu0 0
    %906 = vmatpush1.bf16.msra.mxu0 0
    %907 = vmatprep.subr.bf16.mxu0 0
    %908 = vmatpush1.bf16.msra.mxu0 0
    %909 = vmatprep.subr.bf16.mxu0 0
    %910 = vmatpush1.bf16.msra.mxu0 0
    %911 = vmatprep.subr.bf16.mxu0 0
    %912 = vmatpush1.bf16.msra.mxu0 0
    %913 = vmatprep.subr.bf16.mxu0 0
    %914 = vmatpush1.bf16.msra.mxu0 0
    %915 = vmatprep.subr.bf16.mxu0 0
    %916 = vmatpush1.bf16.msra.mxu0 0
    %917 = vmatprep.subr.bf16.mxu0 0
    %918 = vmatpush1.bf16.msra.mxu0 0
    %919 = vmatprep.subr.bf16.mxu0 0
    %920 = vmatpush1.bf16.msra.mxu0 0
    %921 = vmatprep.subr.bf16.mxu0 0
    %922 = vmatpush1.bf16.msra.mxu0 0
    %923 = vmatprep.subr.bf16.mxu0 0
    %924 = vmatpush1.bf16.msra.mxu0 0
    %925 = vmatprep.subr.bf16.mxu0 0
    %926 = vmatpush1.bf16.msra.mxu0 0
    %927 = vmatprep.subr.bf16.mxu0 0
    %928 = vmatpush1.bf16.msra.mxu0 0
    %929 = vmatprep.subr.bf16.mxu0 0
    %930 = vmatpush1.bf16.msra.mxu0 0
    %931 = vmatprep.mubr.bf16.mxu0 0
    %932 = vmatmul.mubr.bf16.gmra.mrb[0].mxu0 %v894
    %v933 = vpop.f32.mrb[0].mxu0
    %v934 = vadd.f32 0.0, %v933
    %v935 = vpop.f32.mrb[0].mxu0
    %v936 = vpop.f32.mrb[0].mxu0
    %v937 = vpop.f32.mrb[0].mxu0
    %938 = vdwg.mxu0
    %939 = vrot.lane.b32.xlu0 %v254, 64
    %v940 = vpop.permute.xlu0 %939
    %v942 = vsel %vm143, %v742, 0
    %v945 = vsel %vm751, %v940, 0
    %947 = vmatprep.subr.bf16.mxu0 0
    %948 = vmatpush1.bf16.msra.mxu0 %v945
    %949 = vmatprep.subr.bf16.mxu0 0
    %950 = vmatpush1.bf16.msra.mxu0 0
    %951 = vmatprep.subr.bf16.mxu0 0
    %952 = vmatpush1.bf16.msra.mxu0 0
    %953 = vmatprep.subr.bf16.mxu0 0
    %954 = vmatpush1.bf16.msra.mxu0 0
    %955 = vmatprep.subr.bf16.mxu0 0
    %956 = vmatpush1.bf16.msra.mxu0 0
    %957 = vmatprep.subr.bf16.mxu0 0
    %958 = vmatpush1.bf16.msra.mxu0 0
    %959 = vmatprep.subr.bf16.mxu0 0
    %960 = vmatpush1.bf16.msra.mxu0 0
    %961 = vmatprep.subr.bf16.mxu0 0
    %962 = vmatpush1.bf16.msra.mxu0 0
    %963 = vmatprep.subr.bf16.mxu0 0
    %964 = vmatpush1.bf16.msra.mxu0 0
    %965 = vmatprep.subr.bf16.mxu0 0
    %966 = vmatpush1.bf16.msra.mxu0 0
    %967 = vmatprep.subr.bf16.mxu0 0
    %968 = vmatpush1.bf16.msra.mxu0 0
    %969 = vmatprep.subr.bf16.mxu0 0
    %970 = vmatpush1.bf16.msra.mxu0 0
    %971 = vmatprep.subr.bf16.mxu0 0
    %972 = vmatpush1.bf16.msra.mxu0 0
    %973 = vmatprep.subr.bf16.mxu0 0
    %974 = vmatpush1.bf16.msra.mxu0 0
    %975 = vmatprep.subr.bf16.mxu0 0
    %976 = vmatpush1.bf16.msra.mxu0 0
    %977 = vmatprep.subr.bf16.mxu0 0
    %978 = vmatpush1.bf16.msra.mxu0 0
    %979 = vmatprep.mubr.bf16.mxu0 0
    %980 = vmatmul.mubr.bf16.gmra.mrb[0].mxu0 %v942
    %v981 = vpop.f32.mrb[0].mxu0
    %v982 = vadd.f32 0.0, %v981
    %v983 = vpop.f32.mrb[0].mxu0
    %v984 = vpop.f32.mrb[0].mxu0
    %v985 = vpop.f32.mrb[0].mxu0
    %986 = vdwg.mxu0
    %987 = vrot.lane.b32.xlu0 %v255, 64
    %v988 = vpop.permute.xlu0 %987
    %v990 = vsel %vm143, %v743, 0
    %v993 = vsel %vm751, %v988, 0
    %995 = vmatprep.subr.bf16.mxu0 0
    %996 = vmatpush1.bf16.msra.mxu0 %v993
    %997 = vmatprep.subr.bf16.mxu0 0
    %998 = vmatpush1.bf16.msra.mxu0 0
    %999 = vmatprep.subr.bf16.mxu0 0
    %1000 = vmatpush1.bf16.msra.mxu0 0
    %1001 = vmatprep.subr.bf16.mxu0 0
    %1002 = vmatpush1.bf16.msra.mxu0 0
    %1003 = vmatprep.subr.bf16.mxu0 0
    %1004 = vmatpush1.bf16.msra.mxu0 0
    %1005 = vmatprep.subr.bf16.mxu0 0
    %1006 = vmatpush1.bf16.msra.mxu0 0
    %1007 = vmatprep.subr.bf16.mxu0 0
    %1008 = vmatpush1.bf16.msra.mxu0 0
    %1009 = vmatprep.subr.bf16.mxu0 0
    %1010 = vmatpush1.bf16.msra.mxu0 0
    %1011 = vmatprep.subr.bf16.mxu0 0
    %1012 = vmatpush1.bf16.msra.mxu0 0
    %1013 = vmatprep.subr.bf16.mxu0 0
    %1014 = vmatpush1.bf16.msra.mxu0 0
    %1015 = vmatprep.subr.bf16.mxu0 0
    %1016 = vmatpush1.bf16.msra.mxu0 0
    %1017 = vmatprep.subr.bf16.mxu0 0
    %1018 = vmatpush1.bf16.msra.mxu0 0
    %1019 = vmatprep.subr.bf16.mxu0 0
    %1020 = vmatpush1.bf16.msra.mxu0 0
    %1021 = vmatprep.subr.bf16.mxu0 0
    %1022 = vmatpush1.bf16.msra.mxu0 0
    %1023 = vmatprep.subr.bf16.mxu0 0
    %1024 = vmatpush1.bf16.msra.mxu0 0
    %1025 = vmatprep.subr.bf16.mxu0 0
    %1026 = vmatpush1.bf16.msra.mxu0 0
    %1027 = vmatprep.mubr.bf16.mxu0 0
    %1028 = vmatmul.mubr.bf16.gmra.mrb[0].mxu0 %v990
    %v1029 = vpop.f32.mrb[0].mxu0
    %v1030 = vadd.f32 0.0, %v1029
    %v1031 = vpop.f32.mrb[0].mxu0
    %v1032 = vpop.f32.mrb[0].mxu0
    %v1033 = vpop.f32.mrb[0].mxu0
    %1034 = vdwg.mxu0
    %1035 = vrot.lane.b32.xlu0 %v256, 64
    %v1036 = vpop.permute.xlu0 %1035
    %v1038 = vsel %vm143, %v744, 0
    %v1041 = vsel %vm751, %v1036, 0
    %1043 = vmatprep.subr.bf16.mxu0 0
    %1044 = vmatpush1.bf16.msra.mxu0 %v1041
    %1045 = vmatprep.subr.bf16.mxu0 0
    %1046 = vmatpush1.bf16.msra.mxu0 0
    %1047 = vmatprep.subr.bf16.mxu0 0
    %1048 = vmatpush1.bf16.msra.mxu0 0
    %1049 = vmatprep.subr.bf16.mxu0 0
    %1050 = vmatpush1.bf16.msra.mxu0 0
    %1051 = vmatprep.subr.bf16.mxu0 0
    %1052 = vmatpush1.bf16.msra.mxu0 0
    %1053 = vmatprep.subr.bf16.mxu0 0
    %1054 = vmatpush1.bf16.msra.mxu0 0
    %1055 = vmatprep.subr.bf16.mxu0 0
    %1056 = vmatpush1.bf16.msra.mxu0 0
    %1057 = vmatprep.subr.bf16.mxu0 0
    %1058 = vmatpush1.bf16.msra.mxu0 0
    %1059 = vmatprep.subr.bf16.mxu0 0
    %1060 = vmatpush1.bf16.msra.mxu0 0
    %1061 = vmatprep.subr.bf16.mxu0 0
    %1062 = vmatpush1.bf16.msra.mxu0 0
    %1063 = vmatprep.subr.bf16.mxu0 0
    %1064 = vmatpush1.bf16.msra.mxu0 0
    %1065 = vmatprep.subr.bf16.mxu0 0
    %1066 = vmatpush1.bf16.msra.mxu0 0
    %1067 = vmatprep.subr.bf16.mxu0 0
    %1068 = vmatpush1.bf16.msra.mxu0 0
    %1069 = vmatprep.subr.bf16.mxu0 0
    %1070 = vmatpush1.bf16.msra.mxu0 0
    %1071 = vmatprep.subr.bf16.mxu0 0
    %1072 = vmatpush1.bf16.msra.mxu0 0
    %1073 = vmatprep.subr.bf16.mxu0 0
    %1074 = vmatpush1.bf16.msra.mxu0 0
    %1075 = vmatprep.mubr.bf16.mxu0 0
    %1076 = vmatmul.mubr.bf16.gmra.mrb[0].mxu0 %v1038
    %v1077 = vpop.f32.mrb[0].mxu0
    %v1078 = vadd.f32 0.0, %v1077
    %v1079 = vpop.f32.mrb[0].mxu0
    %v1080 = vpop.f32.mrb[0].mxu0
    %v1081 = vpop.f32.mrb[0].mxu0
    %1082 = vdwg.mxu0
    %1083 = vrot.lane.b32.xlu0 %v257, 64
    %v1084 = vpop.permute.xlu0 %1083
    %v1086 = vsel %vm143, %v745, 0
    %v1089 = vsel %vm751, %v1084, 0
    %1091 = vmatprep.subr.bf16.mxu0 0
    %1092 = vmatpush1.bf16.msra.mxu0 %v1089
    %1093 = vmatprep.subr.bf16.mxu0 0
    %1094 = vmatpush1.bf16.msra.mxu0 0
    %1095 = vmatprep.subr.bf16.mxu0 0
    %1096 = vmatpush1.bf16.msra.mxu0 0
    %1097 = vmatprep.subr.bf16.mxu0 0
    %1098 = vmatpush1.bf16.msra.mxu0 0
    %1099 = vmatprep.subr.bf16.mxu0 0
    %1100 = vmatpush1.bf16.msra.mxu0 0
    %1101 = vmatprep.subr.bf16.mxu0 0
    %1102 = vmatpush1.bf16.msra.mxu0 0
    %1103 = vmatprep.subr.bf16.mxu0 0
    %1104 = vmatpush1.bf16.msra.mxu0 0
    %1105 = vmatprep.subr.bf16.mxu0 0
    %1106 = vmatpush1.bf16.msra.mxu0 0
    %1107 = vmatprep.subr.bf16.mxu0 0
    %1108 = vmatpush1.bf16.msra.mxu0 0
    %1109 = vmatprep.subr.bf16.mxu0 0
    %1110 = vmatpush1.bf16.msra.mxu0 0
    %1111 = vmatprep.subr.bf16.mxu0 0
    %1112 = vmatpush1.bf16.msra.mxu0 0
    %1113 = vmatprep.subr.bf16.mxu0 0
    %1114 = vmatpush1.bf16.msra.mxu0 0
    %1115 = vmatprep.subr.bf16.mxu0 0
    %1116 = vmatpush1.bf16.msra.mxu0 0
    %1117 = vmatprep.subr.bf16.mxu0 0
    %1118 = vmatpush1.bf16.msra.mxu0 0
    %1119 = vmatprep.subr.bf16.mxu0 0
    %1120 = vmatpush1.bf16.msra.mxu0 0
    %1121 = vmatprep.subr.bf16.mxu0 0
    %1122 = vmatpush1.bf16.msra.mxu0 0
    %1123 = vmatprep.mubr.bf16.mxu0 0
    %1124 = vmatmul.mubr.bf16.gmra.mrb[0].mxu0 %v1086
    %v1125 = vpop.f32.mrb[0].mxu0
    %v1126 = vadd.f32 0.0, %v1125
    %v1127 = vpop.f32.mrb[0].mxu0
    %v1128 = vpop.f32.mrb[0].mxu0
    %v1129 = vpop.f32.mrb[0].mxu0
    %1130 = vdwg.mxu0
    %1133 = vrot.lane.b32.xlu0 %v886, 8
    %v1134 = vpop.permute.xlu0 %1133
    %1135 = vrot.lane.b32.xlu0 %v934, 8
    %v1136 = vpop.permute.xlu0 %1135
    %1141 = vrot.lane.b32.xlu0 %v982, 16
    %v1142 = vpop.permute.xlu0 %1141
    %1143 = vrot.lane.b32.xlu0 %v1030, 16
    %v1144 = vpop.permute.xlu0 %1143
    %1149 = vrot.lane.b32.xlu0 %v1078, 24
    %v1150 = vpop.permute.xlu0 %1149
    %1151 = vrot.lane.b32.xlu0 %v1126, 24
    %v1152 = vpop.permute.xlu0 %1151
    %v1155 = vsel %vm143, %v790, %v1134
    %v1156 = vsel %vm143, %v838, %v1136
    %v1157 = vsel %vm149, %v1155, %v1142
    %v1158 = vsel %vm149, %v1156, %v1144
    %v1159 = vsel %vm155, %v1157, %v1150
    %v1160 = vsel %vm155, %v1158, %v1152
    %v1161 = vpack.c.bf16 %v1160, %v1159
    %v1162 = vld [vmem:[%s2] sm:$0xf]
    %v1163 = vld [vmem:[%s2 + $0x4] sm:$0xf]
    %v1164 = vld [vmem:[%s2 + $0x8] sm:$0xf]
    %v1165 = vld [vmem:[%s2 + $0xc] sm:$0xf]
    %v1166 = vlaneseq
    %v1167 = vshrl.u32 %v1166, 7
    %v1168 = vsub.s32 0, %v1167
    %v1169 = vrot.slane %v167, %v1168
    %v1174 = vunpack.c.l.b16 %v1162
    %v1175 = vunpack.c.l.b16 %v1163
    %v1176 = vunpack.c.l.b16 %v1164
    %v1177 = vunpack.c.l.b16 %v1165
    %v1178 = vpack.c.b16 %v1175, %v1174
    %v1179 = vpack.c.b16 %v1177, %v1176
    %v1183 = vsel %vm185, %v1161, 0
    %1185 = vmatprep.subr.bf16.mxu0 0
    %1186 = vmatpush1.bf16.msra.mxu0 %v1178
    %1187 = vmatprep.subr.bf16.mxu0 0
    %1188 = vmatpush1.bf16.msra.mxu0 %v1179
    %1189 = vmatprep.subr.bf16.mxu0 0
    %1190 = vmatpush1.bf16.msra.mxu0 0
    %1191 = vmatprep.subr.bf16.mxu0 0
    %1192 = vmatpush1.bf16.msra.mxu0 0
    %1193 = vmatprep.subr.bf16.mxu0 0
    %1194 = vmatpush1.bf16.msra.mxu0 0
    %1195 = vmatprep.subr.bf16.mxu0 0
    %1196 = vmatpush1.bf16.msra.mxu0 0
    %1197 = vmatprep.subr.bf16.mxu0 0
    %1198 = vmatpush1.bf16.msra.mxu0 0
    %1199 = vmatprep.subr.bf16.mxu0 0
    %1200 = vmatpush1.bf16.msra.mxu0 0
    %1201 = vmatprep.subr.bf16.mxu0 0
    %1202 = vmatpush1.bf16.msra.mxu0 0
    %1203 = vmatprep.subr.bf16.mxu0 0
    %1204 = vmatpush1.bf16.msra.mxu0 0
    %1205 = vmatprep.subr.bf16.mxu0 0
    %1206 = vmatpush1.bf16.msra.mxu0 0
    %1207 = vmatprep.subr.bf16.mxu0 0
    %1208 = vmatpush1.bf16.msra.mxu0 0
    %1209 = vmatprep.subr.bf16.mxu0 0
    %1210 = vmatpush1.bf16.msra.mxu0 0
    %1211 = vmatprep.subr.bf16.mxu0 0
    %1212 = vmatpush1.bf16.msra.mxu0 0
    %1213 = vmatprep.subr.bf16.mxu0 0
    %1214 = vmatpush1.bf16.msra.mxu0 0
    %1215 = vmatprep.subr.bf16.mxu0 0
    %1216 = vmatpush1.bf16.msra.mxu0 0
    %1217 = vmatprep.mubr.bf16.mxu0 0
    %1218 = vmatmul.mubr.bf16.gmra.mrb[0].mxu0 %v1183
    %v1219 = vpop.f32.mrb[0].mxu0
    %v1220 = vadd.f32 %v1169, %v1219
    %v1221 = vpop.f32.mrb[0].mxu0
    %v1222 = vpop.f32.mrb[0].mxu0
    %v1223 = vadd.f32 %v1169, %v1222
    %v1224 = vpop.f32.mrb[0].mxu0
    %1225 = vdwg.mxu0
    %v1226 = vadd.f32 %v1220, %v165
    %v1227 = vadd.f32 %v1223, %v166
    %v1228 = vsel %vm185, %v1226, 0.0
    %1229 = vadd.xlane.f32.xlu0 %v1228
    %v1230 = vpop.xlane.xlu0 %1229
    %v1231 = vsel %vm185, %v1227, 0.0
    %1232 = vadd.xlane.f32.xlu0 %v1231
    %v1233 = vpop.xlane.xlu0 %1232
    %v1234 = vrcp.pop 32.0
    %v1235 = vmul.f32 %v1230, %v1234
    %v1236 = vmul.f32 %v1233, %v1234
    %v1237 = vsub.f32 %v1226, %v1235
    %v1238 = vsub.f32 %v1227, %v1236
    %v1239 = vmul.f32 %v1237, %v1237
    %v1240 = vmul.f32 %v1238, %v1238
    %v1241 = vsel %vm185, %v1239, 0.0
    %1242 = vadd.xlane.f32.xlu0 %v1241
    %v1243 = vpop.xlane.xlu0 %1242
    %v1244 = vsel %vm185, %v1240, 0.0
    %1245 = vadd.xlane.f32.xlu0 %v1244
    %v1246 = vpop.xlane.xlu0 %1245
    %v1247 = vmul.f32 %v1243, %v1234
    %v1248 = vmul.f32 %v1246, %v1234
    %v1249 = vadd.f32 %v1247, 1e-05
    %v1250 = vadd.f32 %v1248, 1e-05
    %v1251 = vrsqrt.pop %v1249
    %v1252 = vrsqrt.pop %v1250
    %v1253 = vmul.f32 %v1237, %v1251
    %v1254 = vmul.f32 %v1238, %v1252
    %v1255 = vlaneseq
    %v1256 = vshrl.u32 %v1255, 7
    %v1257 = vsub.s32 1, %v1256
    %v1258 = vrot.slane %v167, %v1257
    %v1259 = vmul.f32 %v1253, %v1258
    %v1260 = vmul.f32 %v1254, %v1258
    %v1261 = vlaneseq
    %v1262 = vshrl.u32 %v1261, 7
    %v1263 = vsub.s32 2, %v1262
    %v1264 = vrot.slane %v167, %v1263
    %v1265 = vadd.f32 %v1259, %v1264
    %v1266 = vadd.f32 %v1260, %v1264
    %v1267 = vpack.c.bf16 %v1266, %v1265
    %v1268 = vld [vmem:[%s3] sm:$0xf]
    %v1269 = vld [vmem:[%s3 + $0x4] sm:$0xf]
    %v1270 = vld [vmem:[%s3 + $0x8] sm:$0xf]
    %v1271 = vld [vmem:[%s3 + $0xc] sm:$0xf]
    %v1272 = vlaneseq
    %v1273 = vshrl.u32 %v1272, 7
    %v1274 = vsub.s32 3, %v1273
    %v1275 = vrot.slane %v167, %v1274
    %v1280 = vunpack.c.l.b16 %v1268
    %v1281 = vunpack.c.l.b16 %v1269
    %v1282 = vunpack.c.l.b16 %v1270
    %v1283 = vunpack.c.l.b16 %v1271
    %v1284 = vpack.c.b16 %v1281, %v1280
    %v1285 = vpack.c.b16 %v1283, %v1282
    %v1289 = vsel %vm185, %v1267, 0
    %1291 = vmatprep.subr.bf16.mxu0 0
    %1292 = vmatpush1.bf16.msra.mxu0 %v1284
    %1293 = vmatprep.subr.bf16.mxu0 0
    %1294 = vmatpush1.bf16.msra.mxu0 %v1285
    %1295 = vmatprep.subr.bf16.mxu0 0
    %1296 = vmatpush1.bf16.msra.mxu0 0
    %1297 = vmatprep.subr.bf16.mxu0 0
    %1298 = vmatpush1.bf16.msra.mxu0 0
    %1299 = vmatprep.subr.bf16.mxu0 0
    %1300 = vmatpush1.bf16.msra.mxu0 0
    %1301 = vmatprep.subr.bf16.mxu0 0
    %1302 = vmatpush1.bf16.msra.mxu0 0
    %1303 = vmatprep.subr.bf16.mxu0 0
    %1304 = vmatpush1.bf16.msra.mxu0 0
    %1305 = vmatprep.subr.bf16.mxu0 0
    %1306 = vmatpush1.bf16.msra.mxu0 0
    %1307 = vmatprep.subr.bf16.mxu0 0
    %1308 = vmatpush1.bf16.msra.mxu0 0
    %1309 = vmatprep.subr.bf16.mxu0 0
    %1310 = vmatpush1.bf16.msra.mxu0 0
    %1311 = vmatprep.subr.bf16.mxu0 0
    %1312 = vmatpush1.bf16.msra.mxu0 0
    %1313 = vmatprep.subr.bf16.mxu0 0
    %1314 = vmatpush1.bf16.msra.mxu0 0
    %1315 = vmatprep.subr.bf16.mxu0 0
    %1316 = vmatpush1.bf16.msra.mxu0 0
    %1317 = vmatprep.subr.bf16.mxu0 0
    %1318 = vmatpush1.bf16.msra.mxu0 0
    %1319 = vmatprep.subr.bf16.mxu0 0
    %1320 = vmatpush1.bf16.msra.mxu0 0
    %1321 = vmatprep.subr.bf16.mxu0 0
    %1322 = vmatpush1.bf16.msra.mxu0 0
    %1323 = vmatprep.mubr.bf16.mxu0 0
    %1324 = vmatmul.mubr.bf16.gmra.mrb[0].mxu0 %v1289
    %v1325 = vpop.f32.mrb[0].mxu0
    %v1326 = vadd.f32 %v1275, %v1325
    %v1327 = vpop.f32.mrb[0].mxu0
    %v1328 = vpop.f32.mrb[0].mxu0
    %v1329 = vadd.f32 %v1275, %v1328
    %v1330 = vpop.f32.mrb[0].mxu0
    %1331 = vdwg.mxu0
    %v1332 = vmax.f32 %v1326, 0.0
    %v1333 = vmax.f32 %v1329, 0.0
    %v1334 = vpack.c.bf16 %v1333, %v1332
    %v1335 = vld [vmem:[%s4] sm:$0xf]
    %v1336 = vld [vmem:[%s4 + $0x4] sm:$0xf]
    %v1337 = vld [vmem:[%s4 + $0x8] sm:$0xf]
    %v1338 = vld [vmem:[%s4 + $0xc] sm:$0xf]
    %v1339 = vld [vmem:[%s4 + $0x10] sm:$0xf]
    %v1340 = vld [vmem:[%s4 + $0x14] sm:$0xf]
    %v1341 = vld [vmem:[%s4 + $0x18] sm:$0xf]
    %v1342 = vld [vmem:[%s4 + $0x1c] sm:$0xf]
    %v1343 = vld [vmem:[%s4 + $0x20] sm:$0xf]
    %v1344 = vld [vmem:[%s4 + $0x24] sm:$0xf]
    %v1345 = vld [vmem:[%s4 + $0x28] sm:$0xf]
    %v1346 = vld [vmem:[%s4 + $0x2c] sm:$0xf]
    %v1347 = vld [vmem:[%s4 + $0x30] sm:$0xf]
    %v1348 = vld [vmem:[%s4 + $0x34] sm:$0xf]
    %v1349 = vld [vmem:[%s4 + $0x38] sm:$0xf]
    %v1350 = vld [vmem:[%s4 + $0x3c] sm:$0xf]
    %v1351 = vlaneseq
    %v1352 = vshrl.u32 %v1351, 7
    %v1353 = vsub.s32 4, %v1352
    %v1354 = vrot.slane %v167, %v1353
    %v1371 = vunpack.c.l.b16 %v1335
    %v1372 = vunpack.c.l.b16 %v1336
    %v1373 = vunpack.c.l.b16 %v1337
    %v1374 = vunpack.c.l.b16 %v1338
    %v1375 = vunpack.c.l.b16 %v1339
    %v1376 = vunpack.c.l.b16 %v1340
    %v1377 = vunpack.c.l.b16 %v1341
    %v1378 = vunpack.c.l.b16 %v1342
    %v1379 = vunpack.c.l.b16 %v1343
    %v1380 = vunpack.c.l.b16 %v1344
    %v1381 = vunpack.c.l.b16 %v1345
    %v1382 = vunpack.c.l.b16 %v1346
    %v1383 = vunpack.c.l.b16 %v1347
    %v1384 = vunpack.c.l.b16 %v1348
    %v1385 = vunpack.c.l.b16 %v1349
    %v1386 = vunpack.c.l.b16 %v1350
    %v1387 = vpack.c.b16 %v1372, %v1371
    %v1388 = vpack.c.b16 %v1374, %v1373
    %v1389 = vpack.c.b16 %v1376, %v1375
    %v1390 = vpack.c.b16 %v1378, %v1377
    %v1391 = vpack.c.b16 %v1380, %v1379
    %v1392 = vpack.c.b16 %v1382, %v1381
    %v1393 = vpack.c.b16 %v1384, %v1383
    %v1394 = vpack.c.b16 %v1386, %v1385
    %1403 = vmatprep.subr.bf16.mxu0 0
    %1404 = vmatpush1.bf16.msra.mxu0 %v1387
    %1405 = vmatprep.subr.bf16.mxu0 0
    %1406 = vmatpush1.bf16.msra.mxu0 %v1388
    %1407 = vmatprep.subr.bf16.mxu0 0
    %1408 = vmatpush1.bf16.msra.mxu0 %v1389
    %1409 = vmatprep.subr.bf16.mxu0 0
    %1410 = vmatpush1.bf16.msra.mxu0 %v1390
    %1411 = vmatprep.subr.bf16.mxu0 0
    %1412 = vmatpush1.bf16.msra.mxu0 %v1391
    %1413 = vmatprep.subr.bf16.mxu0 0
    %1414 = vmatpush1.bf16.msra.mxu0 %v1392
    %1415 = vmatprep.subr.bf16.mxu0 0
    %1416 = vmatpush1.bf16.msra.mxu0 %v1393
    %1417 = vmatprep.subr.bf16.mxu0 0
    %1418 = vmatpush1.bf16.msra.mxu0 %v1394
    %1419 = vmatprep.subr.bf16.mxu0 0
    %1420 = vmatpush1.bf16.msra.mxu0 0
    %1421 = vmatprep.subr.bf16.mxu0 0
    %1422 = vmatpush1.bf16.msra.mxu0 0
    %1423 = vmatprep.subr.bf16.mxu0 0
    %1424 = vmatpush1.bf16.msra.mxu0 0
    %1425 = vmatprep.subr.bf16.mxu0 0
    %1426 = vmatpush1.bf16.msra.mxu0 0
    %1427 = vmatprep.subr.bf16.mxu0 0
    %1428 = vmatpush1.bf16.msra.mxu0 0
    %1429 = vmatprep.subr.bf16.mxu0 0
    %1430 = vmatpush1.bf16.msra.mxu0 0
    %1431 = vmatprep.subr.bf16.mxu0 0
    %1432 = vmatpush1.bf16.msra.mxu0 0
    %1433 = vmatprep.subr.bf16.mxu0 0
    %1434 = vmatpush1.bf16.msra.mxu0 0
    %1435 = vmatprep.mubr.bf16.mxu0 0
    %1436 = vmatmul.mubr.bf16.gmra.mrb[0].mxu0 %v1334
    %v1437 = vpop.f32.mrb[0].mxu0
    %v1438 = vadd.f32 %v1354, %v1437
    %v1439 = vpop.f32.mrb[0].mxu0
    %v1440 = vpop.f32.mrb[0].mxu0
    %v1441 = vadd.f32 %v1354, %v1440
    %v1442 = vpop.f32.mrb[0].mxu0
    %1443 = vdwg.mxu0
    %v1444 = vadd.f32 %v1438, %v1265
    %v1445 = vadd.f32 %v1441, %v1266
    %v1446 = vsel %vm185, %v1444, 0.0
    %1447 = vadd.xlane.f32.xlu0 %v1446
    %v1448 = vpop.xlane.xlu0 %1447
    %v1449 = vsel %vm185, %v1445, 0.0
    %1450 = vadd.xlane.f32.xlu0 %v1449
    %v1451 = vpop.xlane.xlu0 %1450
    %v1452 = vmul.f32 %v1448, %v1234
    %v1453 = vmul.f32 %v1451, %v1234
    %v1454 = vsub.f32 %v1444, %v1452
    %v1455 = vsub.f32 %v1445, %v1453
    %v1456 = vmul.f32 %v1454, %v1454
    %v1457 = vmul.f32 %v1455, %v1455
    %v1458 = vsel %vm185, %v1456, 0.0
    %1459 = vadd.xlane.f32.xlu0 %v1458
    %v1460 = vpop.xlane.xlu0 %1459
    %v1461 = vsel %vm185, %v1457, 0.0
    %1462 = vadd.xlane.f32.xlu0 %v1461
    %v1463 = vpop.xlane.xlu0 %1462
    %v1464 = vmul.f32 %v1460, %v1234
    %v1465 = vmul.f32 %v1463, %v1234
    %v1466 = vadd.f32 %v1464, 1e-05
    %v1467 = vadd.f32 %v1465, 1e-05
    %v1468 = vrsqrt.pop %v1466
    %v1469 = vrsqrt.pop %v1467
    %v1470 = vmul.f32 %v1454, %v1468
    %v1471 = vmul.f32 %v1455, %v1469
    %v1472 = vlaneseq
    %v1473 = vshrl.u32 %v1472, 7
    %v1474 = vsub.s32 5, %v1473
    %v1475 = vrot.slane %v167, %v1474
    %v1476 = vmul.f32 %v1470, %v1475
    %v1477 = vmul.f32 %v1471, %v1475
    %v1478 = vlaneseq
    %v1479 = vshrl.u32 %v1478, 7
    %v1480 = vsub.s32 6, %v1479
    %v1481 = vrot.slane %v167, %v1480
    %v1482 = vadd.f32 %v1476, %v1481
    %v1483 = vadd.f32 %v1477, %v1481
    %s1484 = scalar_lea.vmem %s5, 8
    %v1485 = vld [vmem:[%s1484] sm:$0x7f]
    %v1486 = vpack.c.bf16 %v1483, %v1482
    %s1487 = scalar_lea.vmem %s1, 16
    %v1488 = vld [vmem:[%s1487] sm:$0xf]
    %v1489 = vld [vmem:[%s1487 + $0x4] sm:$0xf]
    %v1490 = vld [vmem:[%s1487 + $0x8] sm:$0xf]
    %v1491 = vld [vmem:[%s1487 + $0xc] sm:$0xf]
    %v1496 = vunpack.c.l.b16 %v1488
    %v1497 = vunpack.c.l.b16 %v1489
    %v1498 = vunpack.c.l.b16 %v1490
    %v1499 = vunpack.c.l.b16 %v1491
    %v1500 = vpack.c.b16 %v1497, %v1496
    %v1501 = vpack.c.b16 %v1499, %v1498
    %v1505 = vsel %vm185, %v1486, 0
    %1507 = vmatprep.subr.bf16.mxu0 0
    %1508 = vmatpush1.bf16.msra.mxu0 %v1500
    %1509 = vmatprep.subr.bf16.mxu0 0
    %1510 = vmatpush1.bf16.msra.mxu0 %v1501
    %1511 = vmatprep.subr.bf16.mxu0 0
    %1512 = vmatpush1.bf16.msra.mxu0 0
    %1513 = vmatprep.subr.bf16.mxu0 0
    %1514 = vmatpush1.bf16.msra.mxu0 0
    %1515 = vmatprep.subr.bf16.mxu0 0
    %1516 = vmatpush1.bf16.msra.mxu0 0
    %1517 = vmatprep.subr.bf16.mxu0 0
    %1518 = vmatpush1.bf16.msra.mxu0 0
    %1519 = vmatprep.subr.bf16.mxu0 0
    %1520 = vmatpush1.bf16.msra.mxu0 0
    %1521 = vmatprep.subr.bf16.mxu0 0
    %1522 = vmatpush1.bf16.msra.mxu0 0
    %1523 = vmatprep.subr.bf16.mxu0 0
    %1524 = vmatpush1.bf16.msra.mxu0 0
    %1525 = vmatprep.subr.bf16.mxu0 0
    %1526 = vmatpush1.bf16.msra.mxu0 0
    %1527 = vmatprep.subr.bf16.mxu0 0
    %1528 = vmatpush1.bf16.msra.mxu0 0
    %1529 = vmatprep.subr.bf16.mxu0 0
    %1530 = vmatpush1.bf16.msra.mxu0 0
    %1531 = vmatprep.subr.bf16.mxu0 0
    %1532 = vmatpush1.bf16.msra.mxu0 0
    %1533 = vmatprep.subr.bf16.mxu0 0
    %1534 = vmatpush1.bf16.msra.mxu0 0
    %1535 = vmatprep.subr.bf16.mxu0 0
    %1536 = vmatpush1.bf16.msra.mxu0 0
    %1537 = vmatprep.subr.bf16.mxu0 0
    %1538 = vmatpush1.bf16.msra.mxu0 0
    %1539 = vmatprep.mubr.bf16.mxu0 0
    %1540 = vmatmul.mubr.bf16.gmra.mrb[0].mxu0 %v1505
    %v1541 = vpop.f32.mrb[0].mxu0
    %v1542 = vadd.f32 0.0, %v1541
    %v1543 = vpop.f32.mrb[0].mxu0
    %v1544 = vpop.f32.mrb[0].mxu0
    %v1545 = vadd.f32 0.0, %v1544
    %v1546 = vpop.f32.mrb[0].mxu0
    %1547 = vdwg.mxu0
    %1550 = vrot.lane.b32.xlu0 %v1542, 120
    %v1551 = vpop.permute.xlu0 %1550
    %1552 = vrot.lane.b32.xlu0 %v1545, 120
    %v1553 = vpop.permute.xlu0 %1552
    %1556 = vrot.lane.b32.xlu0 %v1542, 112
    %v1557 = vpop.permute.xlu0 %1556
    %1558 = vrot.lane.b32.xlu0 %v1545, 112
    %v1559 = vpop.permute.xlu0 %1558
    %1562 = vrot.lane.b32.xlu0 %v1542, 104
    %v1563 = vpop.permute.xlu0 %1562
    %1564 = vrot.lane.b32.xlu0 %v1545, 104
    %v1565 = vpop.permute.xlu0 %1564
    %v1568 = vpack.c.bf16 %v1542, %v1542
    %v1569 = vpack.c.bf16 %v1545, %v1545
    %v1570 = vpack.c.bf16 %v1551, %v1551
    %v1571 = vpack.c.bf16 %v1553, %v1553
    %v1572 = vpack.c.bf16 %v1557, %v1557
    %v1573 = vpack.c.bf16 %v1559, %v1559
    %v1574 = vpack.c.bf16 %v1563, %v1563
    %v1575 = vpack.c.bf16 %v1565, %v1565
    %1577 = vrot.lane.b32.xlu0 %v1568, 96
    %v1578 = vpop.permute.xlu0 %1577
    %v1580 = vsel %vm143, %v1568, 0
    %v1583 = vsel %vm143, %v1578, 0
    %1585 = vmatprep.subr.bf16.mxu0 0
    %1586 = vmatpush1.bf16.xpose.msra.mxu0 %v1583
    %1587 = vmatprep.subr.bf16.mxu0 0
    %1588 = vmatpush1.bf16.xpose.msra.mxu0 0
    %1589 = vmatprep.subr.bf16.mxu0 0
    %1590 = vmatpush1.bf16.xpose.msra.mxu0 0
    %1591 = vmatprep.subr.bf16.mxu0 0
    %1592 = vmatpush1.bf16.xpose.msra.mxu0 0
    %1593 = vmatprep.subr.bf16.mxu0 0
    %1594 = vmatpush1.bf16.xpose.msra.mxu0 0
    %1595 = vmatprep.subr.bf16.mxu0 0
    %1596 = vmatpush1.bf16.xpose.msra.mxu0 0
    %1597 = vmatprep.subr.bf16.mxu0 0
    %1598 = vmatpush1.bf16.xpose.msra.mxu0 0
    %1599 = vmatprep.subr.bf16.mxu0 0
    %1600 = vmatpush1.bf16.xpose.msra.mxu0 0
    %1601 = vmatprep.subr.bf16.mxu0 0
    %1602 = vmatpush1.bf16.xpose.msra.mxu0 0
    %1603 = vmatprep.subr.bf16.mxu0 0
    %1604 = vmatpush1.bf16.xpose.msra.mxu0 0
    %1605 = vmatprep.subr.bf16.mxu0 0
    %1606 = vmatpush1.bf16.xpose.msra.mxu0 0
    %1607 = vmatprep.subr.bf16.mxu0 0
    %1608 = vmatpush1.bf16.xpose.msra.mxu0 0
    %1609 = vmatprep.subr.bf16.mxu0 0
    %1610 = vmatpush1.bf16.xpose.msra.mxu0 0
    %1611 = vmatprep.subr.bf16.mxu0 0
    %1612 = vmatpush1.bf16.xpose.msra.mxu0 0
    %1613 = vmatprep.subr.bf16.mxu0 0
    %1614 = vmatpush1.bf16.xpose.msra.mxu0 0
    %1615 = vmatprep.subr.bf16.mxu0 0
    %1616 = vmatpush1.bf16.xpose.msra.mxu0 0
    %1617 = vmatprep.mubr.bf16.mxu0 0
    %1618 = vmatmul.mubr.bf16.gmra.mrb[0].mxu0 %v1580
    %v1619 = vpop.f32.mrb[0].mxu0
    %v1620 = vadd.f32 0.0, %v1619
    %v1621 = vpop.f32.mrb[0].mxu0
    %v1622 = vpop.f32.mrb[0].mxu0
    %v1623 = vpop.f32.mrb[0].mxu0
    %1624 = vdwg.mxu0
    %1626 = vrot.lane.b32.xlu0 %v1569, 96
    %v1627 = vpop.permute.xlu0 %1626
    %v1629 = vsel %vm143, %v1569, 0
    %v1632 = vsel %vm143, %v1627, 0
    %1634 = vmatprep.subr.bf16.mxu0 0
    %1635 = vmatpush1.bf16.xpose.msra.mxu0 %v1632
    %1636 = vmatprep.subr.bf16.mxu0 0
    %1637 = vmatpush1.bf16.xpose.msra.mxu0 0
    %1638 = vmatprep.subr.bf16.mxu0 0
    %1639 = vmatpush1.bf16.xpose.msra.mxu0 0
    %1640 = vmatprep.subr.bf16.mxu0 0
    %1641 = vmatpush1.bf16.xpose.msra.mxu0 0
    %1642 = vmatprep.subr.bf16.mxu0 0
    %1643 = vmatpush1.bf16.xpose.msra.mxu0 0
    %1644 = vmatprep.subr.bf16.mxu0 0
    %1645 = vmatpush1.bf16.xpose.msra.mxu0 0
    %1646 = vmatprep.subr.bf16.mxu0 0
    %1647 = vmatpush1.bf16.xpose.msra.mxu0 0
    %1648 = vmatprep.subr.bf16.mxu0 0
    %1649 = vmatpush1.bf16.xpose.msra.mxu0 0
    %1650 = vmatprep.subr.bf16.mxu0 0
    %1651 = vmatpush1.bf16.xpose.msra.mxu0 0
    %1652 = vmatprep.subr.bf16.mxu0 0
    %1653 = vmatpush1.bf16.xpose.msra.mxu0 0
    %1654 = vmatprep.subr.bf16.mxu0 0
    %1655 = vmatpush1.bf16.xpose.msra.mxu0 0
    %1656 = vmatprep.subr.bf16.mxu0 0
    %1657 = vmatpush1.bf16.xpose.msra.mxu0 0
    %1658 = vmatprep.subr.bf16.mxu0 0
    %1659 = vmatpush1.bf16.xpose.msra.mxu0 0
    %1660 = vmatprep.subr.bf16.mxu0 0
    %1661 = vmatpush1.bf16.xpose.msra.mxu0 0
    %1662 = vmatprep.subr.bf16.mxu0 0
    %1663 = vmatpush1.bf16.xpose.msra.mxu0 0
    %1664 = vmatprep.subr.bf16.mxu0 0
    %1665 = vmatpush1.bf16.xpose.msra.mxu0 0
    %1666 = vmatprep.mubr.bf16.mxu0 0
    %1667 = vmatmul.mubr.bf16.gmra.mrb[0].mxu0 %v1629
    %v1668 = vpop.f32.mrb[0].mxu0
    %v1669 = vadd.f32 0.0, %v1668
    %v1670 = vpop.f32.mrb[0].mxu0
    %v1671 = vpop.f32.mrb[0].mxu0
    %v1672 = vpop.f32.mrb[0].mxu0
    %1673 = vdwg.mxu0
    %1675 = vrot.lane.b32.xlu0 %v1570, 96
    %v1676 = vpop.permute.xlu0 %1675
    %v1678 = vsel %vm143, %v1570, 0
    %v1681 = vsel %vm143, %v1676, 0
    %1683 = vmatprep.subr.bf16.mxu0 0
    %1684 = vmatpush1.bf16.xpose.msra.mxu0 %v1681
    %1685 = vmatprep.subr.bf16.mxu0 0
    %1686 = vmatpush1.bf16.xpose.msra.mxu0 0
    %1687 = vmatprep.subr.bf16.mxu0 0
    %1688 = vmatpush1.bf16.xpose.msra.mxu0 0
    %1689 = vmatprep.subr.bf16.mxu0 0
    %1690 = vmatpush1.bf16.xpose.msra.mxu0 0
    %1691 = vmatprep.subr.bf16.mxu0 0
    %1692 = vmatpush1.bf16.xpose.msra.mxu0 0
    %1693 = vmatprep.subr.bf16.mxu0 0
    %1694 = vmatpush1.bf16.xpose.msra.mxu0 0
    %1695 = vmatprep.subr.bf16.mxu0 0
    %1696 = vmatpush1.bf16.xpose.msra.mxu0 0
    %1697 = vmatprep.subr.bf16.mxu0 0
    %1698 = vmatpush1.bf16.xpose.msra.mxu0 0
    %1699 = vmatprep.subr.bf16.mxu0 0
    %1700 = vmatpush1.bf16.xpose.msra.mxu0 0
    %1701 = vmatprep.subr.bf16.mxu0 0
    %1702 = vmatpush1.bf16.xpose.msra.mxu0 0
    %1703 = vmatprep.subr.bf16.mxu0 0
    %1704 = vmatpush1.bf16.xpose.msra.mxu0 0
    %1705 = vmatprep.subr.bf16.mxu0 0
    %1706 = vmatpush1.bf16.xpose.msra.mxu0 0
    %1707 = vmatprep.subr.bf16.mxu0 0
    %1708 = vmatpush1.bf16.xpose.msra.mxu0 0
    %1709 = vmatprep.subr.bf16.mxu0 0
    %1710 = vmatpush1.bf16.xpose.msra.mxu0 0
    %1711 = vmatprep.subr.bf16.mxu0 0
    %1712 = vmatpush1.bf16.xpose.msra.mxu0 0
    %1713 = vmatprep.subr.bf16.mxu0 0
    %1714 = vmatpush1.bf16.xpose.msra.mxu0 0
    %1715 = vmatprep.mubr.bf16.mxu0 0
    %1716 = vmatmul.mubr.bf16.gmra.mrb[0].mxu0 %v1678
    %v1717 = vpop.f32.mrb[0].mxu0
    %v1718 = vadd.f32 0.0, %v1717
    %v1719 = vpop.f32.mrb[0].mxu0
    %v1720 = vpop.f32.mrb[0].mxu0
    %v1721 = vpop.f32.mrb[0].mxu0
    %1722 = vdwg.mxu0
    %1724 = vrot.lane.b32.xlu0 %v1571, 96
    %v1725 = vpop.permute.xlu0 %1724
    %v1727 = vsel %vm143, %v1571, 0
    %v1730 = vsel %vm143, %v1725, 0
    %1732 = vmatprep.subr.bf16.mxu0 0
    %1733 = vmatpush1.bf16.xpose.msra.mxu0 %v1730
    %1734 = vmatprep.subr.bf16.mxu0 0
    %1735 = vmatpush1.bf16.xpose.msra.mxu0 0
    %1736 = vmatprep.subr.bf16.mxu0 0
    %1737 = vmatpush1.bf16.xpose.msra.mxu0 0
    %1738 = vmatprep.subr.bf16.mxu0 0
    %1739 = vmatpush1.bf16.xpose.msra.mxu0 0
    %1740 = vmatprep.subr.bf16.mxu0 0
    %1741 = vmatpush1.bf16.xpose.msra.mxu0 0
    %1742 = vmatprep.subr.bf16.mxu0 0
    %1743 = vmatpush1.bf16.xpose.msra.mxu0 0
    %1744 = vmatprep.subr.bf16.mxu0 0
    %1745 = vmatpush1.bf16.xpose.msra.mxu0 0
    %1746 = vmatprep.subr.bf16.mxu0 0
    %1747 = vmatpush1.bf16.xpose.msra.mxu0 0
    %1748 = vmatprep.subr.bf16.mxu0 0
    %1749 = vmatpush1.bf16.xpose.msra.mxu0 0
    %1750 = vmatprep.subr.bf16.mxu0 0
    %1751 = vmatpush1.bf16.xpose.msra.mxu0 0
    %1752 = vmatprep.subr.bf16.mxu0 0
    %1753 = vmatpush1.bf16.xpose.msra.mxu0 0
    %1754 = vmatprep.subr.bf16.mxu0 0
    %1755 = vmatpush1.bf16.xpose.msra.mxu0 0
    %1756 = vmatprep.subr.bf16.mxu0 0
    %1757 = vmatpush1.bf16.xpose.msra.mxu0 0
    %1758 = vmatprep.subr.bf16.mxu0 0
    %1759 = vmatpush1.bf16.xpose.msra.mxu0 0
    %1760 = vmatprep.subr.bf16.mxu0 0
    %1761 = vmatpush1.bf16.xpose.msra.mxu0 0
    %1762 = vmatprep.subr.bf16.mxu0 0
    %1763 = vmatpush1.bf16.xpose.msra.mxu0 0
    %1764 = vmatprep.mubr.bf16.mxu0 0
    %1765 = vmatmul.mubr.bf16.gmra.mrb[0].mxu0 %v1727
    %v1766 = vpop.f32.mrb[0].mxu0
    %v1767 = vadd.f32 0.0, %v1766
    %v1768 = vpop.f32.mrb[0].mxu0
    %v1769 = vpop.f32.mrb[0].mxu0
    %v1770 = vpop.f32.mrb[0].mxu0
    %1771 = vdwg.mxu0
    %1773 = vrot.lane.b32.xlu0 %v1572, 96
    %v1774 = vpop.permute.xlu0 %1773
    %v1776 = vsel %vm143, %v1572, 0
    %v1779 = vsel %vm143, %v1774, 0
    %1781 = vmatprep.subr.bf16.mxu0 0
    %1782 = vmatpush1.bf16.xpose.msra.mxu0 %v1779
    %1783 = vmatprep.subr.bf16.mxu0 0
    %1784 = vmatpush1.bf16.xpose.msra.mxu0 0
    %1785 = vmatprep.subr.bf16.mxu0 0
    %1786 = vmatpush1.bf16.xpose.msra.mxu0 0
    %1787 = vmatprep.subr.bf16.mxu0 0
    %1788 = vmatpush1.bf16.xpose.msra.mxu0 0
    %1789 = vmatprep.subr.bf16.mxu0 0
    %1790 = vmatpush1.bf16.xpose.msra.mxu0 0
    %1791 = vmatprep.subr.bf16.mxu0 0
    %1792 = vmatpush1.bf16.xpose.msra.mxu0 0
    %1793 = vmatprep.subr.bf16.mxu0 0
    %1794 = vmatpush1.bf16.xpose.msra.mxu0 0
    %1795 = vmatprep.subr.bf16.mxu0 0
    %1796 = vmatpush1.bf16.xpose.msra.mxu0 0
    %1797 = vmatprep.subr.bf16.mxu0 0
    %1798 = vmatpush1.bf16.xpose.msra.mxu0 0
    %1799 = vmatprep.subr.bf16.mxu0 0
    %1800 = vmatpush1.bf16.xpose.msra.mxu0 0
    %1801 = vmatprep.subr.bf16.mxu0 0
    %1802 = vmatpush1.bf16.xpose.msra.mxu0 0
    %1803 = vmatprep.subr.bf16.mxu0 0
    %1804 = vmatpush1.bf16.xpose.msra.mxu0 0
    %1805 = vmatprep.subr.bf16.mxu0 0
    %1806 = vmatpush1.bf16.xpose.msra.mxu0 0
    %1807 = vmatprep.subr.bf16.mxu0 0
    %1808 = vmatpush1.bf16.xpose.msra.mxu0 0
    %1809 = vmatprep.subr.bf16.mxu0 0
    %1810 = vmatpush1.bf16.xpose.msra.mxu0 0
    %1811 = vmatprep.subr.bf16.mxu0 0
    %1812 = vmatpush1.bf16.xpose.msra.mxu0 0
    %1813 = vmatprep.mubr.bf16.mxu0 0
    %1814 = vmatmul.mubr.bf16.gmra.mrb[0].mxu0 %v1776
    %v1815 = vpop.f32.mrb[0].mxu0
    %v1816 = vadd.f32 0.0, %v1815
    %v1817 = vpop.f32.mrb[0].mxu0
    %v1818 = vpop.f32.mrb[0].mxu0
    %v1819 = vpop.f32.mrb[0].mxu0
    %1820 = vdwg.mxu0
    %1822 = vrot.lane.b32.xlu0 %v1573, 96
    %v1823 = vpop.permute.xlu0 %1822
    %v1825 = vsel %vm143, %v1573, 0
    %v1828 = vsel %vm143, %v1823, 0
    %1830 = vmatprep.subr.bf16.mxu0 0
    %1831 = vmatpush1.bf16.xpose.msra.mxu0 %v1828
    %1832 = vmatprep.subr.bf16.mxu0 0
    %1833 = vmatpush1.bf16.xpose.msra.mxu0 0
    %1834 = vmatprep.subr.bf16.mxu0 0
    %1835 = vmatpush1.bf16.xpose.msra.mxu0 0
    %1836 = vmatprep.subr.bf16.mxu0 0
    %1837 = vmatpush1.bf16.xpose.msra.mxu0 0
    %1838 = vmatprep.subr.bf16.mxu0 0
    %1839 = vmatpush1.bf16.xpose.msra.mxu0 0
    %1840 = vmatprep.subr.bf16.mxu0 0
    %1841 = vmatpush1.bf16.xpose.msra.mxu0 0
    %1842 = vmatprep.subr.bf16.mxu0 0
    %1843 = vmatpush1.bf16.xpose.msra.mxu0 0
    %1844 = vmatprep.subr.bf16.mxu0 0
    %1845 = vmatpush1.bf16.xpose.msra.mxu0 0
    %1846 = vmatprep.subr.bf16.mxu0 0
    %1847 = vmatpush1.bf16.xpose.msra.mxu0 0
    %1848 = vmatprep.subr.bf16.mxu0 0
    %1849 = vmatpush1.bf16.xpose.msra.mxu0 0
    %1850 = vmatprep.subr.bf16.mxu0 0
    %1851 = vmatpush1.bf16.xpose.msra.mxu0 0
    %1852 = vmatprep.subr.bf16.mxu0 0
    %1853 = vmatpush1.bf16.xpose.msra.mxu0 0
    %1854 = vmatprep.subr.bf16.mxu0 0
    %1855 = vmatpush1.bf16.xpose.msra.mxu0 0
    %1856 = vmatprep.subr.bf16.mxu0 0
    %1857 = vmatpush1.bf16.xpose.msra.mxu0 0
    %1858 = vmatprep.subr.bf16.mxu0 0
    %1859 = vmatpush1.bf16.xpose.msra.mxu0 0
    %1860 = vmatprep.subr.bf16.mxu0 0
    %1861 = vmatpush1.bf16.xpose.msra.mxu0 0
    %1862 = vmatprep.mubr.bf16.mxu0 0
    %1863 = vmatmul.mubr.bf16.gmra.mrb[0].mxu0 %v1825
    %v1864 = vpop.f32.mrb[0].mxu0
    %v1865 = vadd.f32 0.0, %v1864
    %v1866 = vpop.f32.mrb[0].mxu0
    %v1867 = vpop.f32.mrb[0].mxu0
    %v1868 = vpop.f32.mrb[0].mxu0
    %1869 = vdwg.mxu0
    %1871 = vrot.lane.b32.xlu0 %v1574, 96
    %v1872 = vpop.permute.xlu0 %1871
    %v1874 = vsel %vm143, %v1574, 0
    %v1877 = vsel %vm143, %v1872, 0
    %1879 = vmatprep.subr.bf16.mxu0 0
    %1880 = vmatpush1.bf16.xpose.msra.mxu0 %v1877
    %1881 = vmatprep.subr.bf16.mxu0 0
    %1882 = vmatpush1.bf16.xpose.msra.mxu0 0
    %1883 = vmatprep.subr.bf16.mxu0 0
    %1884 = vmatpush1.bf16.xpose.msra.mxu0 0
    %1885 = vmatprep.subr.bf16.mxu0 0
    %1886 = vmatpush1.bf16.xpose.msra.mxu0 0
    %1887 = vmatprep.subr.bf16.mxu0 0
    %1888 = vmatpush1.bf16.xpose.msra.mxu0 0
    %1889 = vmatprep.subr.bf16.mxu0 0
    %1890 = vmatpush1.bf16.xpose.msra.mxu0 0
    %1891 = vmatprep.subr.bf16.mxu0 0
    %1892 = vmatpush1.bf16.xpose.msra.mxu0 0
    %1893 = vmatprep.subr.bf16.mxu0 0
    %1894 = vmatpush1.bf16.xpose.msra.mxu0 0
    %1895 = vmatprep.subr.bf16.mxu0 0
    %1896 = vmatpush1.bf16.xpose.msra.mxu0 0
    %1897 = vmatprep.subr.bf16.mxu0 0
    %1898 = vmatpush1.bf16.xpose.msra.mxu0 0
    %1899 = vmatprep.subr.bf16.mxu0 0
    %1900 = vmatpush1.bf16.xpose.msra.mxu0 0
    %1901 = vmatprep.subr.bf16.mxu0 0
    %1902 = vmatpush1.bf16.xpose.msra.mxu0 0
    %1903 = vmatprep.subr.bf16.mxu0 0
    %1904 = vmatpush1.bf16.xpose.msra.mxu0 0
    %1905 = vmatprep.subr.bf16.mxu0 0
    %1906 = vmatpush1.bf16.xpose.msra.mxu0 0
    %1907 = vmatprep.subr.bf16.mxu0 0
    %1908 = vmatpush1.bf16.xpose.msra.mxu0 0
    %1909 = vmatprep.subr.bf16.mxu0 0
    %1910 = vmatpush1.bf16.xpose.msra.mxu0 0
    %1911 = vmatprep.mubr.bf16.mxu0 0
    %1912 = vmatmul.mubr.bf16.gmra.mrb[0].mxu0 %v1874
    %v1913 = vpop.f32.mrb[0].mxu0
    %v1914 = vadd.f32 0.0, %v1913
    %v1915 = vpop.f32.mrb[0].mxu0
    %v1916 = vpop.f32.mrb[0].mxu0
    %v1917 = vpop.f32.mrb[0].mxu0
    %1918 = vdwg.mxu0
    %1920 = vrot.lane.b32.xlu0 %v1575, 96
    %v1921 = vpop.permute.xlu0 %1920
    %v1923 = vsel %vm143, %v1575, 0
    %v1926 = vsel %vm143, %v1921, 0
    %1928 = vmatprep.subr.bf16.mxu0 0
    %1929 = vmatpush1.bf16.xpose.msra.mxu0 %v1926
    %1930 = vmatprep.subr.bf16.mxu0 0
    %1931 = vmatpush1.bf16.xpose.msra.mxu0 0
    %1932 = vmatprep.subr.bf16.mxu0 0
    %1933 = vmatpush1.bf16.xpose.msra.mxu0 0
    %1934 = vmatprep.subr.bf16.mxu0 0
    %1935 = vmatpush1.bf16.xpose.msra.mxu0 0
    %1936 = vmatprep.subr.bf16.mxu0 0
    %1937 = vmatpush1.bf16.xpose.msra.mxu0 0
    %1938 = vmatprep.subr.bf16.mxu0 0
    %1939 = vmatpush1.bf16.xpose.msra.mxu0 0
    %1940 = vmatprep.subr.bf16.mxu0 0
    %1941 = vmatpush1.bf16.xpose.msra.mxu0 0
    %1942 = vmatprep.subr.bf16.mxu0 0
    %1943 = vmatpush1.bf16.xpose.msra.mxu0 0
    %1944 = vmatprep.subr.bf16.mxu0 0
    %1945 = vmatpush1.bf16.xpose.msra.mxu0 0
    %1946 = vmatprep.subr.bf16.mxu0 0
    %1947 = vmatpush1.bf16.xpose.msra.mxu0 0
    %1948 = vmatprep.subr.bf16.mxu0 0
    %1949 = vmatpush1.bf16.xpose.msra.mxu0 0
    %1950 = vmatprep.subr.bf16.mxu0 0
    %1951 = vmatpush1.bf16.xpose.msra.mxu0 0
    %1952 = vmatprep.subr.bf16.mxu0 0
    %1953 = vmatpush1.bf16.xpose.msra.mxu0 0
    %1954 = vmatprep.subr.bf16.mxu0 0
    %1955 = vmatpush1.bf16.xpose.msra.mxu0 0
    %1956 = vmatprep.subr.bf16.mxu0 0
    %1957 = vmatpush1.bf16.xpose.msra.mxu0 0
    %1958 = vmatprep.subr.bf16.mxu0 0
    %1959 = vmatpush1.bf16.xpose.msra.mxu0 0
    %1960 = vmatprep.mubr.bf16.mxu0 0
    %1961 = vmatmul.mubr.bf16.gmra.mrb[0].mxu0 %v1923
    %v1962 = vpop.f32.mrb[0].mxu0
    %v1963 = vadd.f32 0.0, %v1962
    %v1964 = vpop.f32.mrb[0].mxu0
    %v1965 = vpop.f32.mrb[0].mxu0
    %v1966 = vpop.f32.mrb[0].mxu0
    %1967 = vdwg.mxu0
    %v1968 = vsel %vm143, %v1620, -inf
    %1969 = vmax.xlane.f32.xlu0 %v1968
    %v1970 = vpop.xlane.xlu0 %1969
    %v1971 = vsel %vm143, %v1669, -inf
    %1972 = vmax.xlane.f32.xlu0 %v1971
    %v1973 = vpop.xlane.xlu0 %1972
    %v1974 = vsel %vm143, %v1718, -inf
    %1975 = vmax.xlane.f32.xlu0 %v1974
    %v1976 = vpop.xlane.xlu0 %1975
    %v1977 = vsel %vm143, %v1767, -inf
    %1978 = vmax.xlane.f32.xlu0 %v1977
    %v1979 = vpop.xlane.xlu0 %1978
    %v1980 = vsel %vm143, %v1816, -inf
    %1981 = vmax.xlane.f32.xlu0 %v1980
    %v1982 = vpop.xlane.xlu0 %1981
    %v1983 = vsel %vm143, %v1865, -inf
    %1984 = vmax.xlane.f32.xlu0 %v1983
    %v1985 = vpop.xlane.xlu0 %1984
    %v1986 = vsel %vm143, %v1914, -inf
    %1987 = vmax.xlane.f32.xlu0 %v1986
    %v1988 = vpop.xlane.xlu0 %1987
    %v1989 = vsel %vm143, %v1963, -inf
    %1990 = vmax.xlane.f32.xlu0 %v1989
    %v1991 = vpop.xlane.xlu0 %1990
    %v1992 = vsub.f32 %v1620, %v1970
    %v1993 = vsub.f32 %v1669, %v1973
    %v1994 = vsub.f32 %v1718, %v1976
    %v1995 = vsub.f32 %v1767, %v1979
    %v1996 = vsub.f32 %v1816, %v1982
    %v1997 = vsub.f32 %v1865, %v1985
    %v1998 = vsub.f32 %v1914, %v1988
    %v1999 = vsub.f32 %v1963, %v1991
    %v2000 = vmul.f32 %v1992, 1.442695
    %v2001 = vpow.pop %v2000
    %v2002 = vmul.f32 %v1993, 1.442695
    %v2003 = vpow.pop %v2002
    %v2004 = vmul.f32 %v1994, 1.442695
    %v2005 = vpow.pop %v2004
    %v2006 = vmul.f32 %v1995, 1.442695
    %v2007 = vpow.pop %v2006
    %v2008 = vmul.f32 %v1996, 1.442695
    %v2009 = vpow.pop %v2008
    %v2010 = vmul.f32 %v1997, 1.442695
    %v2011 = vpow.pop %v2010
    %v2012 = vmul.f32 %v1998, 1.442695
    %v2013 = vpow.pop %v2012
    %v2014 = vmul.f32 %v1999, 1.442695
    %v2015 = vpow.pop %v2014
    %v2016 = vsel %vm143, %v2001, 0.0
    %2017 = vadd.xlane.f32.xlu0 %v2016
    %v2018 = vpop.xlane.xlu0 %2017
    %v2019 = vsel %vm143, %v2003, 0.0
    %2020 = vadd.xlane.f32.xlu0 %v2019
    %v2021 = vpop.xlane.xlu0 %2020
    %v2022 = vsel %vm143, %v2005, 0.0
    %2023 = vadd.xlane.f32.xlu0 %v2022
    %v2024 = vpop.xlane.xlu0 %2023
    %v2025 = vsel %vm143, %v2007, 0.0
    %2026 = vadd.xlane.f32.xlu0 %v2025
    %v2027 = vpop.xlane.xlu0 %2026
    %v2028 = vsel %vm143, %v2009, 0.0
    %2029 = vadd.xlane.f32.xlu0 %v2028
    %v2030 = vpop.xlane.xlu0 %2029
    %v2031 = vsel %vm143, %v2011, 0.0
    %2032 = vadd.xlane.f32.xlu0 %v2031
    %v2033 = vpop.xlane.xlu0 %2032
    %v2034 = vsel %vm143, %v2013, 0.0
    %2035 = vadd.xlane.f32.xlu0 %v2034
    %v2036 = vpop.xlane.xlu0 %2035
    %v2037 = vsel %vm143, %v2015, 0.0
    %2038 = vadd.xlane.f32.xlu0 %v2037
    %v2039 = vpop.xlane.xlu0 %2038
    %v2040 = vrcp.pop %v2018
    %v2041 = vrcp.pop %v2021
    %v2042 = vrcp.pop %v2024
    %v2043 = vrcp.pop %v2027
    %v2044 = vrcp.pop %v2030
    %v2045 = vrcp.pop %v2033
    %v2046 = vrcp.pop %v2036
    %v2047 = vrcp.pop %v2039
    %v2048 = vmul.f32 %v2001, %v2040
    %v2049 = vmul.f32 %v2003, %v2041
    %v2050 = vmul.f32 %v2005, %v2042
    %v2051 = vmul.f32 %v2007, %v2043
    %v2052 = vmul.f32 %v2009, %v2044
    %v2053 = vmul.f32 %v2011, %v2045
    %v2054 = vmul.f32 %v2013, %v2046
    %v2055 = vmul.f32 %v2015, %v2047
    %v2056 = vpack.c.bf16 %v2048, %v2048
    %v2057 = vpack.c.bf16 %v2049, %v2049
    %v2058 = vpack.c.bf16 %v2050, %v2050
    %v2059 = vpack.c.bf16 %v2051, %v2051
    %v2060 = vpack.c.bf16 %v2052, %v2052
    %v2061 = vpack.c.bf16 %v2053, %v2053
    %v2062 = vpack.c.bf16 %v2054, %v2054
    %v2063 = vpack.c.bf16 %v2055, %v2055
    %2064 = vrot.lane.b32.xlu0 %v1568, 64
    %v2065 = vpop.permute.xlu0 %2064
    %v2067 = vsel %vm143, %v2056, 0
    %v2070 = vsel %vm751, %v2065, 0
    %2072 = vmatprep.subr.bf16.mxu0 0
    %2073 = vmatpush1.bf16.msra.mxu0 %v2070
    %2074 = vmatprep.subr.bf16.mxu0 0
    %2075 = vmatpush1.bf16.msra.mxu0 0
    %2076 = vmatprep.subr.bf16.mxu0 0
    %2077 = vmatpush1.bf16.msra.mxu0 0
    %2078 = vmatprep.subr.bf16.mxu0 0
    %2079 = vmatpush1.bf16.msra.mxu0 0
    %2080 = vmatprep.subr.bf16.mxu0 0
    %2081 = vmatpush1.bf16.msra.mxu0 0
    %2082 = vmatprep.subr.bf16.mxu0 0
    %2083 = vmatpush1.bf16.msra.mxu0 0
    %2084 = vmatprep.subr.bf16.mxu0 0
    %2085 = vmatpush1.bf16.msra.mxu0 0
    %2086 = vmatprep.subr.bf16.mxu0 0
    %2087 = vmatpush1.bf16.msra.mxu0 0
    %2088 = vmatprep.subr.bf16.mxu0 0
    %2089 = vmatpush1.bf16.msra.mxu0 0
    %2090 = vmatprep.subr.bf16.mxu0 0
    %2091 = vmatpush1.bf16.msra.mxu0 0
    %2092 = vmatprep.subr.bf16.mxu0 0
    %2093 = vmatpush1.bf16.msra.mxu0 0
    %2094 = vmatprep.subr.bf16.mxu0 0
    %2095 = vmatpush1.bf16.msra.mxu0 0
    %2096 = vmatprep.subr.bf16.mxu0 0
    %2097 = vmatpush1.bf16.msra.mxu0 0
    %2098 = vmatprep.subr.bf16.mxu0 0
    %2099 = vmatpush1.bf16.msra.mxu0 0
    %2100 = vmatprep.subr.bf16.mxu0 0
    %2101 = vmatpush1.bf16.msra.mxu0 0
    %2102 = vmatprep.subr.bf16.mxu0 0
    %2103 = vmatpush1.bf16.msra.mxu0 0
    %2104 = vmatprep.mubr.bf16.mxu0 0
    %2105 = vmatmul.mubr.bf16.gmra.mrb[0].mxu0 %v2067
    %v2106 = vpop.f32.mrb[0].mxu0
    %v2107 = vadd.f32 0.0, %v2106
    %v2108 = vpop.f32.mrb[0].mxu0
    %v2109 = vpop.f32.mrb[0].mxu0
    %v2110 = vpop.f32.mrb[0].mxu0
    %2111 = vdwg.mxu0
    %2112 = vrot.lane.b32.xlu0 %v1569, 64
    %v2113 = vpop.permute.xlu0 %2112
    %v2115 = vsel %vm143, %v2057, 0
    %v2118 = vsel %vm751, %v2113, 0
    %2120 = vmatprep.subr.bf16.mxu0 0
    %2121 = vmatpush1.bf16.msra.mxu0 %v2118
    %2122 = vmatprep.subr.bf16.mxu0 0
    %2123 = vmatpush1.bf16.msra.mxu0 0
    %2124 = vmatprep.subr.bf16.mxu0 0
    %2125 = vmatpush1.bf16.msra.mxu0 0
    %2126 = vmatprep.subr.bf16.mxu0 0
    %2127 = vmatpush1.bf16.msra.mxu0 0
    %2128 = vmatprep.subr.bf16.mxu0 0
    %2129 = vmatpush1.bf16.msra.mxu0 0
    %2130 = vmatprep.subr.bf16.mxu0 0
    %2131 = vmatpush1.bf16.msra.mxu0 0
    %2132 = vmatprep.subr.bf16.mxu0 0
    %2133 = vmatpush1.bf16.msra.mxu0 0
    %2134 = vmatprep.subr.bf16.mxu0 0
    %2135 = vmatpush1.bf16.msra.mxu0 0
    %2136 = vmatprep.subr.bf16.mxu0 0
    %2137 = vmatpush1.bf16.msra.mxu0 0
    %2138 = vmatprep.subr.bf16.mxu0 0
    %2139 = vmatpush1.bf16.msra.mxu0 0
    %2140 = vmatprep.subr.bf16.mxu0 0
    %2141 = vmatpush1.bf16.msra.mxu0 0
    %2142 = vmatprep.subr.bf16.mxu0 0
    %2143 = vmatpush1.bf16.msra.mxu0 0
    %2144 = vmatprep.subr.bf16.mxu0 0
    %2145 = vmatpush1.bf16.msra.mxu0 0
    %2146 = vmatprep.subr.bf16.mxu0 0
    %2147 = vmatpush1.bf16.msra.mxu0 0
    %2148 = vmatprep.subr.bf16.mxu0 0
    %2149 = vmatpush1.bf16.msra.mxu0 0
    %2150 = vmatprep.subr.bf16.mxu0 0
    %2151 = vmatpush1.bf16.msra.mxu0 0
    %2152 = vmatprep.mubr.bf16.mxu0 0
    %2153 = vmatmul.mubr.bf16.gmra.mrb[0].mxu0 %v2115
    %v2154 = vpop.f32.mrb[0].mxu0
    %v2155 = vadd.f32 0.0, %v2154
    %v2156 = vpop.f32.mrb[0].mxu0
    %v2157 = vpop.f32.mrb[0].mxu0
    %v2158 = vpop.f32.mrb[0].mxu0
    %2159 = vdwg.mxu0
    %2160 = vrot.lane.b32.xlu0 %v1570, 64
    %v2161 = vpop.permute.xlu0 %2160
    %v2163 = vsel %vm143, %v2058, 0
    %v2166 = vsel %vm751, %v2161, 0
    %2168 = vmatprep.subr.bf16.mxu0 0
    %2169 = vmatpush1.bf16.msra.mxu0 %v2166
    %2170 = vmatprep.subr.bf16.mxu0 0
    %2171 = vmatpush1.bf16.msra.mxu0 0
    %2172 = vmatprep.subr.bf16.mxu0 0
    %2173 = vmatpush1.bf16.msra.mxu0 0
    %2174 = vmatprep.subr.bf16.mxu0 0
    %2175 = vmatpush1.bf16.msra.mxu0 0
    %2176 = vmatprep.subr.bf16.mxu0 0
    %2177 = vmatpush1.bf16.msra.mxu0 0
    %2178 = vmatprep.subr.bf16.mxu0 0
    %2179 = vmatpush1.bf16.msra.mxu0 0
    %2180 = vmatprep.subr.bf16.mxu0 0
    %2181 = vmatpush1.bf16.msra.mxu0 0
    %2182 = vmatprep.subr.bf16.mxu0 0
    %2183 = vmatpush1.bf16.msra.mxu0 0
    %2184 = vmatprep.subr.bf16.mxu0 0
    %2185 = vmatpush1.bf16.msra.mxu0 0
    %2186 = vmatprep.subr.bf16.mxu0 0
    %2187 = vmatpush1.bf16.msra.mxu0 0
    %2188 = vmatprep.subr.bf16.mxu0 0
    %2189 = vmatpush1.bf16.msra.mxu0 0
    %2190 = vmatprep.subr.bf16.mxu0 0
    %2191 = vmatpush1.bf16.msra.mxu0 0
    %2192 = vmatprep.subr.bf16.mxu0 0
    %2193 = vmatpush1.bf16.msra.mxu0 0
    %2194 = vmatprep.subr.bf16.mxu0 0
    %2195 = vmatpush1.bf16.msra.mxu0 0
    %2196 = vmatprep.subr.bf16.mxu0 0
    %2197 = vmatpush1.bf16.msra.mxu0 0
    %2198 = vmatprep.subr.bf16.mxu0 0
    %2199 = vmatpush1.bf16.msra.mxu0 0
    %2200 = vmatprep.mubr.bf16.mxu0 0
    %2201 = vmatmul.mubr.bf16.gmra.mrb[0].mxu0 %v2163
    %v2202 = vpop.f32.mrb[0].mxu0
    %v2203 = vadd.f32 0.0, %v2202
    %v2204 = vpop.f32.mrb[0].mxu0
    %v2205 = vpop.f32.mrb[0].mxu0
    %v2206 = vpop.f32.mrb[0].mxu0
    %2207 = vdwg.mxu0
    %2208 = vrot.lane.b32.xlu0 %v1571, 64
    %v2209 = vpop.permute.xlu0 %2208
    %v2211 = vsel %vm143, %v2059, 0
    %v2214 = vsel %vm751, %v2209, 0
    %2216 = vmatprep.subr.bf16.mxu0 0
    %2217 = vmatpush1.bf16.msra.mxu0 %v2214
    %2218 = vmatprep.subr.bf16.mxu0 0
    %2219 = vmatpush1.bf16.msra.mxu0 0
    %2220 = vmatprep.subr.bf16.mxu0 0
    %2221 = vmatpush1.bf16.msra.mxu0 0
    %2222 = vmatprep.subr.bf16.mxu0 0
    %2223 = vmatpush1.bf16.msra.mxu0 0
    %2224 = vmatprep.subr.bf16.mxu0 0
    %2225 = vmatpush1.bf16.msra.mxu0 0
    %2226 = vmatprep.subr.bf16.mxu0 0
    %2227 = vmatpush1.bf16.msra.mxu0 0
    %2228 = vmatprep.subr.bf16.mxu0 0
    %2229 = vmatpush1.bf16.msra.mxu0 0
    %2230 = vmatprep.subr.bf16.mxu0 0
    %2231 = vmatpush1.bf16.msra.mxu0 0
    %2232 = vmatprep.subr.bf16.mxu0 0
    %2233 = vmatpush1.bf16.msra.mxu0 0
    %2234 = vmatprep.subr.bf16.mxu0 0
    %2235 = vmatpush1.bf16.msra.mxu0 0
    %2236 = vmatprep.subr.bf16.mxu0 0
    %2237 = vmatpush1.bf16.msra.mxu0 0
    %2238 = vmatprep.subr.bf16.mxu0 0
    %2239 = vmatpush1.bf16.msra.mxu0 0
    %2240 = vmatprep.subr.bf16.mxu0 0
    %2241 = vmatpush1.bf16.msra.mxu0 0
    %2242 = vmatprep.subr.bf16.mxu0 0
    %2243 = vmatpush1.bf16.msra.mxu0 0
    %2244 = vmatprep.subr.bf16.mxu0 0
    %2245 = vmatpush1.bf16.msra.mxu0 0
    %2246 = vmatprep.subr.bf16.mxu0 0
    %2247 = vmatpush1.bf16.msra.mxu0 0
    %2248 = vmatprep.mubr.bf16.mxu0 0
    %2249 = vmatmul.mubr.bf16.gmra.mrb[0].mxu0 %v2211
    %v2250 = vpop.f32.mrb[0].mxu0
    %v2251 = vadd.f32 0.0, %v2250
    %v2252 = vpop.f32.mrb[0].mxu0
    %v2253 = vpop.f32.mrb[0].mxu0
    %v2254 = vpop.f32.mrb[0].mxu0
    %2255 = vdwg.mxu0
    %2256 = vrot.lane.b32.xlu0 %v1572, 64
    %v2257 = vpop.permute.xlu0 %2256
    %v2259 = vsel %vm143, %v2060, 0
    %v2262 = vsel %vm751, %v2257, 0
    %2264 = vmatprep.subr.bf16.mxu0 0
    %2265 = vmatpush1.bf16.msra.mxu0 %v2262
    %2266 = vmatprep.subr.bf16.mxu0 0
    %2267 = vmatpush1.bf16.msra.mxu0 0
    %2268 = vmatprep.subr.bf16.mxu0 0
    %2269 = vmatpush1.bf16.msra.mxu0 0
    %2270 = vmatprep.subr.bf16.mxu0 0
    %2271 = vmatpush1.bf16.msra.mxu0 0
    %2272 = vmatprep.subr.bf16.mxu0 0
    %2273 = vmatpush1.bf16.msra.mxu0 0
    %2274 = vmatprep.subr.bf16.mxu0 0
    %2275 = vmatpush1.bf16.msra.mxu0 0
    %2276 = vmatprep.subr.bf16.mxu0 0
    %2277 = vmatpush1.bf16.msra.mxu0 0
    %2278 = vmatprep.subr.bf16.mxu0 0
    %2279 = vmatpush1.bf16.msra.mxu0 0
    %2280 = vmatprep.subr.bf16.mxu0 0
    %2281 = vmatpush1.bf16.msra.mxu0 0
    %2282 = vmatprep.subr.bf16.mxu0 0
    %2283 = vmatpush1.bf16.msra.mxu0 0
    %2284 = vmatprep.subr.bf16.mxu0 0
    %2285 = vmatpush1.bf16.msra.mxu0 0
    %2286 = vmatprep.subr.bf16.mxu0 0
    %2287 = vmatpush1.bf16.msra.mxu0 0
    %2288 = vmatprep.subr.bf16.mxu0 0
    %2289 = vmatpush1.bf16.msra.mxu0 0
    %2290 = vmatprep.subr.bf16.mxu0 0
    %2291 = vmatpush1.bf16.msra.mxu0 0
    %2292 = vmatprep.subr.bf16.mxu0 0
    %2293 = vmatpush1.bf16.msra.mxu0 0
    %2294 = vmatprep.subr.bf16.mxu0 0
    %2295 = vmatpush1.bf16.msra.mxu0 0
    %2296 = vmatprep.mubr.bf16.mxu0 0
    %2297 = vmatmul.mubr.bf16.gmra.mrb[0].mxu0 %v2259
    %v2298 = vpop.f32.mrb[0].mxu0
    %v2299 = vadd.f32 0.0, %v2298
    %v2300 = vpop.f32.mrb[0].mxu0
    %v2301 = vpop.f32.mrb[0].mxu0
    %v2302 = vpop.f32.mrb[0].mxu0
    %2303 = vdwg.mxu0
    %2304 = vrot.lane.b32.xlu0 %v1573, 64
    %v2305 = vpop.permute.xlu0 %2304
    %v2307 = vsel %vm143, %v2061, 0
    %v2310 = vsel %vm751, %v2305, 0
    %2312 = vmatprep.subr.bf16.mxu0 0
    %2313 = vmatpush1.bf16.msra.mxu0 %v2310
    %2314 = vmatprep.subr.bf16.mxu0 0
    %2315 = vmatpush1.bf16.msra.mxu0 0
    %2316 = vmatprep.subr.bf16.mxu0 0
    %2317 = vmatpush1.bf16.msra.mxu0 0
    %2318 = vmatprep.subr.bf16.mxu0 0
    %2319 = vmatpush1.bf16.msra.mxu0 0
    %2320 = vmatprep.subr.bf16.mxu0 0
    %2321 = vmatpush1.bf16.msra.mxu0 0
    %2322 = vmatprep.subr.bf16.mxu0 0
    %2323 = vmatpush1.bf16.msra.mxu0 0
    %2324 = vmatprep.subr.bf16.mxu0 0
    %2325 = vmatpush1.bf16.msra.mxu0 0
    %2326 = vmatprep.subr.bf16.mxu0 0
    %2327 = vmatpush1.bf16.msra.mxu0 0
    %2328 = vmatprep.subr.bf16.mxu0 0
    %2329 = vmatpush1.bf16.msra.mxu0 0
    %2330 = vmatprep.subr.bf16.mxu0 0
    %2331 = vmatpush1.bf16.msra.mxu0 0
    %2332 = vmatprep.subr.bf16.mxu0 0
    %2333 = vmatpush1.bf16.msra.mxu0 0
    %2334 = vmatprep.subr.bf16.mxu0 0
    %2335 = vmatpush1.bf16.msra.mxu0 0
    %2336 = vmatprep.subr.bf16.mxu0 0
    %2337 = vmatpush1.bf16.msra.mxu0 0
    %2338 = vmatprep.subr.bf16.mxu0 0
    %2339 = vmatpush1.bf16.msra.mxu0 0
    %2340 = vmatprep.subr.bf16.mxu0 0
    %2341 = vmatpush1.bf16.msra.mxu0 0
    %2342 = vmatprep.subr.bf16.mxu0 0
    %2343 = vmatpush1.bf16.msra.mxu0 0
    %2344 = vmatprep.mubr.bf16.mxu0 0
    %2345 = vmatmul.mubr.bf16.gmra.mrb[0].mxu0 %v2307
    %v2346 = vpop.f32.mrb[0].mxu0
    %v2347 = vadd.f32 0.0, %v2346
    %v2348 = vpop.f32.mrb[0].mxu0
    %v2349 = vpop.f32.mrb[0].mxu0
    %v2350 = vpop.f32.mrb[0].mxu0
    %2351 = vdwg.mxu0
    %2352 = vrot.lane.b32.xlu0 %v1574, 64
    %v2353 = vpop.permute.xlu0 %2352
    %v2355 = vsel %vm143, %v2062, 0
    %v2358 = vsel %vm751, %v2353, 0
    %2360 = vmatprep.subr.bf16.mxu0 0
    %2361 = vmatpush1.bf16.msra.mxu0 %v2358
    %2362 = vmatprep.subr.bf16.mxu0 0
    %2363 = vmatpush1.bf16.msra.mxu0 0
    %2364 = vmatprep.subr.bf16.mxu0 0
    %2365 = vmatpush1.bf16.msra.mxu0 0
    %2366 = vmatprep.subr.bf16.mxu0 0
    %2367 = vmatpush1.bf16.msra.mxu0 0
    %2368 = vmatprep.subr.bf16.mxu0 0
    %2369 = vmatpush1.bf16.msra.mxu0 0
    %2370 = vmatprep.subr.bf16.mxu0 0
    %2371 = vmatpush1.bf16.msra.mxu0 0
    %2372 = vmatprep.subr.bf16.mxu0 0
    %2373 = vmatpush1.bf16.msra.mxu0 0
    %2374 = vmatprep.subr.bf16.mxu0 0
    %2375 = vmatpush1.bf16.msra.mxu0 0
    %2376 = vmatprep.subr.bf16.mxu0 0
    %2377 = vmatpush1.bf16.msra.mxu0 0
    %2378 = vmatprep.subr.bf16.mxu0 0
    %2379 = vmatpush1.bf16.msra.mxu0 0
    %2380 = vmatprep.subr.bf16.mxu0 0
    %2381 = vmatpush1.bf16.msra.mxu0 0
    %2382 = vmatprep.subr.bf16.mxu0 0
    %2383 = vmatpush1.bf16.msra.mxu0 0
    %2384 = vmatprep.subr.bf16.mxu0 0
    %2385 = vmatpush1.bf16.msra.mxu0 0
    %2386 = vmatprep.subr.bf16.mxu0 0
    %2387 = vmatpush1.bf16.msra.mxu0 0
    %2388 = vmatprep.subr.bf16.mxu0 0
    %2389 = vmatpush1.bf16.msra.mxu0 0
    %2390 = vmatprep.subr.bf16.mxu0 0
    %2391 = vmatpush1.bf16.msra.mxu0 0
    %2392 = vmatprep.mubr.bf16.mxu0 0
    %2393 = vmatmul.mubr.bf16.gmra.mrb[0].mxu0 %v2355
    %v2394 = vpop.f32.mrb[0].mxu0
    %v2395 = vadd.f32 0.0, %v2394
    %v2396 = vpop.f32.mrb[0].mxu0
    %v2397 = vpop.f32.mrb[0].mxu0
    %v2398 = vpop.f32.mrb[0].mxu0
    %2399 = vdwg.mxu0
    %2400 = vrot.lane.b32.xlu0 %v1575, 64
    %v2401 = vpop.permute.xlu0 %2400
    %v2403 = vsel %vm143, %v2063, 0
    %v2406 = vsel %vm751, %v2401, 0
    %2408 = vmatprep.subr.bf16.mxu0 0
    %2409 = vmatpush1.bf16.msra.mxu0 %v2406
    %2410 = vmatprep.subr.bf16.mxu0 0
    %2411 = vmatpush1.bf16.msra.mxu0 0
    %2412 = vmatprep.subr.bf16.mxu0 0
    %2413 = vmatpush1.bf16.msra.mxu0 0
    %2414 = vmatprep.subr.bf16.mxu0 0
    %2415 = vmatpush1.bf16.msra.mxu0 0
    %2416 = vmatprep.subr.bf16.mxu0 0
    %2417 = vmatpush1.bf16.msra.mxu0 0
    %2418 = vmatprep.subr.bf16.mxu0 0
    %2419 = vmatpush1.bf16.msra.mxu0 0
    %2420 = vmatprep.subr.bf16.mxu0 0
    %2421 = vmatpush1.bf16.msra.mxu0 0
    %2422 = vmatprep.subr.bf16.mxu0 0
    %2423 = vmatpush1.bf16.msra.mxu0 0
    %2424 = vmatprep.subr.bf16.mxu0 0
    %2425 = vmatpush1.bf16.msra.mxu0 0
    %2426 = vmatprep.subr.bf16.mxu0 0
    %2427 = vmatpush1.bf16.msra.mxu0 0
    %2428 = vmatprep.subr.bf16.mxu0 0
    %2429 = vmatpush1.bf16.msra.mxu0 0
    %2430 = vmatprep.subr.bf16.mxu0 0
    %2431 = vmatpush1.bf16.msra.mxu0 0
    %2432 = vmatprep.subr.bf16.mxu0 0
    %2433 = vmatpush1.bf16.msra.mxu0 0
    %2434 = vmatprep.subr.bf16.mxu0 0
    %2435 = vmatpush1.bf16.msra.mxu0 0
    %2436 = vmatprep.subr.bf16.mxu0 0
    %2437 = vmatpush1.bf16.msra.mxu0 0
    %2438 = vmatprep.subr.bf16.mxu0 0
    %2439 = vmatpush1.bf16.msra.mxu0 0
    %2440 = vmatprep.mubr.bf16.mxu0 0
    %2441 = vmatmul.mubr.bf16.gmra.mrb[0].mxu0 %v2403
    %v2442 = vpop.f32.mrb[0].mxu0
    %v2443 = vadd.f32 0.0, %v2442
    %v2444 = vpop.f32.mrb[0].mxu0
    %v2445 = vpop.f32.mrb[0].mxu0
    %v2446 = vpop.f32.mrb[0].mxu0
    %2447 = vdwg.mxu0
    %2450 = vrot.lane.b32.xlu0 %v2203, 8
    %v2451 = vpop.permute.xlu0 %2450
    %2452 = vrot.lane.b32.xlu0 %v2251, 8
    %v2453 = vpop.permute.xlu0 %2452
    %2458 = vrot.lane.b32.xlu0 %v2299, 16
    %v2459 = vpop.permute.xlu0 %2458
    %2460 = vrot.lane.b32.xlu0 %v2347, 16
    %v2461 = vpop.permute.xlu0 %2460
    %2466 = vrot.lane.b32.xlu0 %v2395, 24
    %v2467 = vpop.permute.xlu0 %2466
    %2468 = vrot.lane.b32.xlu0 %v2443, 24
    %v2469 = vpop.permute.xlu0 %2468
    %v2472 = vsel %vm143, %v2107, %v2451
    %v2473 = vsel %vm143, %v2155, %v2453
    %v2474 = vsel %vm149, %v2472, %v2459
    %v2475 = vsel %vm149, %v2473, %v2461
    %v2476 = vsel %vm155, %v2474, %v2467
    %v2477 = vsel %vm155, %v2475, %v2469
    %v2478 = vpack.c.bf16 %v2477, %v2476
    %s2479 = scalar_lea.vmem %s2, 16
    %v2480 = vld [vmem:[%s2479] sm:$0xf]
    %v2481 = vld [vmem:[%s2479 + $0x4] sm:$0xf]
    %v2482 = vld [vmem:[%s2479 + $0x8] sm:$0xf]
    %v2483 = vld [vmem:[%s2479 + $0xc] sm:$0xf]
    %v2484 = vlaneseq
    %v2485 = vshrl.u32 %v2484, 7
    %v2486 = vsub.s32 0, %v2485
    %v2487 = vrot.slane %v1485, %v2486
    %v2492 = vunpack.c.l.b16 %v2480
    %v2493 = vunpack.c.l.b16 %v2481
    %v2494 = vunpack.c.l.b16 %v2482
    %v2495 = vunpack.c.l.b16 %v2483
    %v2496 = vpack.c.b16 %v2493, %v2492
    %v2497 = vpack.c.b16 %v2495, %v2494
    %v2501 = vsel %vm185, %v2478, 0
    %2503 = vmatprep.subr.bf16.mxu0 0
    %2504 = vmatpush1.bf16.msra.mxu0 %v2496
    %2505 = vmatprep.subr.bf16.mxu0 0
    %2506 = vmatpush1.bf16.msra.mxu0 %v2497
    %2507 = vmatprep.subr.bf16.mxu0 0
    %2508 = vmatpush1.bf16.msra.mxu0 0
    %2509 = vmatprep.subr.bf16.mxu0 0
    %2510 = vmatpush1.bf16.msra.mxu0 0
    %2511 = vmatprep.subr.bf16.mxu0 0
    %2512 = vmatpush1.bf16.msra.mxu0 0
    %2513 = vmatprep.subr.bf16.mxu0 0
    %2514 = vmatpush1.bf16.msra.mxu0 0
    %2515 = vmatprep.subr.bf16.mxu0 0
    %2516 = vmatpush1.bf16.msra.mxu0 0
    %2517 = vmatprep.subr.bf16.mxu0 0
    %2518 = vmatpush1.bf16.msra.mxu0 0
    %2519 = vmatprep.subr.bf16.mxu0 0
    %2520 = vmatpush1.bf16.msra.mxu0 0
    %2521 = vmatprep.subr.bf16.mxu0 0
    %2522 = vmatpush1.bf16.msra.mxu0 0
    %2523 = vmatprep.subr.bf16.mxu0 0
    %2524 = vmatpush1.bf16.msra.mxu0 0
    %2525 = vmatprep.subr.bf16.mxu0 0
    %2526 = vmatpush1.bf16.msra.mxu0 0
    %2527 = vmatprep.subr.bf16.mxu0 0
    %2528 = vmatpush1.bf16.msra.mxu0 0
    %2529 = vmatprep.subr.bf16.mxu0 0
    %2530 = vmatpush1.bf16.msra.mxu0 0
    %2531 = vmatprep.subr.bf16.mxu0 0
    %2532 = vmatpush1.bf16.msra.mxu0 0
    %2533 = vmatprep.subr.bf16.mxu0 0
    %2534 = vmatpush1.bf16.msra.mxu0 0
    %2535 = vmatprep.mubr.bf16.mxu0 0
    %2536 = vmatmul.mubr.bf16.gmra.mrb[0].mxu0 %v2501
    %v2537 = vpop.f32.mrb[0].mxu0
    %v2538 = vadd.f32 %v2487, %v2537
    %v2539 = vpop.f32.mrb[0].mxu0
    %v2540 = vpop.f32.mrb[0].mxu0
    %v2541 = vadd.f32 %v2487, %v2540
    %v2542 = vpop.f32.mrb[0].mxu0
    %2543 = vdwg.mxu0
    %v2544 = vadd.f32 %v2538, %v1482
    %v2545 = vadd.f32 %v2541, %v1483
    %v2546 = vsel %vm185, %v2544, 0.0
    %2547 = vadd.xlane.f32.xlu0 %v2546
    %v2548 = vpop.xlane.xlu0 %2547
    %v2549 = vsel %vm185, %v2545, 0.0
    %2550 = vadd.xlane.f32.xlu0 %v2549
    %v2551 = vpop.xlane.xlu0 %2550
    %v2552 = vmul.f32 %v2548, %v1234
    %v2553 = vmul.f32 %v2551, %v1234
    %v2554 = vsub.f32 %v2544, %v2552
    %v2555 = vsub.f32 %v2545, %v2553
    %v2556 = vmul.f32 %v2554, %v2554
    %v2557 = vmul.f32 %v2555, %v2555
    %v2558 = vsel %vm185, %v2556, 0.0
    %2559 = vadd.xlane.f32.xlu0 %v2558
    %v2560 = vpop.xlane.xlu0 %2559
    %v2561 = vsel %vm185, %v2557, 0.0
    %2562 = vadd.xlane.f32.xlu0 %v2561
    %v2563 = vpop.xlane.xlu0 %2562
    %v2564 = vmul.f32 %v2560, %v1234
    %v2565 = vmul.f32 %v2563, %v1234
    %v2566 = vadd.f32 %v2564, 1e-05
    %v2567 = vadd.f32 %v2565, 1e-05
    %v2568 = vrsqrt.pop %v2566
    %v2569 = vrsqrt.pop %v2567
    %v2570 = vmul.f32 %v2554, %v2568
    %v2571 = vmul.f32 %v2555, %v2569
    %v2572 = vlaneseq
    %v2573 = vshrl.u32 %v2572, 7
    %v2574 = vsub.s32 1, %v2573
    %v2575 = vrot.slane %v1485, %v2574
    %v2576 = vmul.f32 %v2570, %v2575
    %v2577 = vmul.f32 %v2571, %v2575
    %v2578 = vlaneseq
    %v2579 = vshrl.u32 %v2578, 7
    %v2580 = vsub.s32 2, %v2579
    %v2581 = vrot.slane %v1485, %v2580
    %v2582 = vadd.f32 %v2576, %v2581
    %v2583 = vadd.f32 %v2577, %v2581
    %v2584 = vpack.c.bf16 %v2583, %v2582
    %s2585 = scalar_lea.vmem %s3, 16
    %v2586 = vld [vmem:[%s2585] sm:$0xf]
    %v2587 = vld [vmem:[%s2585 + $0x4] sm:$0xf]
    %v2588 = vld [vmem:[%s2585 + $0x8] sm:$0xf]
    %v2589 = vld [vmem:[%s2585 + $0xc] sm:$0xf]
    %v2590 = vlaneseq
    %v2591 = vshrl.u32 %v2590, 7
    %v2592 = vsub.s32 3, %v2591
    %v2593 = vrot.slane %v1485, %v2592
    %v2598 = vunpack.c.l.b16 %v2586
    %v2599 = vunpack.c.l.b16 %v2587
    %v2600 = vunpack.c.l.b16 %v2588
    %v2601 = vunpack.c.l.b16 %v2589
    %v2602 = vpack.c.b16 %v2599, %v2598
    %v2603 = vpack.c.b16 %v2601, %v2600
    %v2607 = vsel %vm185, %v2584, 0
    %2609 = vmatprep.subr.bf16.mxu0 0
    %2610 = vmatpush1.bf16.msra.mxu0 %v2602
    %2611 = vmatprep.subr.bf16.mxu0 0
    %2612 = vmatpush1.bf16.msra.mxu0 %v2603
    %2613 = vmatprep.subr.bf16.mxu0 0
    %2614 = vmatpush1.bf16.msra.mxu0 0
    %2615 = vmatprep.subr.bf16.mxu0 0
    %2616 = vmatpush1.bf16.msra.mxu0 0
    %2617 = vmatprep.subr.bf16.mxu0 0
    %2618 = vmatpush1.bf16.msra.mxu0 0
    %2619 = vmatprep.subr.bf16.mxu0 0
    %2620 = vmatpush1.bf16.msra.mxu0 0
    %2621 = vmatprep.subr.bf16.mxu0 0
    %2622 = vmatpush1.bf16.msra.mxu0 0
    %2623 = vmatprep.subr.bf16.mxu0 0
    %2624 = vmatpush1.bf16.msra.mxu0 0
    %2625 = vmatprep.subr.bf16.mxu0 0
    %2626 = vmatpush1.bf16.msra.mxu0 0
    %2627 = vmatprep.subr.bf16.mxu0 0
    %2628 = vmatpush1.bf16.msra.mxu0 0
    %2629 = vmatprep.subr.bf16.mxu0 0
    %2630 = vmatpush1.bf16.msra.mxu0 0
    %2631 = vmatprep.subr.bf16.mxu0 0
    %2632 = vmatpush1.bf16.msra.mxu0 0
    %2633 = vmatprep.subr.bf16.mxu0 0
    %2634 = vmatpush1.bf16.msra.mxu0 0
    %2635 = vmatprep.subr.bf16.mxu0 0
    %2636 = vmatpush1.bf16.msra.mxu0 0
    %2637 = vmatprep.subr.bf16.mxu0 0
    %2638 = vmatpush1.bf16.msra.mxu0 0
    %2639 = vmatprep.subr.bf16.mxu0 0
    %2640 = vmatpush1.bf16.msra.mxu0 0
    %2641 = vmatprep.mubr.bf16.mxu0 0
    %2642 = vmatmul.mubr.bf16.gmra.mrb[0].mxu0 %v2607
    %v2643 = vpop.f32.mrb[0].mxu0
    %v2644 = vadd.f32 %v2593, %v2643
    %v2645 = vpop.f32.mrb[0].mxu0
    %v2646 = vpop.f32.mrb[0].mxu0
    %v2647 = vadd.f32 %v2593, %v2646
    %v2648 = vpop.f32.mrb[0].mxu0
    %2649 = vdwg.mxu0
    %v2650 = vmax.f32 %v2644, 0.0
    %v2651 = vmax.f32 %v2647, 0.0
    %v2652 = vpack.c.bf16 %v2651, %v2650
    %s2653 = scalar_lea.vmem %s4, 64
    %v2654 = vld [vmem:[%s2653] sm:$0xf]
    %v2655 = vld [vmem:[%s2653 + $0x4] sm:$0xf]
    %v2656 = vld [vmem:[%s2653 + $0x8] sm:$0xf]
    %v2657 = vld [vmem:[%s2653 + $0xc] sm:$0xf]
    %v2658 = vld [vmem:[%s2653 + $0x10] sm:$0xf]
    %v2659 = vld [vmem:[%s2653 + $0x14] sm:$0xf]
    %v2660 = vld [vmem:[%s2653 + $0x18] sm:$0xf]
    %v2661 = vld [vmem:[%s2653 + $0x1c] sm:$0xf]
    %v2662 = vld [vmem:[%s2653 + $0x20] sm:$0xf]
    %v2663 = vld [vmem:[%s2653 + $0x24] sm:$0xf]
    %v2664 = vld [vmem:[%s2653 + $0x28] sm:$0xf]
    %v2665 = vld [vmem:[%s2653 + $0x2c] sm:$0xf]
    %v2666 = vld [vmem:[%s2653 + $0x30] sm:$0xf]
    %v2667 = vld [vmem:[%s2653 + $0x34] sm:$0xf]
    %v2668 = vld [vmem:[%s2653 + $0x38] sm:$0xf]
    %v2669 = vld [vmem:[%s2653 + $0x3c] sm:$0xf]
    %v2670 = vlaneseq
    %v2671 = vshrl.u32 %v2670, 7
    %v2672 = vsub.s32 4, %v2671
    %v2673 = vrot.slane %v1485, %v2672
    %v2690 = vunpack.c.l.b16 %v2654
    %v2691 = vunpack.c.l.b16 %v2655
    %v2692 = vunpack.c.l.b16 %v2656
    %v2693 = vunpack.c.l.b16 %v2657
    %v2694 = vunpack.c.l.b16 %v2658
    %v2695 = vunpack.c.l.b16 %v2659
    %v2696 = vunpack.c.l.b16 %v2660
    %v2697 = vunpack.c.l.b16 %v2661
    %v2698 = vunpack.c.l.b16 %v2662
    %v2699 = vunpack.c.l.b16 %v2663
    %v2700 = vunpack.c.l.b16 %v2664
    %v2701 = vunpack.c.l.b16 %v2665
    %v2702 = vunpack.c.l.b16 %v2666
    %v2703 = vunpack.c.l.b16 %v2667
    %v2704 = vunpack.c.l.b16 %v2668
    %v2705 = vunpack.c.l.b16 %v2669
    %v2706 = vpack.c.b16 %v2691, %v2690
    %v2707 = vpack.c.b16 %v2693, %v2692
    %v2708 = vpack.c.b16 %v2695, %v2694
    %v2709 = vpack.c.b16 %v2697, %v2696
    %v2710 = vpack.c.b16 %v2699, %v2698
    %v2711 = vpack.c.b16 %v2701, %v2700
    %v2712 = vpack.c.b16 %v2703, %v2702
    %v2713 = vpack.c.b16 %v2705, %v2704
    %2722 = vmatprep.subr.bf16.mxu0 0
    %2723 = vmatpush1.bf16.msra.mxu0 %v2706
    %2724 = vmatprep.subr.bf16.mxu0 0
    %2725 = vmatpush1.bf16.msra.mxu0 %v2707
    %2726 = vmatprep.subr.bf16.mxu0 0
    %2727 = vmatpush1.bf16.msra.mxu0 %v2708
    %2728 = vmatprep.subr.bf16.mxu0 0
    %2729 = vmatpush1.bf16.msra.mxu0 %v2709
    %2730 = vmatprep.subr.bf16.mxu0 0
    %2731 = vmatpush1.bf16.msra.mxu0 %v2710
    %2732 = vmatprep.subr.bf16.mxu0 0
    %2733 = vmatpush1.bf16.msra.mxu0 %v2711
    %2734 = vmatprep.subr.bf16.mxu0 0
    %2735 = vmatpush1.bf16.msra.mxu0 %v2712
    %2736 = vmatprep.subr.bf16.mxu0 0
    %2737 = vmatpush1.bf16.msra.mxu0 %v2713
    %2738 = vmatprep.subr.bf16.mxu0 0
    %2739 = vmatpush1.bf16.msra.mxu0 0
    %2740 = vmatprep.subr.bf16.mxu0 0
    %2741 = vmatpush1.bf16.msra.mxu0 0
    %2742 = vmatprep.subr.bf16.mxu0 0
    %2743 = vmatpush1.bf16.msra.mxu0 0
    %2744 = vmatprep.subr.bf16.mxu0 0
    %2745 = vmatpush1.bf16.msra.mxu0 0
    %2746 = vmatprep.subr.bf16.mxu0 0
    %2747 = vmatpush1.bf16.msra.mxu0 0
    %2748 = vmatprep.subr.bf16.mxu0 0
    %2749 = vmatpush1.bf16.msra.mxu0 0
    %2750 = vmatprep.subr.bf16.mxu0 0
    %2751 = vmatpush1.bf16.msra.mxu0 0
    %2752 = vmatprep.subr.bf16.mxu0 0
    %2753 = vmatpush1.bf16.msra.mxu0 0
    %2754 = vmatprep.mubr.bf16.mxu0 0
    %2755 = vmatmul.mubr.bf16.gmra.mrb[0].mxu0 %v2652
    %v2756 = vpop.f32.mrb[0].mxu0
    %v2757 = vadd.f32 %v2673, %v2756
    %v2758 = vpop.f32.mrb[0].mxu0
    %v2759 = vpop.f32.mrb[0].mxu0
    %v2760 = vadd.f32 %v2673, %v2759
    %v2761 = vpop.f32.mrb[0].mxu0
    %2762 = vdwg.mxu0
    %v2763 = vadd.f32 %v2757, %v2582
    %v2764 = vadd.f32 %v2760, %v2583
    %v2765 = vsel %vm185, %v2763, 0.0
    %2766 = vadd.xlane.f32.xlu0 %v2765
    %v2767 = vpop.xlane.xlu0 %2766
    %v2768 = vsel %vm185, %v2764, 0.0
    %2769 = vadd.xlane.f32.xlu0 %v2768
    %v2770 = vpop.xlane.xlu0 %2769
    %v2771 = vmul.f32 %v2767, %v1234
    %v2772 = vmul.f32 %v2770, %v1234
    %v2773 = vsub.f32 %v2763, %v2771
    %v2774 = vsub.f32 %v2764, %v2772
    %v2775 = vmul.f32 %v2773, %v2773
    %v2776 = vmul.f32 %v2774, %v2774
    %v2777 = vsel %vm185, %v2775, 0.0
    %2778 = vadd.xlane.f32.xlu0 %v2777
    %v2779 = vpop.xlane.xlu0 %2778
    %v2780 = vsel %vm185, %v2776, 0.0
    %2781 = vadd.xlane.f32.xlu0 %v2780
    %v2782 = vpop.xlane.xlu0 %2781
    %v2783 = vmul.f32 %v2779, %v1234
    %v2784 = vmul.f32 %v2782, %v1234
    %v2785 = vadd.f32 %v2783, 1e-05
    %v2786 = vadd.f32 %v2784, 1e-05
    %v2787 = vrsqrt.pop %v2785
    %v2788 = vrsqrt.pop %v2786
    %v2789 = vmul.f32 %v2773, %v2787
    %v2790 = vmul.f32 %v2774, %v2788
    %v2791 = vlaneseq
    %v2792 = vshrl.u32 %v2791, 7
    %v2793 = vsub.s32 5, %v2792
    %v2794 = vrot.slane %v1485, %v2793
    %v2795 = vmul.f32 %v2789, %v2794
    %v2796 = vmul.f32 %v2790, %v2794
    %v2797 = vlaneseq
    %v2798 = vshrl.u32 %v2797, 7
    %v2799 = vsub.s32 6, %v2798
    %v2800 = vrot.slane %v1485, %v2799
    %v2801 = vadd.f32 %v2795, %v2800
    %v2802 = vadd.f32 %v2796, %v2800
    %v2805 = vrot.slane %v2802, 7
    %vm2806 = vcmask 1041409
    %v2807 = vsel %vm2806, %v2805, %v2801
    %v2809 = vrot.slane %v2801, 1
    %v2810 = vsel %vm2806, %v2802, %v2809
    %2811 = vrot.lane.b32.xlu0 %v2810, 32
    %v2812 = vpop.permute.xlu0 %2811
    %v2814 = vrot.slane %v2801, 2
    %v2815 = vrot.slane %v2802, 1
    %v2816 = vsel %vm2806, %v2815, %v2814
    %2817 = vrot.lane.b32.xlu0 %v2816, 64
    %v2818 = vpop.permute.xlu0 %2817
    %v2820 = vrot.slane %v2801, 3
    %v2821 = vrot.slane %v2802, 2
    %v2822 = vsel %vm2806, %v2821, %v2820
    %2823 = vrot.lane.b32.xlu0 %v2822, 96
    %v2824 = vpop.permute.xlu0 %2823
    %v2826 = vrot.slane %v2801, 4
    %v2827 = vrot.slane %v2802, 3
    %v2828 = vsel %vm2806, %v2827, %v2826
    %v2830 = vrot.slane %v2801, 5
    %v2831 = vrot.slane %v2802, 4
    %v2832 = vsel %vm2806, %v2831, %v2830
    %2833 = vrot.lane.b32.xlu0 %v2832, 32
    %v2834 = vpop.permute.xlu0 %2833
    %v2836 = vrot.slane %v2801, 6
    %v2837 = vrot.slane %v2802, 5
    %v2838 = vsel %vm2806, %v2837, %v2836
    %2839 = vrot.lane.b32.xlu0 %v2838, 64
    %v2840 = vpop.permute.xlu0 %2839
    %v2842 = vrot.slane %v2801, 7
    %v2843 = vrot.slane %v2802, 6
    %v2844 = vsel %vm2806, %v2843, %v2842
    %2845 = vrot.lane.b32.xlu0 %v2844, 96
    %v2846 = vpop.permute.xlu0 %2845
    %v2848 = vsel %vm185, %v2807, %v2812
    %vm2849 = vcmask 523264
    %v2850 = vsel %vm2849, %v2848, %v2818
    %vm2851 = vcmask 785408
    %v2852 = vsel %vm2851, %v2850, %v2824
    %v2853 = vsel %vm185, %v2828, %v2834
    %v2854 = vsel %vm2849, %v2853, %v2840
    %v2855 = vsel %vm2851, %v2854, %v2846
    %v2856 = vld [vmem:[%s10] sm:$0xff]
    %v2857 = vld [vmem:[%s10 + $0x8] sm:$0xff]
    %v2858 = vpack.c.bf16 %v2852, %v2852
    %v2859 = vpack.c.bf16 %v2855, %v2855
    %v2860 = vld [vmem:[%s6] sm:$0xff]
    %v2861 = vld [vmem:[%s6 + $0x8] sm:$0xff]
    %v2862 = vld [vmem:[%s6 + $0x10] sm:$0xff]
    %v2863 = vld [vmem:[%s6 + $0x18] sm:$0xff]
    %v2864 = vld [vmem:[%s6 + $0x20] sm:$0xff]
    %v2865 = vld [vmem:[%s6 + $0x28] sm:$0xff]
    %v2866 = vld [vmem:[%s6 + $0x30] sm:$0xff]
    %v2867 = vld [vmem:[%s6 + $0x38] sm:$0xff]
    %v2868 = vld [vmem:[%s6 + $0x40] sm:$0xff]
    %v2869 = vld [vmem:[%s6 + $0x48] sm:$0xff]
    %v2870 = vld [vmem:[%s6 + $0x50] sm:$0xff]
    %v2871 = vld [vmem:[%s6 + $0x58] sm:$0xff]
    %v2872 = vld [vmem:[%s6 + $0x60] sm:$0xff]
    %v2873 = vld [vmem:[%s6 + $0x68] sm:$0xff]
    %v2874 = vld [vmem:[%s6 + $0x70] sm:$0xff]
    %v2875 = vld [vmem:[%s6 + $0x78] sm:$0xff]
    %v2876 = vld [vmem:[%s6 + $0x80] sm:$0xff]
    %v2877 = vld [vmem:[%s6 + $0x88] sm:$0xff]
    %v2878 = vld [vmem:[%s6 + $0x90] sm:$0xff]
    %v2879 = vld [vmem:[%s6 + $0x98] sm:$0xff]
    %v2880 = vld [vmem:[%s6 + $0xa0] sm:$0xff]
    %v2881 = vld [vmem:[%s6 + $0xa8] sm:$0xff]
    %v2882 = vld [vmem:[%s6 + $0xb0] sm:$0xff]
    %v2883 = vld [vmem:[%s6 + $0xb8] sm:$0xff]
    %v2884 = vld [vmem:[%s6 + $0xc0] sm:$0xff]
    %v2885 = vld [vmem:[%s6 + $0xc8] sm:$0xff]
    %v2886 = vld [vmem:[%s6 + $0xd0] sm:$0xff]
    %v2887 = vld [vmem:[%s6 + $0xd8] sm:$0xff]
    %v2888 = vld [vmem:[%s6 + $0xe0] sm:$0xff]
    %v2889 = vld [vmem:[%s6 + $0xe8] sm:$0xff]
    %v2890 = vld [vmem:[%s6 + $0xf0] sm:$0xff]
    %v2891 = vld [vmem:[%s6 + $0xf8] sm:$0xff]
    %v2892 = vld [vmem:[%s6 + $0x100] sm:$0xff]
    %v2893 = vld [vmem:[%s6 + $0x108] sm:$0xff]
    %v2894 = vld [vmem:[%s6 + $0x110] sm:$0xff]
    %v2895 = vld [vmem:[%s6 + $0x118] sm:$0xff]
    %v2896 = vld [vmem:[%s6 + $0x120] sm:$0xff]
    %v2897 = vld [vmem:[%s6 + $0x128] sm:$0xff]
    %v2898 = vld [vmem:[%s6 + $0x130] sm:$0xff]
    %v2899 = vld [vmem:[%s6 + $0x138] sm:$0xff]
    %v2900 = vld [vmem:[%s6 + $0x140] sm:$0xff]
    %v2901 = vld [vmem:[%s6 + $0x148] sm:$0xff]
    %v2902 = vld [vmem:[%s6 + $0x150] sm:$0xff]
    %v2903 = vld [vmem:[%s6 + $0x158] sm:$0xff]
    %v2904 = vld [vmem:[%s6 + $0x160] sm:$0xff]
    %v2905 = vld [vmem:[%s6 + $0x168] sm:$0xff]
    %v2906 = vld [vmem:[%s6 + $0x170] sm:$0xff]
    %v2907 = vld [vmem:[%s6 + $0x178] sm:$0xff]
    %v2908 = vld [vmem:[%s6 + $0x180] sm:$0xff]
    %v2909 = vld [vmem:[%s6 + $0x188] sm:$0xff]
    %v2910 = vld [vmem:[%s6 + $0x190] sm:$0xff]
    %v2911 = vld [vmem:[%s6 + $0x198] sm:$0xff]
    %v2912 = vld [vmem:[%s6 + $0x1a0] sm:$0xff]
    %v2913 = vld [vmem:[%s6 + $0x1a8] sm:$0xff]
    %v2914 = vld [vmem:[%s6 + $0x1b0] sm:$0xff]
    %v2915 = vld [vmem:[%s6 + $0x1b8] sm:$0xff]
    %v2916 = vld [vmem:[%s6 + $0x1c0] sm:$0xff]
    %v2917 = vld [vmem:[%s6 + $0x1c8] sm:$0xff]
    %v2918 = vld [vmem:[%s6 + $0x1d0] sm:$0xff]
    %v2919 = vld [vmem:[%s6 + $0x1d8] sm:$0xff]
    %v2920 = vld [vmem:[%s6 + $0x1e0] sm:$0xff]
    %v2921 = vld [vmem:[%s6 + $0x1e8] sm:$0xff]
    %v2922 = vld [vmem:[%s6 + $0x1f0] sm:$0xff]
    %v2923 = vld [vmem:[%s6 + $0x1f8] sm:$0xff]
    %v2988 = vunpack.c.l.b16 %v2860
    %v2989 = vunpack.c.h.b16 %v2860
    %v2990 = vunpack.c.l.b16 %v2861
    %v2991 = vunpack.c.h.b16 %v2861
    %v2992 = vunpack.c.l.b16 %v2862
    %v2993 = vunpack.c.h.b16 %v2862
    %v2994 = vunpack.c.l.b16 %v2863
    %v2995 = vunpack.c.h.b16 %v2863
    %v2996 = vunpack.c.l.b16 %v2864
    %v2997 = vunpack.c.h.b16 %v2864
    %v2998 = vunpack.c.l.b16 %v2865
    %v2999 = vunpack.c.h.b16 %v2865
    %v3000 = vunpack.c.l.b16 %v2866
    %v3001 = vunpack.c.h.b16 %v2866
    %v3002 = vunpack.c.l.b16 %v2867
    %v3003 = vunpack.c.h.b16 %v2867
    %v3004 = vunpack.c.l.b16 %v2868
    %v3005 = vunpack.c.h.b16 %v2868
    %v3006 = vunpack.c.l.b16 %v2869
    %v3007 = vunpack.c.h.b16 %v2869
    %v3008 = vunpack.c.l.b16 %v2870
    %v3009 = vunpack.c.h.b16 %v2870
    %v3010 = vunpack.c.l.b16 %v2871
    %v3011 = vunpack.c.h.b16 %v2871
    %v3012 = vunpack.c.l.b16 %v2872
    %v3013 = vunpack.c.h.b16 %v2872
    %v3014 = vunpack.c.l.b16 %v2873
    %v3015 = vunpack.c.h.b16 %v2873
    %v3016 = vunpack.c.l.b16 %v2874
    %v3017 = vunpack.c.h.b16 %v2874
    %v3018 = vunpack.c.l.b16 %v2875
    %v3019 = vunpack.c.h.b16 %v2875
    %v3020 = vunpack.c.l.b16 %v2876
    %v3021 = vunpack.c.h.b16 %v2876
    %v3022 = vunpack.c.l.b16 %v2877
    %v3023 = vunpack.c.h.b16 %v2877
    %v3024 = vunpack.c.l.b16 %v2878
    %v3025 = vunpack.c.h.b16 %v2878
    %v3026 = vunpack.c.l.b16 %v2879
    %v3027 = vunpack.c.h.b16 %v2879
    %v3028 = vunpack.c.l.b16 %v2880
    %v3029 = vunpack.c.h.b16 %v2880
    %v3030 = vunpack.c.l.b16 %v2881
    %v3031 = vunpack.c.h.b16 %v2881
    %v3032 = vunpack.c.l.b16 %v2882
    %v3033 = vunpack.c.h.b16 %v2882
    %v3034 = vunpack.c.l.b16 %v2883
    %v3035 = vunpack.c.h.b16 %v2883
    %v3036 = vunpack.c.l.b16 %v2884
    %v3037 = vunpack.c.h.b16 %v2884
    %v3038 = vunpack.c.l.b16 %v2885
    %v3039 = vunpack.c.h.b16 %v2885
    %v3040 = vunpack.c.l.b16 %v2886
    %v3041 = vunpack.c.h.b16 %v2886
    %v3042 = vunpack.c.l.b16 %v2887
    %v3043 = vunpack.c.h.b16 %v2887
    %v3044 = vunpack.c.l.b16 %v2888
    %v3045 = vunpack.c.h.b16 %v2888
    %v3046 = vunpack.c.l.b16 %v2889
    %v3047 = vunpack.c.h.b16 %v2889
    %v3048 = vunpack.c.l.b16 %v2890
    %v3049 = vunpack.c.h.b16 %v2890
    %v3050 = vunpack.c.l.b16 %v2891
    %v3051 = vunpack.c.h.b16 %v2891
    %v3052 = vunpack.c.l.b16 %v2892
    %v3053 = vunpack.c.h.b16 %v2892
    %v3054 = vunpack.c.l.b16 %v2893
    %v3055 = vunpack.c.h.b16 %v2893
    %v3056 = vunpack.c.l.b16 %v2894
    %v3057 = vunpack.c.h.b16 %v2894
    %v3058 = vunpack.c.l.b16 %v2895
    %v3059 = vunpack.c.h.b16 %v2895
    %v3060 = vunpack.c.l.b16 %v2896
    %v3061 = vunpack.c.h.b16 %v2896
    %v3062 = vunpack.c.l.b16 %v2897
    %v3063 = vunpack.c.h.b16 %v2897
    %v3064 = vunpack.c.l.b16 %v2898
    %v3065 = vunpack.c.h.b16 %v2898
    %v3066 = vunpack.c.l.b16 %v2899
    %v3067 = vunpack.c.h.b16 %v2899
    %v3068 = vunpack.c.l.b16 %v2900
    %v3069 = vunpack.c.h.b16 %v2900
    %v3070 = vunpack.c.l.b16 %v2901
    %v3071 = vunpack.c.h.b16 %v2901
    %v3072 = vunpack.c.l.b16 %v2902
    %v3073 = vunpack.c.h.b16 %v2902
    %v3074 = vunpack.c.l.b16 %v2903
    %v3075 = vunpack.c.h.b16 %v2903
    %v3076 = vunpack.c.l.b16 %v2904
    %v3077 = vunpack.c.h.b16 %v2904
    %v3078 = vunpack.c.l.b16 %v2905
    %v3079 = vunpack.c.h.b16 %v2905
    %v3080 = vunpack.c.l.b16 %v2906
    %v3081 = vunpack.c.h.b16 %v2906
    %v3082 = vunpack.c.l.b16 %v2907
    %v3083 = vunpack.c.h.b16 %v2907
    %v3084 = vunpack.c.l.b16 %v2908
    %v3085 = vunpack.c.h.b16 %v2908
    %v3086 = vunpack.c.l.b16 %v2909
    %v3087 = vunpack.c.h.b16 %v2909
    %v3088 = vunpack.c.l.b16 %v2910
    %v3089 = vunpack.c.h.b16 %v2910
    %v3090 = vunpack.c.l.b16 %v2911
    %v3091 = vunpack.c.h.b16 %v2911
    %v3092 = vunpack.c.l.b16 %v2912
    %v3093 = vunpack.c.h.b16 %v2912
    %v3094 = vunpack.c.l.b16 %v2913
    %v3095 = vunpack.c.h.b16 %v2913
    %v3096 = vunpack.c.l.b16 %v2914
    %v3097 = vunpack.c.h.b16 %v2914
    %v3098 = vunpack.c.l.b16 %v2915
    %v3099 = vunpack.c.h.b16 %v2915
    %v3100 = vunpack.c.l.b16 %v2916
    %v3101 = vunpack.c.h.b16 %v2916
    %v3102 = vunpack.c.l.b16 %v2917
    %v3103 = vunpack.c.h.b16 %v2917
    %v3104 = vunpack.c.l.b16 %v2918
    %v3105 = vunpack.c.h.b16 %v2918
    %v3106 = vunpack.c.l.b16 %v2919
    %v3107 = vunpack.c.h.b16 %v2919
    %v3108 = vunpack.c.l.b16 %v2920
    %v3109 = vunpack.c.h.b16 %v2920
    %v3110 = vunpack.c.l.b16 %v2921
    %v3111 = vunpack.c.h.b16 %v2921
    %v3112 = vunpack.c.l.b16 %v2922
    %v3113 = vunpack.c.h.b16 %v2922
    %v3114 = vunpack.c.l.b16 %v2923
    %v3115 = vunpack.c.h.b16 %v2923
    %v3116 = vpack.c.b16 %v2992, %v2988
    %v3117 = vpack.c.b16 %v2993, %v2989
    %v3118 = vpack.c.b16 %v2994, %v2990
    %v3119 = vpack.c.b16 %v2995, %v2991
    %v3120 = vpack.c.b16 %v3000, %v2996
    %v3121 = vpack.c.b16 %v3001, %v2997
    %v3122 = vpack.c.b16 %v3002, %v2998
    %v3123 = vpack.c.b16 %v3003, %v2999
    %v3124 = vpack.c.b16 %v3008, %v3004
    %v3125 = vpack.c.b16 %v3009, %v3005
    %v3126 = vpack.c.b16 %v3010, %v3006
    %v3127 = vpack.c.b16 %v3011, %v3007
    %v3128 = vpack.c.b16 %v3016, %v3012
    %v3129 = vpack.c.b16 %v3017, %v3013
    %v3130 = vpack.c.b16 %v3018, %v3014
    %v3131 = vpack.c.b16 %v3019, %v3015
    %v3132 = vpack.c.b16 %v3024, %v3020
    %v3133 = vpack.c.b16 %v3025, %v3021
    %v3134 = vpack.c.b16 %v3026, %v3022
    %v3135 = vpack.c.b16 %v3027, %v3023
    %v3136 = vpack.c.b16 %v3032, %v3028
    %v3137 = vpack.c.b16 %v3033, %v3029
    %v3138 = vpack.c.b16 %v3034, %v3030
    %v3139 = vpack.c.b16 %v3035, %v3031
    %v3140 = vpack.c.b16 %v3040, %v3036
    %v3141 = vpack.c.b16 %v3041, %v3037
    %v3142 = vpack.c.b16 %v3042, %v3038
    %v3143 = vpack.c.b16 %v3043, %v3039
    %v3144 = vpack.c.b16 %v3048, %v3044
    %v3145 = vpack.c.b16 %v3049, %v3045
    %v3146 = vpack.c.b16 %v3050, %v3046
    %v3147 = vpack.c.b16 %v3051, %v3047
    %v3148 = vpack.c.b16 %v3056, %v3052
    %v3149 = vpack.c.b16 %v3057, %v3053
    %v3150 = vpack.c.b16 %v3058, %v3054
    %v3151 = vpack.c.b16 %v3059, %v3055
    %v3152 = vpack.c.b16 %v3064, %v3060
    %v3153 = vpack.c.b16 %v3065, %v3061
    %v3154 = vpack.c.b16 %v3066, %v3062
    %v3155 = vpack.c.b16 %v3067, %v3063
    %v3156 = vpack.c.b16 %v3072, %v3068
    %v3157 = vpack.c.b16 %v3073, %v3069
    %v3158 = vpack.c.b16 %v3074, %v3070
    %v3159 = vpack.c.b16 %v3075, %v3071
    %v3160 = vpack.c.b16 %v3080, %v3076
    %v3161 = vpack.c.b16 %v3081, %v3077
    %v3162 = vpack.c.b16 %v3082, %v3078
    %v3163 = vpack.c.b16 %v3083, %v3079
    %v3164 = vpack.c.b16 %v3088, %v3084
    %v3165 = vpack.c.b16 %v3089, %v3085
    %v3166 = vpack.c.b16 %v3090, %v3086
    %v3167 = vpack.c.b16 %v3091, %v3087
    %v3168 = vpack.c.b16 %v3096, %v3092
    %v3169 = vpack.c.b16 %v3097, %v3093
    %v3170 = vpack.c.b16 %v3098, %v3094
    %v3171 = vpack.c.b16 %v3099, %v3095
    %v3172 = vpack.c.b16 %v3104, %v3100
    %v3173 = vpack.c.b16 %v3105, %v3101
    %v3174 = vpack.c.b16 %v3106, %v3102
    %v3175 = vpack.c.b16 %v3107, %v3103
    %v3176 = vpack.c.b16 %v3112, %v3108
    %v3177 = vpack.c.b16 %v3113, %v3109
    %v3178 = vpack.c.b16 %v3114, %v3110
    %v3179 = vpack.c.b16 %v3115, %v3111
    %3244 = vmatprep.subr.bf16.mxu0 %v3117
    %3245 = vmatpush1.bf16.msra.mxu0 %v3116
    %3246 = vmatprep.subr.bf16.mxu0 %v3121
    %3247 = vmatpush1.bf16.msra.mxu0 %v3120
    %3248 = vmatprep.subr.bf16.mxu0 %v3125
    %3249 = vmatpush1.bf16.msra.mxu0 %v3124
    %3250 = vmatprep.subr.bf16.mxu0 %v3129
    %3251 = vmatpush1.bf16.msra.mxu0 %v3128
    %3252 = vmatprep.subr.bf16.mxu0 %v3133
    %3253 = vmatpush1.bf16.msra.mxu0 %v3132
    %3254 = vmatprep.subr.bf16.mxu0 %v3137
    %3255 = vmatpush1.bf16.msra.mxu0 %v3136
    %3256 = vmatprep.subr.bf16.mxu0 %v3141
    %3257 = vmatpush1.bf16.msra.mxu0 %v3140
    %3258 = vmatprep.subr.bf16.mxu0 %v3145
    %3259 = vmatpush1.bf16.msra.mxu0 %v3144
    %3260 = vmatprep.subr.bf16.mxu0 %v3149
    %3261 = vmatpush1.bf16.msra.mxu0 %v3148
    %3262 = vmatprep.subr.bf16.mxu0 %v3153
    %3263 = vmatpush1.bf16.msra.mxu0 %v3152
    %3264 = vmatprep.subr.bf16.mxu0 %v3157
    %3265 = vmatpush1.bf16.msra.mxu0 %v3156
    %3266 = vmatprep.subr.bf16.mxu0 %v3161
    %3267 = vmatpush1.bf16.msra.mxu0 %v3160
    %3268 = vmatprep.subr.bf16.mxu0 %v3165
    %3269 = vmatpush1.bf16.msra.mxu0 %v3164
    %3270 = vmatprep.subr.bf16.mxu0 %v3169
    %3271 = vmatpush1.bf16.msra.mxu0 %v3168
    %3272 = vmatprep.subr.bf16.mxu0 %v3173
    %3273 = vmatpush1.bf16.msra.mxu0 %v3172
    %3274 = vmatprep.subr.bf16.mxu0 %v3177
    %3275 = vmatpush1.bf16.msra.mxu0 %v3176
    %3276 = vmatprep.mubr.bf16.mxu0 %v2859
    %3277 = vmatmul.mubr.bf16.gmra.mrb[0].mxu0 %v2858
    %v3278 = vpop.f32.mrb[0].mxu0
    %v3279 = vadd.f32 0.0, %v3278
    %v3280 = vpop.f32.mrb[0].mxu0
    %v3281 = vadd.f32 0.0, %v3280
    %v3282 = vpop.f32.mrb[0].mxu0
    %v3283 = vpop.f32.mrb[0].mxu0
    %3284 = vdwg.mxu0
    %3285 = vmatprep.subr.bf16.mxu0 %v3119
    %3286 = vmatpush1.bf16.msra.mxu0 %v3118
    %3287 = vmatprep.subr.bf16.mxu0 %v3123
    %3288 = vmatpush1.bf16.msra.mxu0 %v3122
    %3289 = vmatprep.subr.bf16.mxu0 %v3127
    %3290 = vmatpush1.bf16.msra.mxu0 %v3126
    %3291 = vmatprep.subr.bf16.mxu0 %v3131
    %3292 = vmatpush1.bf16.msra.mxu0 %v3130
    %3293 = vmatprep.subr.bf16.mxu0 %v3135
    %3294 = vmatpush1.bf16.msra.mxu0 %v3134
    %3295 = vmatprep.subr.bf16.mxu0 %v3139
    %3296 = vmatpush1.bf16.msra.mxu0 %v3138
    %3297 = vmatprep.subr.bf16.mxu0 %v3143
    %3298 = vmatpush1.bf16.msra.mxu0 %v3142
    %3299 = vmatprep.subr.bf16.mxu0 %v3147
    %3300 = vmatpush1.bf16.msra.mxu0 %v3146
    %3301 = vmatprep.subr.bf16.mxu0 %v3151
    %3302 = vmatpush1.bf16.msra.mxu0 %v3150
    %3303 = vmatprep.subr.bf16.mxu0 %v3155
    %3304 = vmatpush1.bf16.msra.mxu0 %v3154
    %3305 = vmatprep.subr.bf16.mxu0 %v3159
    %3306 = vmatpush1.bf16.msra.mxu0 %v3158
    %3307 = vmatprep.subr.bf16.mxu0 %v3163
    %3308 = vmatpush1.bf16.msra.mxu0 %v3162
    %3309 = vmatprep.subr.bf16.mxu0 %v3167
    %3310 = vmatpush1.bf16.msra.mxu0 %v3166
    %3311 = vmatprep.subr.bf16.mxu0 %v3171
    %3312 = vmatpush1.bf16.msra.mxu0 %v3170
    %3313 = vmatprep.subr.bf16.mxu0 %v3175
    %3314 = vmatpush1.bf16.msra.mxu0 %v3174
    %3315 = vmatprep.subr.bf16.mxu0 %v3179
    %3316 = vmatpush1.bf16.msra.mxu0 %v3178
    %3317 = vmatprep.mubr.bf16.mxu0 %v2859
    %3318 = vmatmul.mubr.bf16.gmra.mrb[0].mxu0 %v2858
    %v3319 = vpop.f32.mrb[0].mxu0
    %v3320 = vadd.f32 0.0, %v3319
    %v3321 = vpop.f32.mrb[0].mxu0
    %v3322 = vadd.f32 0.0, %v3321
    %v3323 = vpop.f32.mrb[0].mxu0
    %v3324 = vpop.f32.mrb[0].mxu0
    %3325 = vdwg.mxu0
    %v3328 = vlaneseq
    %v3329 = vshrl.u32 %v3328, 7
    %v3330 = vsub.s32 0, %v3329
    %v3331 = vrot.slane %v2856, %v3330
    %v3332 = vlaneseq
    %v3333 = vshrl.u32 %v3332, 7
    %v3334 = vsub.s32 4, %v3333
    %v3335 = vrot.slane %v2856, %v3334
    %v3336 = vlaneseq
    %v3337 = vshrl.u32 %v3336, 7
    %v3338 = vsub.s32 0, %v3337
    %v3339 = vrot.slane %v2857, %v3338
    %v3340 = vlaneseq
    %v3341 = vshrl.u32 %v3340, 7
    %v3342 = vsub.s32 4, %v3341
    %v3343 = vrot.slane %v2857, %v3342
    %v3348 = vlaneseq
    %v3349 = vshrl.u32 %v3348, 7
    %v3350 = vsub.s32 0, %v3349
    %v3351 = vrot.slane %v3331, %v3350
    %v3352 = vlaneseq
    %v3353 = vshrl.u32 %v3352, 7
    %v3354 = vsub.s32 0, %v3353
    %v3355 = vrot.slane %v3335, %v3354
    %v3356 = vlaneseq
    %v3357 = vshrl.u32 %v3356, 7
    %v3358 = vsub.s32 0, %v3357
    %v3359 = vrot.slane %v3339, %v3358
    %v3360 = vlaneseq
    %v3361 = vshrl.u32 %v3360, 7
    %v3362 = vsub.s32 0, %v3361
    %v3363 = vrot.slane %v3343, %v3362
    %v3364 = vmul.f32 %v3279, %v3351
    %v3365 = vmul.f32 %v3281, %v3355
    %v3366 = vmul.f32 %v3320, %v3359
    %v3367 = vmul.f32 %v3322, %v3363
    %v3368 = vlaneseq
    %v3369 = vshrl.u32 %v3368, 7
    %v3370 = vsub.s32 1, %v3369
    %v3371 = vrot.slane %v2856, %v3370
    %v3372 = vlaneseq
    %v3373 = vshrl.u32 %v3372, 7
    %v3374 = vsub.s32 5, %v3373
    %v3375 = vrot.slane %v2856, %v3374
    %v3376 = vlaneseq
    %v3377 = vshrl.u32 %v3376, 7
    %v3378 = vsub.s32 1, %v3377
    %v3379 = vrot.slane %v2857, %v3378
    %v3380 = vlaneseq
    %v3381 = vshrl.u32 %v3380, 7
    %v3382 = vsub.s32 5, %v3381
    %v3383 = vrot.slane %v2857, %v3382
    %v3388 = vlaneseq
    %v3389 = vshrl.u32 %v3388, 7
    %v3390 = vsub.s32 1, %v3389
    %v3391 = vrot.slane %v3371, %v3390
    %v3392 = vlaneseq
    %v3393 = vshrl.u32 %v3392, 7
    %v3394 = vsub.s32 1, %v3393
    %v3395 = vrot.slane %v3375, %v3394
    %v3396 = vlaneseq
    %v3397 = vshrl.u32 %v3396, 7
    %v3398 = vsub.s32 1, %v3397
    %v3399 = vrot.slane %v3379, %v3398
    %v3400 = vlaneseq
    %v3401 = vshrl.u32 %v3400, 7
    %v3402 = vsub.s32 1, %v3401
    %v3403 = vrot.slane %v3383, %v3402
    %v3404 = vadd.f32 %v3364, %v3391
    %v3405 = vadd.f32 %v3365, %v3395
    %v3406 = vadd.f32 %v3366, %v3399
    %v3407 = vadd.f32 %v3367, %v3403
    %v3408 = vmax.f32 %v3404, 0.0
    %v3409 = vmax.f32 %v3405, 0.0
    %v3410 = vmax.f32 %v3406, 0.0
    %v3411 = vmax.f32 %v3407, 0.0
    %v3412 = vpack.c.bf16 %v3408, %v3408
    %v3413 = vpack.c.bf16 %v3409, %v3409
    %v3414 = vld [vmem:[#allocation2] sm:$0xff]
    %v3415 = vld [vmem:[#allocation2 + $0x8] sm:$0xff]
    %v3416 = vld [vmem:[#allocation2 + $0x10] sm:$0xff]
    %v3417 = vld [vmem:[#allocation2 + $0x18] sm:$0xff]
    %v3418 = vld [vmem:[#allocation2 + $0x20] sm:$0xff]
    %v3419 = vld [vmem:[#allocation2 + $0x28] sm:$0xff]
    %v3420 = vld [vmem:[#allocation2 + $0x30] sm:$0xff]
    %v3421 = vld [vmem:[#allocation2 + $0x38] sm:$0xff]
    %v3422 = vld [vmem:[#allocation2 + $0x40] sm:$0xff]
    %v3423 = vld [vmem:[#allocation2 + $0x48] sm:$0xff]
    %v3424 = vld [vmem:[#allocation2 + $0x50] sm:$0xff]
    %v3425 = vld [vmem:[#allocation2 + $0x58] sm:$0xff]
    %v3426 = vld [vmem:[#allocation2 + $0x60] sm:$0xff]
    %v3427 = vld [vmem:[#allocation2 + $0x68] sm:$0xff]
    %v3428 = vld [vmem:[#allocation2 + $0x70] sm:$0xff]
    %v3429 = vld [vmem:[#allocation2 + $0x78] sm:$0xff]
    %v3430 = vld [vmem:[#allocation2 + $0x80] sm:$0xff]
    %v3431 = vld [vmem:[#allocation2 + $0x88] sm:$0xff]
    %v3432 = vld [vmem:[#allocation2 + $0x90] sm:$0xff]
    %v3433 = vld [vmem:[#allocation2 + $0x98] sm:$0xff]
    %v3434 = vld [vmem:[#allocation2 + $0xa0] sm:$0xff]
    %v3435 = vld [vmem:[#allocation2 + $0xa8] sm:$0xff]
    %v3436 = vld [vmem:[#allocation2 + $0xb0] sm:$0xff]
    %v3437 = vld [vmem:[#allocation2 + $0xb8] sm:$0xff]
    %v3438 = vld [vmem:[#allocation2 + $0xc0] sm:$0xff]
    %v3439 = vld [vmem:[#allocation2 + $0xc8] sm:$0xff]
    %v3440 = vld [vmem:[#allocation2 + $0xd0] sm:$0xff]
    %v3441 = vld [vmem:[#allocation2 + $0xd8] sm:$0xff]
    %v3442 = vld [vmem:[#allocation2 + $0xe0] sm:$0xff]
    %v3443 = vld [vmem:[#allocation2 + $0xe8] sm:$0xff]
    %v3444 = vld [vmem:[#allocation2 + $0xf0] sm:$0xff]
    %v3445 = vld [vmem:[#allocation2 + $0xf8] sm:$0xff]
    %v3446 = vlaneseq
    %v3447 = vshrl.u32 %v3446, 7
    %v3448 = vsub.s32 2, %v3447
    %v3449 = vrot.slane %v2856, %v3448
    %v3450 = vlaneseq
    %v3451 = vshrl.u32 %v3450, 7
    %v3452 = vsub.s32 6, %v3451
    %v3453 = vrot.slane %v2856, %v3452
    %v3456 = vlaneseq
    %v3457 = vshrl.u32 %v3456, 7
    %v3458 = vsub.s32 2, %v3457
    %v3459 = vrot.slane %v3449, %v3458
    %v3460 = vlaneseq
    %v3461 = vshrl.u32 %v3460, 7
    %v3462 = vsub.s32 2, %v3461
    %v3463 = vrot.slane %v3453, %v3462
    %v3496 = vunpack.c.l.b16 %v3414
    %v3497 = vunpack.c.h.b16 %v3414
    %v3498 = vunpack.c.l.b16 %v3415
    %v3499 = vunpack.c.h.b16 %v3415
    %v3500 = vunpack.c.l.b16 %v3416
    %v3501 = vunpack.c.h.b16 %v3416
    %v3502 = vunpack.c.l.b16 %v3417
    %v3503 = vunpack.c.h.b16 %v3417
    %v3504 = vunpack.c.l.b16 %v3418
    %v3505 = vunpack.c.h.b16 %v3418
    %v3506 = vunpack.c.l.b16 %v3419
    %v3507 = vunpack.c.h.b16 %v3419
    %v3508 = vunpack.c.l.b16 %v3420
    %v3509 = vunpack.c.h.b16 %v3420
    %v3510 = vunpack.c.l.b16 %v3421
    %v3511 = vunpack.c.h.b16 %v3421
    %v3512 = vunpack.c.l.b16 %v3422
    %v3513 = vunpack.c.h.b16 %v3422
    %v3514 = vunpack.c.l.b16 %v3423
    %v3515 = vunpack.c.h.b16 %v3423
    %v3516 = vunpack.c.l.b16 %v3424
    %v3517 = vunpack.c.h.b16 %v3424
    %v3518 = vunpack.c.l.b16 %v3425
    %v3519 = vunpack.c.h.b16 %v3425
    %v3520 = vunpack.c.l.b16 %v3426
    %v3521 = vunpack.c.h.b16 %v3426
    %v3522 = vunpack.c.l.b16 %v3427
    %v3523 = vunpack.c.h.b16 %v3427
    %v3524 = vunpack.c.l.b16 %v3428
    %v3525 = vunpack.c.h.b16 %v3428
    %v3526 = vunpack.c.l.b16 %v3429
    %v3527 = vunpack.c.h.b16 %v3429
    %v3528 = vunpack.c.l.b16 %v3430
    %v3529 = vunpack.c.h.b16 %v3430
    %v3530 = vunpack.c.l.b16 %v3431
    %v3531 = vunpack.c.h.b16 %v3431
    %v3532 = vunpack.c.l.b16 %v3432
    %v3533 = vunpack.c.h.b16 %v3432
    %v3534 = vunpack.c.l.b16 %v3433
    %v3535 = vunpack.c.h.b16 %v3433
    %v3536 = vunpack.c.l.b16 %v3434
    %v3537 = vunpack.c.h.b16 %v3434
    %v3538 = vunpack.c.l.b16 %v3435
    %v3539 = vunpack.c.h.b16 %v3435
    %v3540 = vunpack.c.l.b16 %v3436
    %v3541 = vunpack.c.h.b16 %v3436
    %v3542 = vunpack.c.l.b16 %v3437
    %v3543 = vunpack.c.h.b16 %v3437
    %v3544 = vunpack.c.l.b16 %v3438
    %v3545 = vunpack.c.h.b16 %v3438
    %v3546 = vunpack.c.l.b16 %v3439
    %v3547 = vunpack.c.h.b16 %v3439
    %v3548 = vunpack.c.l.b16 %v3440
    %v3549 = vunpack.c.h.b16 %v3440
    %v3550 = vunpack.c.l.b16 %v3441
    %v3551 = vunpack.c.h.b16 %v3441
    %v3552 = vunpack.c.l.b16 %v3442
    %v3553 = vunpack.c.h.b16 %v3442
    %v3554 = vunpack.c.l.b16 %v3443
    %v3555 = vunpack.c.h.b16 %v3443
    %v3556 = vunpack.c.l.b16 %v3444
    %v3557 = vunpack.c.h.b16 %v3444
    %v3558 = vunpack.c.l.b16 %v3445
    %v3559 = vunpack.c.h.b16 %v3445
    %v3560 = vpack.c.b16 %v3498, %v3496
    %v3561 = vpack.c.b16 %v3499, %v3497
    %v3562 = vpack.c.b16 %v3502, %v3500
    %v3563 = vpack.c.b16 %v3503, %v3501
    %v3564 = vpack.c.b16 %v3506, %v3504
    %v3565 = vpack.c.b16 %v3507, %v3505
    %v3566 = vpack.c.b16 %v3510, %v3508
    %v3567 = vpack.c.b16 %v3511, %v3509
    %v3568 = vpack.c.b16 %v3514, %v3512
    %v3569 = vpack.c.b16 %v3515, %v3513
    %v3570 = vpack.c.b16 %v3518, %v3516
    %v3571 = vpack.c.b16 %v3519, %v3517
    %v3572 = vpack.c.b16 %v3522, %v3520
    %v3573 = vpack.c.b16 %v3523, %v3521
    %v3574 = vpack.c.b16 %v3526, %v3524
    %v3575 = vpack.c.b16 %v3527, %v3525
    %v3576 = vpack.c.b16 %v3530, %v3528
    %v3577 = vpack.c.b16 %v3531, %v3529
    %v3578 = vpack.c.b16 %v3534, %v3532
    %v3579 = vpack.c.b16 %v3535, %v3533
    %v3580 = vpack.c.b16 %v3538, %v3536
    %v3581 = vpack.c.b16 %v3539, %v3537
    %v3582 = vpack.c.b16 %v3542, %v3540
    %v3583 = vpack.c.b16 %v3543, %v3541
    %v3584 = vpack.c.b16 %v3546, %v3544
    %v3585 = vpack.c.b16 %v3547, %v3545
    %v3586 = vpack.c.b16 %v3550, %v3548
    %v3587 = vpack.c.b16 %v3551, %v3549
    %v3588 = vpack.c.b16 %v3554, %v3552
    %v3589 = vpack.c.b16 %v3555, %v3553
    %v3590 = vpack.c.b16 %v3558, %v3556
    %v3591 = vpack.c.b16 %v3559, %v3557
    %3624 = vmatprep.subr.bf16.mxu0 %v3561
    %3625 = vmatpush1.bf16.msra.mxu0 %v3560
    %3626 = vmatprep.subr.bf16.mxu0 %v3563
    %3627 = vmatpush1.bf16.msra.mxu0 %v3562
    %3628 = vmatprep.subr.bf16.mxu0 %v3565
    %3629 = vmatpush1.bf16.msra.mxu0 %v3564
    %3630 = vmatprep.subr.bf16.mxu0 %v3567
    %3631 = vmatpush1.bf16.msra.mxu0 %v3566
    %3632 = vmatprep.subr.bf16.mxu0 %v3569
    %3633 = vmatpush1.bf16.msra.mxu0 %v3568
    %3634 = vmatprep.subr.bf16.mxu0 %v3571
    %3635 = vmatpush1.bf16.msra.mxu0 %v3570
    %3636 = vmatprep.subr.bf16.mxu0 %v3573
    %3637 = vmatpush1.bf16.msra.mxu0 %v3572
    %3638 = vmatprep.subr.bf16.mxu0 %v3575
    %3639 = vmatpush1.bf16.msra.mxu0 %v3574
    %3640 = vmatprep.subr.bf16.mxu0 %v3577
    %3641 = vmatpush1.bf16.msra.mxu0 %v3576
    %3642 = vmatprep.subr.bf16.mxu0 %v3579
    %3643 = vmatpush1.bf16.msra.mxu0 %v3578
    %3644 = vmatprep.subr.bf16.mxu0 %v3581
    %3645 = vmatpush1.bf16.msra.mxu0 %v3580
    %3646 = vmatprep.subr.bf16.mxu0 %v3583
    %3647 = vmatpush1.bf16.msra.mxu0 %v3582
    %3648 = vmatprep.subr.bf16.mxu0 %v3585
    %3649 = vmatpush1.bf16.msra.mxu0 %v3584
    %3650 = vmatprep.subr.bf16.mxu0 %v3587
    %3651 = vmatpush1.bf16.msra.mxu0 %v3586
    %3652 = vmatprep.subr.bf16.mxu0 %v3589
    %3653 = vmatpush1.bf16.msra.mxu0 %v3588
    %3654 = vmatprep.subr.bf16.mxu0 %v3591
    %3655 = vmatpush1.bf16.msra.mxu0 %v3590
    %3656 = vmatprep.mubr.bf16.mxu0 %v3413
    %3657 = vmatmul.mubr.bf16.gmra.mrb[0].mxu0 %v3412
    %v3658 = vpop.f32.mrb[0].mxu0
    %v3659 = vadd.f32 %v3459, %v3658
    %v3660 = vpop.f32.mrb[0].mxu0
    %v3661 = vadd.f32 %v3463, %v3660
    %v3662 = vpop.f32.mrb[0].mxu0
    %v3663 = vpop.f32.mrb[0].mxu0
    %3664 = vdwg.mxu0
    %v3665 = vmax.f32 %v3659, 0.0
    %v3666 = vmax.f32 %v3661, 0.0
    %v3667 = vpack.c.bf16 %v3665, %v3665
    %v3668 = vpack.c.bf16 %v3666, %v3666
    %v3669 = vld [vmem:[#allocation5] sm:$0xff]
    %v3670 = vld [vmem:[#allocation5 + $0x8] sm:$0xff]
    %v3671 = vld [vmem:[#allocation5 + $0x10] sm:$0xff]
    %v3672 = vld [vmem:[#allocation5 + $0x18] sm:$0xff]
    %v3673 = vld [vmem:[#allocation5 + $0x20] sm:$0xff]
    %v3674 = vld [vmem:[#allocation5 + $0x28] sm:$0xff]
    %v3675 = vld [vmem:[#allocation5 + $0x30] sm:$0xff]
    %v3676 = vld [vmem:[#allocation5 + $0x38] sm:$0xff]
    %v3677 = vld [vmem:[#allocation5 + $0x40] sm:$0xff]
    %v3678 = vld [vmem:[#allocation5 + $0x48] sm:$0xff]
    %v3679 = vld [vmem:[#allocation5 + $0x50] sm:$0xff]
    %v3680 = vld [vmem:[#allocation5 + $0x58] sm:$0xff]
    %v3681 = vld [vmem:[#allocation5 + $0x60] sm:$0xff]
    %v3682 = vld [vmem:[#allocation5 + $0x68] sm:$0xff]
    %v3683 = vld [vmem:[#allocation5 + $0x70] sm:$0xff]
    %v3684 = vld [vmem:[#allocation5 + $0x78] sm:$0xff]
    %v3685 = vld [vmem:[#allocation5 + $0x80] sm:$0xff]
    %v3686 = vld [vmem:[#allocation5 + $0x88] sm:$0xff]
    %v3687 = vld [vmem:[#allocation5 + $0x90] sm:$0xff]
    %v3688 = vld [vmem:[#allocation5 + $0x98] sm:$0xff]
    %v3689 = vld [vmem:[#allocation5 + $0xa0] sm:$0xff]
    %v3690 = vld [vmem:[#allocation5 + $0xa8] sm:$0xff]
    %v3691 = vld [vmem:[#allocation5 + $0xb0] sm:$0xff]
    %v3692 = vld [vmem:[#allocation5 + $0xb8] sm:$0xff]
    %v3693 = vld [vmem:[#allocation5 + $0xc0] sm:$0xff]
    %v3694 = vld [vmem:[#allocation5 + $0xc8] sm:$0xff]
    %v3695 = vld [vmem:[#allocation5 + $0xd0] sm:$0xff]
    %v3696 = vld [vmem:[#allocation5 + $0xd8] sm:$0xff]
    %v3697 = vld [vmem:[#allocation5 + $0xe0] sm:$0xff]
    %v3698 = vld [vmem:[#allocation5 + $0xe8] sm:$0xff]
    %v3699 = vld [vmem:[#allocation5 + $0xf0] sm:$0xff]
    %v3700 = vld [vmem:[#allocation5 + $0xf8] sm:$0xff]
    %v3701 = vlaneseq
    %v3702 = vshrl.u32 %v3701, 7
    %v3703 = vsub.s32 3, %v3702
    %v3704 = vrot.slane %v2856, %v3703
    %v3705 = vlaneseq
    %v3706 = vshrl.u32 %v3705, 7
    %v3707 = vsub.s32 7, %v3706
    %v3708 = vrot.slane %v2856, %v3707
    %v3711 = vlaneseq
    %v3712 = vshrl.u32 %v3711, 7
    %v3713 = vsub.s32 3, %v3712
    %v3714 = vrot.slane %v3704, %v3713
    %v3715 = vlaneseq
    %v3716 = vshrl.u32 %v3715, 7
    %v3717 = vsub.s32 3, %v3716
    %v3718 = vrot.slane %v3708, %v3717
    %v3751 = vunpack.c.l.b16 %v3669
    %v3752 = vunpack.c.h.b16 %v3669
    %v3753 = vunpack.c.l.b16 %v3670
    %v3754 = vunpack.c.h.b16 %v3670
    %v3755 = vunpack.c.l.b16 %v3671
    %v3756 = vunpack.c.h.b16 %v3671
    %v3757 = vunpack.c.l.b16 %v3672
    %v3758 = vunpack.c.h.b16 %v3672
    %v3759 = vunpack.c.l.b16 %v3673
    %v3760 = vunpack.c.h.b16 %v3673
    %v3761 = vunpack.c.l.b16 %v3674
    %v3762 = vunpack.c.h.b16 %v3674
    %v3763 = vunpack.c.l.b16 %v3675
    %v3764 = vunpack.c.h.b16 %v3675
    %v3765 = vunpack.c.l.b16 %v3676
    %v3766 = vunpack.c.h.b16 %v3676
    %v3767 = vunpack.c.l.b16 %v3677
    %v3768 = vunpack.c.h.b16 %v3677
    %v3769 = vunpack.c.l.b16 %v3678
    %v3770 = vunpack.c.h.b16 %v3678
    %v3771 = vunpack.c.l.b16 %v3679
    %v3772 = vunpack.c.h.b16 %v3679
    %v3773 = vunpack.c.l.b16 %v3680
    %v3774 = vunpack.c.h.b16 %v3680
    %v3775 = vunpack.c.l.b16 %v3681
    %v3776 = vunpack.c.h.b16 %v3681
    %v3777 = vunpack.c.l.b16 %v3682
    %v3778 = vunpack.c.h.b16 %v3682
    %v3779 = vunpack.c.l.b16 %v3683
    %v3780 = vunpack.c.h.b16 %v3683
    %v3781 = vunpack.c.l.b16 %v3684
    %v3782 = vunpack.c.h.b16 %v3684
    %v3783 = vunpack.c.l.b16 %v3685
    %v3784 = vunpack.c.h.b16 %v3685
    %v3785 = vunpack.c.l.b16 %v3686
    %v3786 = vunpack.c.h.b16 %v3686
    %v3787 = vunpack.c.l.b16 %v3687
    %v3788 = vunpack.c.h.b16 %v3687
    %v3789 = vunpack.c.l.b16 %v3688
    %v3790 = vunpack.c.h.b16 %v3688
    %v3791 = vunpack.c.l.b16 %v3689
    %v3792 = vunpack.c.h.b16 %v3689
    %v3793 = vunpack.c.l.b16 %v3690
    %v3794 = vunpack.c.h.b16 %v3690
    %v3795 = vunpack.c.l.b16 %v3691
    %v3796 = vunpack.c.h.b16 %v3691
    %v3797 = vunpack.c.l.b16 %v3692
    %v3798 = vunpack.c.h.b16 %v3692
    %v3799 = vunpack.c.l.b16 %v3693
    %v3800 = vunpack.c.h.b16 %v3693
    %v3801 = vunpack.c.l.b16 %v3694
    %v3802 = vunpack.c.h.b16 %v3694
    %v3803 = vunpack.c.l.b16 %v3695
    %v3804 = vunpack.c.h.b16 %v3695
    %v3805 = vunpack.c.l.b16 %v3696
    %v3806 = vunpack.c.h.b16 %v3696
    %v3807 = vunpack.c.l.b16 %v3697
    %v3808 = vunpack.c.h.b16 %v3697
    %v3809 = vunpack.c.l.b16 %v3698
    %v3810 = vunpack.c.h.b16 %v3698
    %v3811 = vunpack.c.l.b16 %v3699
    %v3812 = vunpack.c.h.b16 %v3699
    %v3813 = vunpack.c.l.b16 %v3700
    %v3814 = vunpack.c.h.b16 %v3700
    %v3815 = vpack.c.b16 %v3753, %v3751
    %v3816 = vpack.c.b16 %v3754, %v3752
    %v3817 = vpack.c.b16 %v3757, %v3755
    %v3818 = vpack.c.b16 %v3758, %v3756
    %v3819 = vpack.c.b16 %v3761, %v3759
    %v3820 = vpack.c.b16 %v3762, %v3760
    %v3821 = vpack.c.b16 %v3765, %v3763
    %v3822 = vpack.c.b16 %v3766, %v3764
    %v3823 = vpack.c.b16 %v3769, %v3767
    %v3824 = vpack.c.b16 %v3770, %v3768
    %v3825 = vpack.c.b16 %v3773, %v3771
    %v3826 = vpack.c.b16 %v3774, %v3772
    %v3827 = vpack.c.b16 %v3777, %v3775
    %v3828 = vpack.c.b16 %v3778, %v3776
    %v3829 = vpack.c.b16 %v3781, %v3779
    %v3830 = vpack.c.b16 %v3782, %v3780
    %v3831 = vpack.c.b16 %v3785, %v3783
    %v3832 = vpack.c.b16 %v3786, %v3784
    %v3833 = vpack.c.b16 %v3789, %v3787
    %v3834 = vpack.c.b16 %v3790, %v3788
    %v3835 = vpack.c.b16 %v3793, %v3791
    %v3836 = vpack.c.b16 %v3794, %v3792
    %v3837 = vpack.c.b16 %v3797, %v3795
    %v3838 = vpack.c.b16 %v3798, %v3796
    %v3839 = vpack.c.b16 %v3801, %v3799
    %v3840 = vpack.c.b16 %v3802, %v3800
    %v3841 = vpack.c.b16 %v3805, %v3803
    %v3842 = vpack.c.b16 %v3806, %v3804
    %v3843 = vpack.c.b16 %v3809, %v3807
    %v3844 = vpack.c.b16 %v3810, %v3808
    %v3845 = vpack.c.b16 %v3813, %v3811
    %v3846 = vpack.c.b16 %v3814, %v3812
    %3879 = vmatprep.subr.bf16.mxu0 %v3816
    %3880 = vmatpush1.bf16.msra.mxu0 %v3815
    %3881 = vmatprep.subr.bf16.mxu0 %v3818
    %3882 = vmatpush1.bf16.msra.mxu0 %v3817
    %3883 = vmatprep.subr.bf16.mxu0 %v3820
    %3884 = vmatpush1.bf16.msra.mxu0 %v3819
    %3885 = vmatprep.subr.bf16.mxu0 %v3822
    %3886 = vmatpush1.bf16.msra.mxu0 %v3821
    %3887 = vmatprep.subr.bf16.mxu0 %v3824
    %3888 = vmatpush1.bf16.msra.mxu0 %v3823
    %3889 = vmatprep.subr.bf16.mxu0 %v3826
    %3890 = vmatpush1.bf16.msra.mxu0 %v3825
    %3891 = vmatprep.subr.bf16.mxu0 %v3828
    %3892 = vmatpush1.bf16.msra.mxu0 %v3827
    %3893 = vmatprep.subr.bf16.mxu0 %v3830
    %3894 = vmatpush1.bf16.msra.mxu0 %v3829
    %3895 = vmatprep.subr.bf16.mxu0 %v3832
    %3896 = vmatpush1.bf16.msra.mxu0 %v3831
    %3897 = vmatprep.subr.bf16.mxu0 %v3834
    %3898 = vmatpush1.bf16.msra.mxu0 %v3833
    %3899 = vmatprep.subr.bf16.mxu0 %v3836
    %3900 = vmatpush1.bf16.msra.mxu0 %v3835
    %3901 = vmatprep.subr.bf16.mxu0 %v3838
    %3902 = vmatpush1.bf16.msra.mxu0 %v3837
    %3903 = vmatprep.subr.bf16.mxu0 %v3840
    %3904 = vmatpush1.bf16.msra.mxu0 %v3839
    %3905 = vmatprep.subr.bf16.mxu0 %v3842
    %3906 = vmatpush1.bf16.msra.mxu0 %v3841
    %3907 = vmatprep.subr.bf16.mxu0 %v3844
    %3908 = vmatpush1.bf16.msra.mxu0 %v3843
    %3909 = vmatprep.subr.bf16.mxu0 %v3846
    %3910 = vmatpush1.bf16.msra.mxu0 %v3845
    %3911 = vmatprep.mubr.bf16.mxu0 %v3668
    %3912 = vmatmul.mubr.bf16.gmra.mrb[0].mxu0 %v3667
    %v3913 = vpop.f32.mrb[0].mxu0
    %v3914 = vadd.f32 %v3714, %v3913
    %v3915 = vpop.f32.mrb[0].mxu0
    %v3916 = vadd.f32 %v3718, %v3915
    %v3917 = vpop.f32.mrb[0].mxu0
    %v3918 = vpop.f32.mrb[0].mxu0
    %3919 = vdwg.mxu0
    %v3920 = vmax.f32 %v3914, 0.0
    %v3921 = vmax.f32 %v3916, 0.0
    %v3922 = vpack.c.bf16 %v3410, %v3410
    %v3923 = vpack.c.bf16 %v3411, %v3411
    %s3924 = scalar_lea.vmem [#allocation2], 256
    %v3925 = vld [vmem:[%s3924] sm:$0xff]
    %v3926 = vld [vmem:[%s3924 + $0x8] sm:$0xff]
    %v3927 = vld [vmem:[%s3924 + $0x10] sm:$0xff]
    %v3928 = vld [vmem:[%s3924 + $0x18] sm:$0xff]
    %v3929 = vld [vmem:[%s3924 + $0x20] sm:$0xff]
    %v3930 = vld [vmem:[%s3924 + $0x28] sm:$0xff]
    %v3931 = vld [vmem:[%s3924 + $0x30] sm:$0xff]
    %v3932 = vld [vmem:[%s3924 + $0x38] sm:$0xff]
    %v3933 = vld [vmem:[%s3924 + $0x40] sm:$0xff]
    %v3934 = vld [vmem:[%s3924 + $0x48] sm:$0xff]
    %v3935 = vld [vmem:[%s3924 + $0x50] sm:$0xff]
    %v3936 = vld [vmem:[%s3924 + $0x58] sm:$0xff]
    %v3937 = vld [vmem:[%s3924 + $0x60] sm:$0xff]
    %v3938 = vld [vmem:[%s3924 + $0x68] sm:$0xff]
    %v3939 = vld [vmem:[%s3924 + $0x70] sm:$0xff]
    %v3940 = vld [vmem:[%s3924 + $0x78] sm:$0xff]
    %v3941 = vld [vmem:[%s3924 + $0x80] sm:$0xff]
    %v3942 = vld [vmem:[%s3924 + $0x88] sm:$0xff]
    %v3943 = vld [vmem:[%s3924 + $0x90] sm:$0xff]
    %v3944 = vld [vmem:[%s3924 + $0x98] sm:$0xff]
    %v3945 = vld [vmem:[%s3924 + $0xa0] sm:$0xff]
    %v3946 = vld [vmem:[%s3924 + $0xa8] sm:$0xff]
    %v3947 = vld [vmem:[%s3924 + $0xb0] sm:$0xff]
    %v3948 = vld [vmem:[%s3924 + $0xb8] sm:$0xff]
    %v3949 = vld [vmem:[%s3924 + $0xc0] sm:$0xff]
    %v3950 = vld [vmem:[%s3924 + $0xc8] sm:$0xff]
    %v3951 = vld [vmem:[%s3924 + $0xd0] sm:$0xff]
    %v3952 = vld [vmem:[%s3924 + $0xd8] sm:$0xff]
    %v3953 = vld [vmem:[%s3924 + $0xe0] sm:$0xff]
    %v3954 = vld [vmem:[%s3924 + $0xe8] sm:$0xff]
    %v3955 = vld [vmem:[%s3924 + $0xf0] sm:$0xff]
    %v3956 = vld [vmem:[%s3924 + $0xf8] sm:$0xff]
    %v3957 = vlaneseq
    %v3958 = vshrl.u32 %v3957, 7
    %v3959 = vsub.s32 2, %v3958
    %v3960 = vrot.slane %v2857, %v3959
    %v3961 = vlaneseq
    %v3962 = vshrl.u32 %v3961, 7
    %v3963 = vsub.s32 6, %v3962
    %v3964 = vrot.slane %v2857, %v3963
    %v3967 = vlaneseq
    %v3968 = vshrl.u32 %v3967, 7
    %v3969 = vsub.s32 2, %v3968
    %v3970 = vrot.slane %v3960, %v3969
    %v3971 = vlaneseq
    %v3972 = vshrl.u32 %v3971, 7
    %v3973 = vsub.s32 2, %v3972
    %v3974 = vrot.slane %v3964, %v3973
    %v4007 = vunpack.c.l.b16 %v3925
    %v4008 = vunpack.c.h.b16 %v3925
    %v4009 = vunpack.c.l.b16 %v3926
    %v4010 = vunpack.c.h.b16 %v3926
    %v4011 = vunpack.c.l.b16 %v3927
    %v4012 = vunpack.c.h.b16 %v3927
    %v4013 = vunpack.c.l.b16 %v3928
    %v4014 = vunpack.c.h.b16 %v3928
    %v4015 = vunpack.c.l.b16 %v3929
    %v4016 = vunpack.c.h.b16 %v3929
    %v4017 = vunpack.c.l.b16 %v3930
    %v4018 = vunpack.c.h.b16 %v3930
    %v4019 = vunpack.c.l.b16 %v3931
    %v4020 = vunpack.c.h.b16 %v3931
    %v4021 = vunpack.c.l.b16 %v3932
    %v4022 = vunpack.c.h.b16 %v3932
    %v4023 = vunpack.c.l.b16 %v3933
    %v4024 = vunpack.c.h.b16 %v3933
    %v4025 = vunpack.c.l.b16 %v3934
    %v4026 = vunpack.c.h.b16 %v3934
    %v4027 = vunpack.c.l.b16 %v3935
    %v4028 = vunpack.c.h.b16 %v3935
    %v4029 = vunpack.c.l.b16 %v3936
    %v4030 = vunpack.c.h.b16 %v3936
    %v4031 = vunpack.c.l.b16 %v3937
    %v4032 = vunpack.c.h.b16 %v3937
    %v4033 = vunpack.c.l.b16 %v3938
    %v4034 = vunpack.c.h.b16 %v3938
    %v4035 = vunpack.c.l.b16 %v3939
    %v4036 = vunpack.c.h.b16 %v3939
    %v4037 = vunpack.c.l.b16 %v3940
    %v4038 = vunpack.c.h.b16 %v3940
    %v4039 = vunpack.c.l.b16 %v3941
    %v4040 = vunpack.c.h.b16 %v3941
    %v4041 = vunpack.c.l.b16 %v3942
    %v4042 = vunpack.c.h.b16 %v3942
    %v4043 = vunpack.c.l.b16 %v3943
    %v4044 = vunpack.c.h.b16 %v3943
    %v4045 = vunpack.c.l.b16 %v3944
    %v4046 = vunpack.c.h.b16 %v3944
    %v4047 = vunpack.c.l.b16 %v3945
    %v4048 = vunpack.c.h.b16 %v3945
    %v4049 = vunpack.c.l.b16 %v3946
    %v4050 = vunpack.c.h.b16 %v3946
    %v4051 = vunpack.c.l.b16 %v3947
    %v4052 = vunpack.c.h.b16 %v3947
    %v4053 = vunpack.c.l.b16 %v3948
    %v4054 = vunpack.c.h.b16 %v3948
    %v4055 = vunpack.c.l.b16 %v3949
    %v4056 = vunpack.c.h.b16 %v3949
    %v4057 = vunpack.c.l.b16 %v3950
    %v4058 = vunpack.c.h.b16 %v3950
    %v4059 = vunpack.c.l.b16 %v3951
    %v4060 = vunpack.c.h.b16 %v3951
    %v4061 = vunpack.c.l.b16 %v3952
    %v4062 = vunpack.c.h.b16 %v3952
    %v4063 = vunpack.c.l.b16 %v3953
    %v4064 = vunpack.c.h.b16 %v3953
    %v4065 = vunpack.c.l.b16 %v3954
    %v4066 = vunpack.c.h.b16 %v3954
    %v4067 = vunpack.c.l.b16 %v3955
    %v4068 = vunpack.c.h.b16 %v3955
    %v4069 = vunpack.c.l.b16 %v3956
    %v4070 = vunpack.c.h.b16 %v3956
    %v4071 = vpack.c.b16 %v4009, %v4007
    %v4072 = vpack.c.b16 %v4010, %v4008
    %v4073 = vpack.c.b16 %v4013, %v4011
    %v4074 = vpack.c.b16 %v4014, %v4012
    %v4075 = vpack.c.b16 %v4017, %v4015
    %v4076 = vpack.c.b16 %v4018, %v4016
    %v4077 = vpack.c.b16 %v4021, %v4019
    %v4078 = vpack.c.b16 %v4022, %v4020
    %v4079 = vpack.c.b16 %v4025, %v4023
    %v4080 = vpack.c.b16 %v4026, %v4024
    %v4081 = vpack.c.b16 %v4029, %v4027
    %v4082 = vpack.c.b16 %v4030, %v4028
    %v4083 = vpack.c.b16 %v4033, %v4031
    %v4084 = vpack.c.b16 %v4034, %v4032
    %v4085 = vpack.c.b16 %v4037, %v4035
    %v4086 = vpack.c.b16 %v4038, %v4036
    %v4087 = vpack.c.b16 %v4041, %v4039
    %v4088 = vpack.c.b16 %v4042, %v4040
    %v4089 = vpack.c.b16 %v4045, %v4043
    %v4090 = vpack.c.b16 %v4046, %v4044
    %v4091 = vpack.c.b16 %v4049, %v4047
    %v4092 = vpack.c.b16 %v4050, %v4048
    %v4093 = vpack.c.b16 %v4053, %v4051
    %v4094 = vpack.c.b16 %v4054, %v4052
    %v4095 = vpack.c.b16 %v4057, %v4055
    %v4096 = vpack.c.b16 %v4058, %v4056
    %v4097 = vpack.c.b16 %v4061, %v4059
    %v4098 = vpack.c.b16 %v4062, %v4060
    %v4099 = vpack.c.b16 %v4065, %v4063
    %v4100 = vpack.c.b16 %v4066, %v4064
    %v4101 = vpack.c.b16 %v4069, %v4067
    %v4102 = vpack.c.b16 %v4070, %v4068
    %4135 = vmatprep.subr.bf16.mxu0 %v4072
    %4136 = vmatpush1.bf16.msra.mxu0 %v4071
    %4137 = vmatprep.subr.bf16.mxu0 %v4074
    %4138 = vmatpush1.bf16.msra.mxu0 %v4073
    %4139 = vmatprep.subr.bf16.mxu0 %v4076
    %4140 = vmatpush1.bf16.msra.mxu0 %v4075
    %4141 = vmatprep.subr.bf16.mxu0 %v4078
    %4142 = vmatpush1.bf16.msra.mxu0 %v4077
    %4143 = vmatprep.subr.bf16.mxu0 %v4080
    %4144 = vmatpush1.bf16.msra.mxu0 %v4079
    %4145 = vmatprep.subr.bf16.mxu0 %v4082
    %4146 = vmatpush1.bf16.msra.mxu0 %v4081
    %4147 = vmatprep.subr.bf16.mxu0 %v4084
    %4148 = vmatpush1.bf16.msra.mxu0 %v4083
    %4149 = vmatprep.subr.bf16.mxu0 %v4086
    %4150 = vmatpush1.bf16.msra.mxu0 %v4085
    %4151 = vmatprep.subr.bf16.mxu0 %v4088
    %4152 = vmatpush1.bf16.msra.mxu0 %v4087
    %4153 = vmatprep.subr.bf16.mxu0 %v4090
    %4154 = vmatpush1.bf16.msra.mxu0 %v4089
    %4155 = vmatprep.subr.bf16.mxu0 %v4092
    %4156 = vmatpush1.bf16.msra.mxu0 %v4091
    %4157 = vmatprep.subr.bf16.mxu0 %v4094
    %4158 = vmatpush1.bf16.msra.mxu0 %v4093
    %4159 = vmatprep.subr.bf16.mxu0 %v4096
    %4160 = vmatpush1.bf16.msra.mxu0 %v4095
    %4161 = vmatprep.subr.bf16.mxu0 %v4098
    %4162 = vmatpush1.bf16.msra.mxu0 %v4097
    %4163 = vmatprep.subr.bf16.mxu0 %v4100
    %4164 = vmatpush1.bf16.msra.mxu0 %v4099
    %4165 = vmatprep.subr.bf16.mxu0 %v4102
    %4166 = vmatpush1.bf16.msra.mxu0 %v4101
    %4167 = vmatprep.mubr.bf16.mxu0 %v3923
    %4168 = vmatmul.mubr.bf16.gmra.mrb[0].mxu0 %v3922
    %v4169 = vpop.f32.mrb[0].mxu0
    %v4170 = vadd.f32 %v3970, %v4169
    %v4171 = vpop.f32.mrb[0].mxu0
    %v4172 = vadd.f32 %v3974, %v4171
    %v4173 = vpop.f32.mrb[0].mxu0
    %v4174 = vpop.f32.mrb[0].mxu0
    %4175 = vdwg.mxu0
    %v4176 = vmax.f32 %v4170, 0.0
    %v4177 = vmax.f32 %v4172, 0.0
    %v4178 = vpack.c.bf16 %v4176, %v4176
    %v4179 = vpack.c.bf16 %v4177, %v4177
    %s4180 = scalar_lea.vmem [#allocation5], 256
    %v4181 = vld [vmem:[%s4180] sm:$0xff]
    %v4182 = vld [vmem:[%s4180 + $0x8] sm:$0xff]
    %v4183 = vld [vmem:[%s4180 + $0x10] sm:$0xff]
    %v4184 = vld [vmem:[%s4180 + $0x18] sm:$0xff]
    %v4185 = vld [vmem:[%s4180 + $0x20] sm:$0xff]
    %v4186 = vld [vmem:[%s4180 + $0x28] sm:$0xff]
    %v4187 = vld [vmem:[%s4180 + $0x30] sm:$0xff]
    %v4188 = vld [vmem:[%s4180 + $0x38] sm:$0xff]
    %v4189 = vld [vmem:[%s4180 + $0x40] sm:$0xff]
    %v4190 = vld [vmem:[%s4180 + $0x48] sm:$0xff]
    %v4191 = vld [vmem:[%s4180 + $0x50] sm:$0xff]
    %v4192 = vld [vmem:[%s4180 + $0x58] sm:$0xff]
    %v4193 = vld [vmem:[%s4180 + $0x60] sm:$0xff]
    %v4194 = vld [vmem:[%s4180 + $0x68] sm:$0xff]
    %v4195 = vld [vmem:[%s4180 + $0x70] sm:$0xff]
    %v4196 = vld [vmem:[%s4180 + $0x78] sm:$0xff]
    %v4197 = vld [vmem:[%s4180 + $0x80] sm:$0xff]
    %v4198 = vld [vmem:[%s4180 + $0x88] sm:$0xff]
    %v4199 = vld [vmem:[%s4180 + $0x90] sm:$0xff]
    %v4200 = vld [vmem:[%s4180 + $0x98] sm:$0xff]
    %v4201 = vld [vmem:[%s4180 + $0xa0] sm:$0xff]
    %v4202 = vld [vmem:[%s4180 + $0xa8] sm:$0xff]
    %v4203 = vld [vmem:[%s4180 + $0xb0] sm:$0xff]
    %v4204 = vld [vmem:[%s4180 + $0xb8] sm:$0xff]
    %v4205 = vld [vmem:[%s4180 + $0xc0] sm:$0xff]
    %v4206 = vld [vmem:[%s4180 + $0xc8] sm:$0xff]
    %v4207 = vld [vmem:[%s4180 + $0xd0] sm:$0xff]
    %v4208 = vld [vmem:[%s4180 + $0xd8] sm:$0xff]
    %v4209 = vld [vmem:[%s4180 + $0xe0] sm:$0xff]
    %v4210 = vld [vmem:[%s4180 + $0xe8] sm:$0xff]
    %v4211 = vld [vmem:[%s4180 + $0xf0] sm:$0xff]
    %v4212 = vld [vmem:[%s4180 + $0xf8] sm:$0xff]
    %v4213 = vlaneseq
    %v4214 = vshrl.u32 %v4213, 7
    %v4215 = vsub.s32 3, %v4214
    %v4216 = vrot.slane %v2857, %v4215
    %v4217 = vlaneseq
    %v4218 = vshrl.u32 %v4217, 7
    %v4219 = vsub.s32 7, %v4218
    %v4220 = vrot.slane %v2857, %v4219
    %v4223 = vlaneseq
    %v4224 = vshrl.u32 %v4223, 7
    %v4225 = vsub.s32 3, %v4224
    %v4226 = vrot.slane %v4216, %v4225
    %v4227 = vlaneseq
    %v4228 = vshrl.u32 %v4227, 7
    %v4229 = vsub.s32 3, %v4228
    %v4230 = vrot.slane %v4220, %v4229
    %v4263 = vunpack.c.l.b16 %v4181
    %v4264 = vunpack.c.h.b16 %v4181
    %v4265 = vunpack.c.l.b16 %v4182
    %v4266 = vunpack.c.h.b16 %v4182
    %v4267 = vunpack.c.l.b16 %v4183
    %v4268 = vunpack.c.h.b16 %v4183
    %v4269 = vunpack.c.l.b16 %v4184
    %v4270 = vunpack.c.h.b16 %v4184
    %v4271 = vunpack.c.l.b16 %v4185
    %v4272 = vunpack.c.h.b16 %v4185
    %v4273 = vunpack.c.l.b16 %v4186
    %v4274 = vunpack.c.h.b16 %v4186
    %v4275 = vunpack.c.l.b16 %v4187
    %v4276 = vunpack.c.h.b16 %v4187
    %v4277 = vunpack.c.l.b16 %v4188
    %v4278 = vunpack.c.h.b16 %v4188
    %v4279 = vunpack.c.l.b16 %v4189
    %v4280 = vunpack.c.h.b16 %v4189
    %v4281 = vunpack.c.l.b16 %v4190
    %v4282 = vunpack.c.h.b16 %v4190
    %v4283 = vunpack.c.l.b16 %v4191
    %v4284 = vunpack.c.h.b16 %v4191
    %v4285 = vunpack.c.l.b16 %v4192
    %v4286 = vunpack.c.h.b16 %v4192
    %v4287 = vunpack.c.l.b16 %v4193
    %v4288 = vunpack.c.h.b16 %v4193
    %v4289 = vunpack.c.l.b16 %v4194
    %v4290 = vunpack.c.h.b16 %v4194
    %v4291 = vunpack.c.l.b16 %v4195
    %v4292 = vunpack.c.h.b16 %v4195
    %v4293 = vunpack.c.l.b16 %v4196
    %v4294 = vunpack.c.h.b16 %v4196
    %v4295 = vunpack.c.l.b16 %v4197
    %v4296 = vunpack.c.h.b16 %v4197
    %v4297 = vunpack.c.l.b16 %v4198
    %v4298 = vunpack.c.h.b16 %v4198
    %v4299 = vunpack.c.l.b16 %v4199
    %v4300 = vunpack.c.h.b16 %v4199
    %v4301 = vunpack.c.l.b16 %v4200
    %v4302 = vunpack.c.h.b16 %v4200
    %v4303 = vunpack.c.l.b16 %v4201
    %v4304 = vunpack.c.h.b16 %v4201
    %v4305 = vunpack.c.l.b16 %v4202
    %v4306 = vunpack.c.h.b16 %v4202
    %v4307 = vunpack.c.l.b16 %v4203
    %v4308 = vunpack.c.h.b16 %v4203
    %v4309 = vunpack.c.l.b16 %v4204
    %v4310 = vunpack.c.h.b16 %v4204
    %v4311 = vunpack.c.l.b16 %v4205
    %v4312 = vunpack.c.h.b16 %v4205
    %v4313 = vunpack.c.l.b16 %v4206
    %v4314 = vunpack.c.h.b16 %v4206
    %v4315 = vunpack.c.l.b16 %v4207
    %v4316 = vunpack.c.h.b16 %v4207
    %v4317 = vunpack.c.l.b16 %v4208
    %v4318 = vunpack.c.h.b16 %v4208
    %v4319 = vunpack.c.l.b16 %v4209
    %v4320 = vunpack.c.h.b16 %v4209
    %v4321 = vunpack.c.l.b16 %v4210
    %v4322 = vunpack.c.h.b16 %v4210
    %v4323 = vunpack.c.l.b16 %v4211
    %v4324 = vunpack.c.h.b16 %v4211
    %v4325 = vunpack.c.l.b16 %v4212
    %v4326 = vunpack.c.h.b16 %v4212
    %v4327 = vpack.c.b16 %v4265, %v4263
    %v4328 = vpack.c.b16 %v4266, %v4264
    %v4329 = vpack.c.b16 %v4269, %v4267
    %v4330 = vpack.c.b16 %v4270, %v4268
    %v4331 = vpack.c.b16 %v4273, %v4271
    %v4332 = vpack.c.b16 %v4274, %v4272
    %v4333 = vpack.c.b16 %v4277, %v4275
    %v4334 = vpack.c.b16 %v4278, %v4276
    %v4335 = vpack.c.b16 %v4281, %v4279
    %v4336 = vpack.c.b16 %v4282, %v4280
    %v4337 = vpack.c.b16 %v4285, %v4283
    %v4338 = vpack.c.b16 %v4286, %v4284
    %v4339 = vpack.c.b16 %v4289, %v4287
    %v4340 = vpack.c.b16 %v4290, %v4288
    %v4341 = vpack.c.b16 %v4293, %v4291
    %v4342 = vpack.c.b16 %v4294, %v4292
    %v4343 = vpack.c.b16 %v4297, %v4295
    %v4344 = vpack.c.b16 %v4298, %v4296
    %v4345 = vpack.c.b16 %v4301, %v4299
    %v4346 = vpack.c.b16 %v4302, %v4300
    %v4347 = vpack.c.b16 %v4305, %v4303
    %v4348 = vpack.c.b16 %v4306, %v4304
    %v4349 = vpack.c.b16 %v4309, %v4307
    %v4350 = vpack.c.b16 %v4310, %v4308
    %v4351 = vpack.c.b16 %v4313, %v4311
    %v4352 = vpack.c.b16 %v4314, %v4312
    %v4353 = vpack.c.b16 %v4317, %v4315
    %v4354 = vpack.c.b16 %v4318, %v4316
    %v4355 = vpack.c.b16 %v4321, %v4319
    %v4356 = vpack.c.b16 %v4322, %v4320
    %v4357 = vpack.c.b16 %v4325, %v4323
    %v4358 = vpack.c.b16 %v4326, %v4324
    %4391 = vmatprep.subr.bf16.mxu0 %v4328
    %4392 = vmatpush1.bf16.msra.mxu0 %v4327
    %4393 = vmatprep.subr.bf16.mxu0 %v4330
    %4394 = vmatpush1.bf16.msra.mxu0 %v4329
    %4395 = vmatprep.subr.bf16.mxu0 %v4332
    %4396 = vmatpush1.bf16.msra.mxu0 %v4331
    %4397 = vmatprep.subr.bf16.mxu0 %v4334
    %4398 = vmatpush1.bf16.msra.mxu0 %v4333
    %4399 = vmatprep.subr.bf16.mxu0 %v4336
    %4400 = vmatpush1.bf16.msra.mxu0 %v4335
    %4401 = vmatprep.subr.bf16.mxu0 %v4338
    %4402 = vmatpush1.bf16.msra.mxu0 %v4337
    %4403 = vmatprep.subr.bf16.mxu0 %v4340
    %4404 = vmatpush1.bf16.msra.mxu0 %v4339
    %4405 = vmatprep.subr.bf16.mxu0 %v4342
    %4406 = vmatpush1.bf16.msra.mxu0 %v4341
    %4407 = vmatprep.subr.bf16.mxu0 %v4344
    %4408 = vmatpush1.bf16.msra.mxu0 %v4343
    %4409 = vmatprep.subr.bf16.mxu0 %v4346
    %4410 = vmatpush1.bf16.msra.mxu0 %v4345
    %4411 = vmatprep.subr.bf16.mxu0 %v4348
    %4412 = vmatpush1.bf16.msra.mxu0 %v4347
    %4413 = vmatprep.subr.bf16.mxu0 %v4350
    %4414 = vmatpush1.bf16.msra.mxu0 %v4349
    %4415 = vmatprep.subr.bf16.mxu0 %v4352
    %4416 = vmatpush1.bf16.msra.mxu0 %v4351
    %4417 = vmatprep.subr.bf16.mxu0 %v4354
    %4418 = vmatpush1.bf16.msra.mxu0 %v4353
    %4419 = vmatprep.subr.bf16.mxu0 %v4356
    %4420 = vmatpush1.bf16.msra.mxu0 %v4355
    %4421 = vmatprep.subr.bf16.mxu0 %v4358
    %4422 = vmatpush1.bf16.msra.mxu0 %v4357
    %4423 = vmatprep.mubr.bf16.mxu0 %v4179
    %4424 = vmatmul.mubr.bf16.gmra.mrb[0].mxu0 %v4178
    %v4425 = vpop.f32.mrb[0].mxu0
    %v4426 = vadd.f32 %v4226, %v4425
    %v4427 = vpop.f32.mrb[0].mxu0
    %v4428 = vadd.f32 %v4230, %v4427
    %v4429 = vpop.f32.mrb[0].mxu0
    %v4430 = vpop.f32.mrb[0].mxu0
    %4431 = vdwg.mxu0
    %v4432 = vmax.f32 %v4426, 0.0
    %v4433 = vmax.f32 %v4428, 0.0
    %v4434 = vpack.c.bf16 %v3920, %v3920
    %v4435 = vpack.c.bf16 %v3921, %v3921
    %v4436 = vpack.c.bf16 %v4432, %v4432
    %v4437 = vpack.c.bf16 %v4433, %v4433
    %v4438 = vld [vmem:[%s9] sm:$0xf]
    %v4439 = vld [vmem:[%s9 + $0x4] sm:$0xf]
    %v4440 = vld [vmem:[%s9 + $0x8] sm:$0xf]
    %v4441 = vld [vmem:[%s9 + $0xc] sm:$0xf]
    %v4442 = vld [vmem:[%s9 + $0x10] sm:$0xf]
    %v4443 = vld [vmem:[%s9 + $0x14] sm:$0xf]
    %v4444 = vld [vmem:[%s9 + $0x18] sm:$0xf]
    %v4445 = vld [vmem:[%s9 + $0x1c] sm:$0xf]
    %v4446 = vld [vmem:[%s9 + $0x20] sm:$0xf]
    %v4447 = vld [vmem:[%s9 + $0x24] sm:$0xf]
    %v4448 = vld [vmem:[%s9 + $0x28] sm:$0xf]
    %v4449 = vld [vmem:[%s9 + $0x2c] sm:$0xf]
    %v4450 = vld [vmem:[%s9 + $0x30] sm:$0xf]
    %v4451 = vld [vmem:[%s9 + $0x34] sm:$0xf]
    %v4452 = vld [vmem:[%s9 + $0x38] sm:$0xf]
    %v4453 = vld [vmem:[%s9 + $0x3c] sm:$0xf]
    %v4454 = vld [vmem:[%s9 + $0x40] sm:$0xf]
    %v4455 = vld [vmem:[%s9 + $0x44] sm:$0xf]
    %v4456 = vld [vmem:[%s9 + $0x48] sm:$0xf]
    %v4457 = vld [vmem:[%s9 + $0x4c] sm:$0xf]
    %v4458 = vld [vmem:[%s9 + $0x50] sm:$0xf]
    %v4459 = vld [vmem:[%s9 + $0x54] sm:$0xf]
    %v4460 = vld [vmem:[%s9 + $0x58] sm:$0xf]
    %v4461 = vld [vmem:[%s9 + $0x5c] sm:$0xf]
    %v4462 = vld [vmem:[%s9 + $0x60] sm:$0xf]
    %v4463 = vld [vmem:[%s9 + $0x64] sm:$0xf]
    %v4464 = vld [vmem:[%s9 + $0x68] sm:$0xf]
    %v4465 = vld [vmem:[%s9 + $0x6c] sm:$0xf]
    %v4466 = vld [vmem:[%s9 + $0x70] sm:$0xf]
    %v4467 = vld [vmem:[%s9 + $0x74] sm:$0xf]
    %v4468 = vld [vmem:[%s9 + $0x78] sm:$0xf]
    %v4469 = vld [vmem:[%s9 + $0x7c] sm:$0xf]
    %v4470 = vld [vmem:[%s9 + $0x80] sm:$0xf]
    %v4471 = vld [vmem:[%s9 + $0x84] sm:$0xf]
    %v4472 = vld [vmem:[%s9 + $0x88] sm:$0xf]
    %v4473 = vld [vmem:[%s9 + $0x8c] sm:$0xf]
    %v4474 = vld [vmem:[%s9 + $0x90] sm:$0xf]
    %v4475 = vld [vmem:[%s9 + $0x94] sm:$0xf]
    %v4476 = vld [vmem:[%s9 + $0x98] sm:$0xf]
    %v4477 = vld [vmem:[%s9 + $0x9c] sm:$0xf]
    %v4478 = vld [vmem:[%s9 + $0xa0] sm:$0xf]
    %v4479 = vld [vmem:[%s9 + $0xa4] sm:$0xf]
    %v4480 = vld [vmem:[%s9 + $0xa8] sm:$0xf]
    %v4481 = vld [vmem:[%s9 + $0xac] sm:$0xf]
    %v4482 = vld [vmem:[%s9 + $0xb0] sm:$0xf]
    %v4483 = vld [vmem:[%s9 + $0xb4] sm:$0xf]
    %v4484 = vld [vmem:[%s9 + $0xb8] sm:$0xf]
    %v4485 = vld [vmem:[%s9 + $0xbc] sm:$0xf]
    %v4486 = vld [vmem:[%s9 + $0xc0] sm:$0xf]
    %v4487 = vld [vmem:[%s9 + $0xc4] sm:$0xf]
    %v4488 = vld [vmem:[%s9 + $0xc8] sm:$0xf]
    %v4489 = vld [vmem:[%s9 + $0xcc] sm:$0xf]
    %v4490 = vld [vmem:[%s9 + $0xd0] sm:$0xf]
    %v4491 = vld [vmem:[%s9 + $0xd4] sm:$0xf]
    %v4492 = vld [vmem:[%s9 + $0xd8] sm:$0xf]
    %v4493 = vld [vmem:[%s9 + $0xdc] sm:$0xf]
    %v4494 = vld [vmem:[%s9 + $0xe0] sm:$0xf]
    %v4495 = vld [vmem:[%s9 + $0xe4] sm:$0xf]
    %v4496 = vld [vmem:[%s9 + $0xe8] sm:$0xf]
    %v4497 = vld [vmem:[%s9 + $0xec] sm:$0xf]
    %v4498 = vld [vmem:[%s9 + $0xf0] sm:$0xf]
    %v4499 = vld [vmem:[%s9 + $0xf4] sm:$0xf]
    %v4500 = vld [vmem:[%s9 + $0xf8] sm:$0xf]
    %v4501 = vld [vmem:[%s9 + $0xfc] sm:$0xf]
    %v4566 = vunpack.c.l.b16 %v4438
    %v4567 = vunpack.c.l.b16 %v4439
    %v4568 = vunpack.c.l.b16 %v4440
    %v4569 = vunpack.c.l.b16 %v4441
    %v4570 = vunpack.c.l.b16 %v4442
    %v4571 = vunpack.c.l.b16 %v4443
    %v4572 = vunpack.c.l.b16 %v4444
    %v4573 = vunpack.c.l.b16 %v4445
    %v4574 = vunpack.c.l.b16 %v4446
    %v4575 = vunpack.c.l.b16 %v4447
    %v4576 = vunpack.c.l.b16 %v4448
    %v4577 = vunpack.c.l.b16 %v4449
    %v4578 = vunpack.c.l.b16 %v4450
    %v4579 = vunpack.c.l.b16 %v4451
    %v4580 = vunpack.c.l.b16 %v4452
    %v4581 = vunpack.c.l.b16 %v4453
    %v4582 = vunpack.c.l.b16 %v4454
    %v4583 = vunpack.c.l.b16 %v4455
    %v4584 = vunpack.c.l.b16 %v4456
    %v4585 = vunpack.c.l.b16 %v4457
    %v4586 = vunpack.c.l.b16 %v4458
    %v4587 = vunpack.c.l.b16 %v4459
    %v4588 = vunpack.c.l.b16 %v4460
    %v4589 = vunpack.c.l.b16 %v4461
    %v4590 = vunpack.c.l.b16 %v4462
    %v4591 = vunpack.c.l.b16 %v4463
    %v4592 = vunpack.c.l.b16 %v4464
    %v4593 = vunpack.c.l.b16 %v4465
    %v4594 = vunpack.c.l.b16 %v4466
    %v4595 = vunpack.c.l.b16 %v4467
    %v4596 = vunpack.c.l.b16 %v4468
    %v4597 = vunpack.c.l.b16 %v4469
    %v4598 = vunpack.c.l.b16 %v4470
    %v4599 = vunpack.c.l.b16 %v4471
    %v4600 = vunpack.c.l.b16 %v4472
    %v4601 = vunpack.c.l.b16 %v4473
    %v4602 = vunpack.c.l.b16 %v4474
    %v4603 = vunpack.c.l.b16 %v4475
    %v4604 = vunpack.c.l.b16 %v4476
    %v4605 = vunpack.c.l.b16 %v4477
    %v4606 = vunpack.c.l.b16 %v4478
    %v4607 = vunpack.c.l.b16 %v4479
    %v4608 = vunpack.c.l.b16 %v4480
    %v4609 = vunpack.c.l.b16 %v4481
    %v4610 = vunpack.c.l.b16 %v4482
    %v4611 = vunpack.c.l.b16 %v4483
    %v4612 = vunpack.c.l.b16 %v4484
    %v4613 = vunpack.c.l.b16 %v4485
    %v4614 = vunpack.c.l.b16 %v4486
    %v4615 = vunpack.c.l.b16 %v4487
    %v4616 = vunpack.c.l.b16 %v4488
    %v4617 = vunpack.c.l.b16 %v4489
    %v4618 = vunpack.c.l.b16 %v4490
    %v4619 = vunpack.c.l.b16 %v4491
    %v4620 = vunpack.c.l.b16 %v4492
    %v4621 = vunpack.c.l.b16 %v4493
    %v4622 = vunpack.c.l.b16 %v4494
    %v4623 = vunpack.c.l.b16 %v4495
    %v4624 = vunpack.c.l.b16 %v4496
    %v4625 = vunpack.c.l.b16 %v4497
    %v4626 = vunpack.c.l.b16 %v4498
    %v4627 = vunpack.c.l.b16 %v4499
    %v4628 = vunpack.c.l.b16 %v4500
    %v4629 = vunpack.c.l.b16 %v4501
    %v4630 = vpack.c.b16 %v4567, %v4566
    %v4631 = vpack.c.b16 %v4569, %v4568
    %v4632 = vpack.c.b16 %v4571, %v4570
    %v4633 = vpack.c.b16 %v4573, %v4572
    %v4634 = vpack.c.b16 %v4575, %v4574
    %v4635 = vpack.c.b16 %v4577, %v4576
    %v4636 = vpack.c.b16 %v4579, %v4578
    %v4637 = vpack.c.b16 %v4581, %v4580
    %v4638 = vpack.c.b16 %v4583, %v4582
    %v4639 = vpack.c.b16 %v4585, %v4584
    %v4640 = vpack.c.b16 %v4587, %v4586
    %v4641 = vpack.c.b16 %v4589, %v4588
    %v4642 = vpack.c.b16 %v4591, %v4590
    %v4643 = vpack.c.b16 %v4593, %v4592
    %v4644 = vpack.c.b16 %v4595, %v4594
    %v4645 = vpack.c.b16 %v4597, %v4596
    %v4646 = vpack.c.b16 %v4599, %v4598
    %v4647 = vpack.c.b16 %v4601, %v4600
    %v4648 = vpack.c.b16 %v4603, %v4602
    %v4649 = vpack.c.b16 %v4605, %v4604
    %v4650 = vpack.c.b16 %v4607, %v4606
    %v4651 = vpack.c.b16 %v4609, %v4608
    %v4652 = vpack.c.b16 %v4611, %v4610
    %v4653 = vpack.c.b16 %v4613, %v4612
    %v4654 = vpack.c.b16 %v4615, %v4614
    %v4655 = vpack.c.b16 %v4617, %v4616
    %v4656 = vpack.c.b16 %v4619, %v4618
    %v4657 = vpack.c.b16 %v4621, %v4620
    %v4658 = vpack.c.b16 %v4623, %v4622
    %v4659 = vpack.c.b16 %v4625, %v4624
    %v4660 = vpack.c.b16 %v4627, %v4626
    %v4661 = vpack.c.b16 %v4629, %v4628
    %4694 = vmatprep.subr.bf16.mxu0 0
    %4695 = vmatpush1.bf16.msra.mxu0 %v4630
    %4696 = vmatprep.subr.bf16.mxu0 0
    %4697 = vmatpush1.bf16.msra.mxu0 %v4631
    %4698 = vmatprep.subr.bf16.mxu0 0
    %4699 = vmatpush1.bf16.msra.mxu0 %v4632
    %4700 = vmatprep.subr.bf16.mxu0 0
    %4701 = vmatpush1.bf16.msra.mxu0 %v4633
    %4702 = vmatprep.subr.bf16.mxu0 0
    %4703 = vmatpush1.bf16.msra.mxu0 %v4634
    %4704 = vmatprep.subr.bf16.mxu0 0
    %4705 = vmatpush1.bf16.msra.mxu0 %v4635
    %4706 = vmatprep.subr.bf16.mxu0 0
    %4707 = vmatpush1.bf16.msra.mxu0 %v4636
    %4708 = vmatprep.subr.bf16.mxu0 0
    %4709 = vmatpush1.bf16.msra.mxu0 %v4637
    %4710 = vmatprep.subr.bf16.mxu0 0
    %4711 = vmatpush1.bf16.msra.mxu0 %v4638
    %4712 = vmatprep.subr.bf16.mxu0 0
    %4713 = vmatpush1.bf16.msra.mxu0 %v4639
    %4714 = vmatprep.subr.bf16.mxu0 0
    %4715 = vmatpush1.bf16.msra.mxu0 %v4640
    %4716 = vmatprep.subr.bf16.mxu0 0
    %4717 = vmatpush1.bf16.msra.mxu0 %v4641
    %4718 = vmatprep.subr.bf16.mxu0 0
    %4719 = vmatpush1.bf16.msra.mxu0 %v4642
    %4720 = vmatprep.subr.bf16.mxu0 0
    %4721 = vmatpush1.bf16.msra.mxu0 %v4643
    %4722 = vmatprep.subr.bf16.mxu0 0
    %4723 = vmatpush1.bf16.msra.mxu0 %v4644
    %4724 = vmatprep.subr.bf16.mxu0 0
    %4725 = vmatpush1.bf16.msra.mxu0 %v4645
    %4726 = vmatprep.mubr.bf16.mxu0 %v4435
    %4727 = vmatmul.mubr.bf16.gmra.mrb[0].mxu0 %v4434
    %v4728 = vpop.f32.mrb[0].mxu0
    %v4729 = vadd.f32 0.0, %v4728
    %v4730 = vpop.f32.mrb[0].mxu0
    %v4731 = vpop.f32.mrb[0].mxu0
    %v4732 = vpop.f32.mrb[0].mxu0
    %4733 = vdwg.mxu0
    %4734 = vmatprep.subr.bf16.mxu0 0
    %4735 = vmatpush1.bf16.msra.mxu0 %v4646
    %4736 = vmatprep.subr.bf16.mxu0 0
    %4737 = vmatpush1.bf16.msra.mxu0 %v4647
    %4738 = vmatprep.subr.bf16.mxu0 0
    %4739 = vmatpush1.bf16.msra.mxu0 %v4648
    %4740 = vmatprep.subr.bf16.mxu0 0
    %4741 = vmatpush1.bf16.msra.mxu0 %v4649
    %4742 = vmatprep.subr.bf16.mxu0 0
    %4743 = vmatpush1.bf16.msra.mxu0 %v4650
    %4744 = vmatprep.subr.bf16.mxu0 0
    %4745 = vmatpush1.bf16.msra.mxu0 %v4651
    %4746 = vmatprep.subr.bf16.mxu0 0
    %4747 = vmatpush1.bf16.msra.mxu0 %v4652
    %4748 = vmatprep.subr.bf16.mxu0 0
    %4749 = vmatpush1.bf16.msra.mxu0 %v4653
    %4750 = vmatprep.subr.bf16.mxu0 0
    %4751 = vmatpush1.bf16.msra.mxu0 %v4654
    %4752 = vmatprep.subr.bf16.mxu0 0
    %4753 = vmatpush1.bf16.msra.mxu0 %v4655
    %4754 = vmatprep.subr.bf16.mxu0 0
    %4755 = vmatpush1.bf16.msra.mxu0 %v4656
    %4756 = vmatprep.subr.bf16.mxu0 0
    %4757 = vmatpush1.bf16.msra.mxu0 %v4657
    %4758 = vmatprep.subr.bf16.mxu0 0
    %4759 = vmatpush1.bf16.msra.mxu0 %v4658
    %4760 = vmatprep.subr.bf16.mxu0 0
    %4761 = vmatpush1.bf16.msra.mxu0 %v4659
    %4762 = vmatprep.subr.bf16.mxu0 0
    %4763 = vmatpush1.bf16.msra.mxu0 %v4660
    %4764 = vmatprep.subr.bf16.mxu0 0
    %4765 = vmatpush1.bf16.msra.mxu0 %v4661
    %4766 = vmatprep.mubr.bf16.mxu0 %v4437
    %4767 = vmatmul.mubr.bf16.gmra.mrb[0].mxu0 %v4436
    %v4768 = vpop.f32.mrb[0].mxu0
    %v4769 = vadd.f32 %v4729, %v4768
    %v4770 = vpop.f32.mrb[0].mxu0
    %v4771 = vpop.f32.mrb[0].mxu0
    %v4772 = vpop.f32.mrb[0].mxu0
    %4773 = vdwg.mxu0
    %v4774 = vlaneseq
    %v4775 = vand.u32 %v4774, 127
    %vm4776 = vcmp.lt.s32.totalorder %v4775, 0
    %v4777 = vsub.s32 0, %v4775
    %v4778 = vsel %vm4776, %v4777, %v4775
    %v4779 = vshrl.u32 %v4778, 1
    %v4780 = vand.u32 %v4778, 1
    %v4781 = vsub.s32 0, %v4780
    %v4782 = vsel %vm4776, %v4781, %v4780
    %vm4783 = vcmp.ne.s32.totalorder %v4782, 0
    %vm4784 = vcmp.lt.s32.totalorder %v4782, 0
    %vm4785 = vmand %vm4784, %vm4783
    %v4786 = vadd.s32 %v4782, 2
    %v4787 = vsel %vm4785, %v4786, %v4782
    %vm4788 = vcmp.eq.s32.totalorder %v4787, 1
    %v4789 = vsel %vm4788, 0.0, -0.7853982
    %v4790 = vsel %vm4788, 6.2831855, 1.5707964
    %v4791 = vmax.f32 %v4769, %v4789
    %v4792 = vmin.f32 %v4791, %v4790
    %vm4793 = vcmask 25600
    %4794 = vst.msk [vmem:[#allocation7] sm:$0x3] %vm4793, %v4792
    // Predicated region
    $region54: #{tpu_custom_call.1} parent=1 // pred_check
      _
    $region55: #{tpu_custom_call.1} parent=1 // pred_check_branch
      %4796 = sbr.rel (0) target = $region57
    $region56: #{tpu_custom_call.1} parent=1 // pred_region
      %s4798 = ssub.s32 32, 32
      %4799 = vsyncadd [#allocation4], %s4798
      %s4801 = sshll.u32 [#allocation7], 4
      %s4802 = int_to_ptr.vmem [resolvable:$true] %s4801
      %4804 = dma.vmem_to_hbm [thread:$0]  %s4802, 32, %s11, [#allocation4]
    $region57: #{tpu_custom_call.1} parent=1 // pred_fallthru
      _
    // Predicated region
    $region58: #{tpu_custom_call.1} parent=1 // pred_check
      _
    $region59: #{tpu_custom_call.1} parent=1 // pred_check_branch
      %4806 = sbr.rel (0) target = $region61
    $region60: #{tpu_custom_call.1} parent=1 // pred_region
      %4807 = dma.done [#allocation4], 32
    $region61: #{tpu_custom_call.1} parent=1 // pred_fallthru
      _
    %4808 = vsyncpa [#allocation3], 1
    %4809 = vsyncpa [#allocation6], 1
    %4810 = vsyncpa [#allocation4], 1

</llo_original>
